<compile_context>
chip_gen: v7x
topology: tpu7x:2x2x1
jax: 0.10.0
libtpu: 0.0.40
codegen_flags: <defaults>
</compile_context>

<pallas_src>
import functools
import math

import jax
import jax.numpy as jnp
from jax import lax
from jax.experimental import pallas as pl
from jax.experimental.pallas import tpu as pltpu

BF16 = jnp.bfloat16


# ----------------------------------------------------------------------------
# small helpers
# ----------------------------------------------------------------------------
def _dot_nn(a, b):
    """a @ b with f32 accumulation on the MXU."""
    return lax.dot_general(a, b, (((1,), (0,)), ((), ())),
                           preferred_element_type=jnp.float32)


def _dot_nt(a, b):
    """a @ b.T (contract last dims) with f32 accumulation on the MXU."""
    return lax.dot_general(a, b, (((1,), (1,)), ((), ())),
                           preferred_element_type=jnp.float32)


def _inv(shape):
    """Full-array block, loop-invariant (same block at every grid step)."""
    nd = len(shape)
    return pl.BlockSpec(tuple(shape), lambda *_, _nd=nd: (0,) * _nd)


def _per_layer(shape):
    """Leading dim is the layer axis, indexed by grid step l."""
    nd = len(shape)
    return pl.BlockSpec((1,) + tuple(shape[1:]),
                        lambda l, _nd=nd: (l,) + (0,) * (_nd - 1))


# ----------------------------------------------------------------------------
# The single fused kernel: embed (layer 0) -> 6 conv layers -> pool+readout (last)
# ----------------------------------------------------------------------------
def fused_gnn_kernel(
        # prologue inputs (loop-invariant)
        x_ref, pos_ref, ea_ref, nw_ref, nb_ref, fe_ref, pws_ref, pwc_ref,
        ew_ref, eb_ref,
        # graph-structure operands (loop-invariant, 0/1 -> bf16 exact)
        rn_ref, re_ref, bdn_ref, bde_ref, sbd_ref, stbd_ref, bsel_ref,
        dmt_ref, adjt_ref, hm_ref,
        # pooling / readout (loop-invariant)
        mem_ref, memt_ref, w1_ref, b1_ref, w2_ref, b2_ref, w3_ref, b3_ref,
        # per-layer weights (streamed along the layer grid axis)
        wf_ref, bf_ref, we_ref, wba_ref, wbb_ref, g_ref, lb_ref,
        # output
        o_ref,
        # scratch
        h_scr, e_scr,
        *, heads, ch, num_graphs):
    layer = pl.program_id(0)
    last = pl.num_programs(0) - 1
    hh = heads * ch

    # ------------- prologue: node / positional / edge embeddings -------------
    @pl.when(layer == 0)
    def _embed():
        h = _dot_nn(x_ref[...].astype(BF16), nw_ref[...]) + nb_ref[...]
        # 3D positional encoding: one angle matmul + sin/cos + two weight matmuls
        ang = _dot_nn(pos_ref[...], fe_ref[...])            # (N, 3F) f32
        h = h + _dot_nn(jnp.sin(ang), pws_ref[...]) + _dot_nn(jnp.cos(ang), pwc_ref[...])
        h_scr[...] = h
        # edge embedding, replicated per head once: e_rep = Re @ (edge_attr @ We_emb + b)
        e = _dot_nn(ea_ref[...].astype(BF16), ew_ref[...]) + eb_ref[...]   # (E, ch)
        e_scr[...] = _dot_nn(re_ref[...], e.astype(BF16)).astype(BF16)     # (heads*E, ch)

    # ---------------------- TransformerConv (all heads batched) --------------
    x = h_scr[...]                                          # (N, ch) f32
    xb = x.astype(BF16)

    # fused Q|K|V|skip projection: one (N, ch) @ (ch, 3*hh + ch) matmul
    proj = _dot_nn(xb, wf_ref[0]) + bf_ref[0]               # (N, 3*hh + ch) f32
    q = proj[:, 0:hh]
    k = proj[:, hh:2 * hh]
    v = proj[:, 2 * hh:3 * hh]
    xr = proj[:, 3 * hh:3 * hh + ch]                        # skip branch

    rn = rn_ref[...]                                        # (heads*N, N)  bf16
    bdn = bdn_ref[...]                                      # (heads*N, hh) bf16 0/1
    # block-diagonal key / value / edge operands (replicate rows, keep own head block)
    k_bd = (_dot_nn(rn, k.astype(BF16)) * bdn).astype(BF16)            # (heads*N, hh)
    v_bd = (_dot_nn(rn, v.astype(BF16)) * bdn).astype(BF16)            # (heads*N, hh)
    f_bd = (_dot_nn(e_scr[...], we_ref[0]) * bde_ref[...]).astype(BF16)  # (heads*E, hh)

    qb = q.astype(BF16)
    adj_t = adjt_ref[...]                                   # (N, heads*N) bf16 0/1
    dmt = dmt_ref[...]                                      # (N, heads*E) bf16 0/1

    # scores for all heads at once: sc[i, h*N+j] = q_h[i].(k_h[j] + e_{j->i,h})
    sc = _dot_nt(qb, k_bd)                                  # (N, heads*N)
    pe = _dot_nt(qb, f_bd) * dmt                            # (N, heads*E)
    sc = (sc + _dot_nn(pe.astype(BF16), sbd_ref[...])) * (1.0 / math.sqrt(ch))
    sc = jnp.where(adj_t > 0.0, sc, jnp.float32(-1e30))

    # softmax per (node, head): global row max is a valid shift (exact, f32 math);
    # per-head denominator via two tiny block-sum matmuls (no (heads*N)^2 operand)
    m = jnp.max(sc, axis=-1, keepdims=True)
    p = jnp.exp(sc - m) * adj_t                             # (N, heads*N) f32
    den = _dot_nn(_dot_nt(p, bsel_ref[...]), bsel_ref[...])  # per-head sums, broadcast
    alpha = p / jnp.maximum(den, 1e-16)                     # rows w/o edges -> 0
    ab = alpha.astype(BF16)

    # messages: alpha @ V  +  (alpha gathered per edge) @ F, all heads at once
    ae = (_dot_nn(ab, stbd_ref[...]) * dmt).astype(BF16)    # (N, heads*E)
    msg = _dot_nn(ab, v_bd) + _dot_nn(ae, f_bd)             # (N, hh) f32
    out = _dot_nn(msg, hm_ref[...])                         # (N, ch) mean over heads

    # beta gate, folded: logit = out.(w0+w2) + x_r.(w1-w2)
    logit = (jnp.sum(out * wba_ref[0], axis=-1, keepdims=True)
             + jnp.sum(xr * wbb_ref[0], axis=-1, keepdims=True))
    beta = jax.nn.sigmoid(logit)
    y = beta * xr + (1.0 - beta) * out

    # per-node LayerNorm + ReLU + residual (layers > 0) -- all f32 VPU math
    mu = jnp.mean(y, axis=-1, keepdims=True)
    var = jnp.mean((y - mu) ** 2, axis=-1, keepdims=True)
    yn = (y - mu) * lax.rsqrt(var + 1e-5) * g_ref[0] + lb_ref[0]
    yn = jnp.maximum(yn, 0.0)
    yn = yn + (layer > 0).astype(jnp.float32) * x
    h_scr[...] = yn

    # ------------- epilogue: [mean | max | add] pooling + readout MLP --------
    @pl.when(layer == last)
    def _readout():
        xf = yn                                             # (N, ch) f32
        mem = mem_ref[...]                                  # (G, N) bf16 0/1
        ssum = _dot_nn(mem, xf.astype(BF16))                # add pool  (G, ch)
        cnt = jnp.sum(mem.astype(jnp.float32), axis=-1, keepdims=True)
        mean = ssum / jnp.maximum(cnt, 1.0)                 # mean pool
        memt = memt_ref[...]                                # (N, G) bf16
        rows = []
        for g in range(num_graphs):                         # max pool, where-masked
            msk = memt[:, g:g + 1] > 0.0
            masked = jnp.where(msk, xf, jnp.float32(-3e38))
            rows.append(jnp.max(masked, axis=0, keepdims=True))
        mx = jnp.concatenate(rows, axis=0)                  # (G, ch)
        w1 = w1_ref[...]                                    # (3*ch, 2*ch) bf16
        h1 = (_dot_nn(mean.astype(BF16), w1[0:ch])
              + _dot_nn(mx.astype(BF16), w1[ch:2 * ch])
              + _dot_nn(ssum.astype(BF16), w1[2 * ch:3 * ch])
              + b1_ref[...])
        h1 = jnp.maximum(h1, 0.0)
        h2 = jnp.maximum(_dot_nn(h1.astype(BF16), w2_ref[...]) + b2_ref[...], 0.0)
        o_ref[...] = _dot_nn(h2.astype(BF16), w3_ref[...]) + b3_ref[...]


# ----------------------------------------------------------------------------
# Parameter construction (deterministic xavier_uniform / zeros, as in __init__)
# ----------------------------------------------------------------------------
def _xavier(key, fan_in, fan_out):
    limit = math.sqrt(6.0 / (fan_in + fan_out))
    return jax.random.uniform(key, (fan_in, fan_out), jnp.float32, -limit, limit)


def init_params(key, input_dim, hidden, output_dim, num_layers, heads, edge_dim):
    n_freq = hidden // 6
    keys = iter(jax.random.split(key, 8 + 6 * num_layers + 8))
    zb = lambda n: jnp.zeros((1, n), jnp.float32)
    p = {
        "node_w": _xavier(next(keys), input_dim, hidden), "node_b": zb(hidden),
        "edge_w": _xavier(next(keys), edge_dim, hidden), "edge_b": zb(hidden),
        "pos_freq": jnp.linspace(0.0, 10.0, n_freq).reshape(1, n_freq).astype(jnp.float32),
        "pos_w": _xavier(next(keys), 6 * n_freq, hidden), "pos_b": zb(hidden),
        "layers": [],
        "ro_w1": _xavier(next(keys), hidden * 3, hidden * 2), "ro_b1": zb(hidden * 2),
        "ro_w2": _xavier(next(keys), hidden * 2, hidden), "ro_b2": zb(hidden),
        "ro_w3": _xavier(next(keys), hidden, output_dim), "ro_b3": zb(output_dim),
    }
    for _ in range(num_layers):
        lp = {
            "wq": _xavier(next(keys), hidden, heads * hidden), "bq": zb(heads * hidden),
            "wk": _xavier(next(keys), hidden, heads * hidden), "bk": zb(heads * hidden),
            "wv": _xavier(next(keys), hidden, heads * hidden), "bv": zb(heads * hidden),
            "we": _xavier(next(keys), hidden, heads * hidden),               # no bias
            "wskip": _xavier(next(keys), hidden, hidden), "bskip": zb(hidden),
            "wbeta": _xavier(next(keys), 3 * hidden, 1),                     # no bias
            "gamma": jnp.ones((1, hidden), jnp.float32),
            "lnb": jnp.zeros((1, hidden), jnp.float32),
        }
        p["layers"].append(lp)
    return p


# ----------------------------------------------------------------------------
# Forward pass (ONE pallas_call)
# ----------------------------------------------------------------------------
def quantum_gnn_forward(params, x, edge_index, edge_attr, pos, batch, *, num_graphs):
    f32 = jnp.float32
    n = x.shape[0]
    n_edges = edge_attr.shape[0]
    hidden = params["node_w"].shape[1]
    heads = params["layers"][0]["wq"].shape[1] // hidden
    num_layers = len(params["layers"])
    output_dim = params["ro_w3"].shape[1]
    n_freq = params["pos_freq"].shape[1]

    # ---- graph structure: incidence, adjacency, block-diagonal selectors (bf16) ----
    src, dst = edge_index[0], edge_index[1]
    node_ids = jnp.arange(n, dtype=jnp.int32)
    dmask = (node_ids[:, None] == dst[None, :]).astype(f32)     # (N, E) dst incidence
    smat = (src[:, None] == node_ids[None, :]).astype(f32)      # (E, N) src incidence
    stmat = smat.T                                               # (N, E)
    adj = jnp.minimum(jnp.dot(dmask, smat), 1.0)                 # (N, N) edge j->i at [i,j]

    eye_h = jnp.eye(heads, dtype=f32)
    ones_h = jnp.ones((heads, 1), f32)
    rn = jnp.kron(ones_h, jnp.eye(n, dtype=f32)).astype(BF16)            # (H*N, N)
    re_ = jnp.kron(ones_h, jnp.eye(n_edges, dtype=f32)).astype(BF16)     # (H*E, E)
    bdm_nk = jnp.kron(eye_h, jnp.ones((n, hidden), f32)).astype(BF16)    # (H*N, H*ch)
    bdm_ek = jnp.kron(eye_h, jnp.ones((n_edges, hidden), f32)).astype(BF16)
    sbd = jnp.kron(eye_h, smat).astype(BF16)                     # (H*E, H*N)
    stbd = jnp.kron(eye_h, stmat).astype(BF16)                   # (H*N, H*E)
    bsel = jnp.kron(eye_h, jnp.ones((1, n), f32))                # (H, H*N)  f32
    dmask_t = jnp.tile(dmask, (1, heads)).astype(BF16)           # (N, H*E)
    adj_t = jnp.tile(adj, (1, heads)).astype(BF16)               # (N, H*N)
    hmean = jnp.kron(ones_h, jnp.eye(hidden, dtype=f32)) / heads  # (H*ch, ch) f32
    member = (jnp.arange(num_graphs, dtype=jnp.int32)[:, None]
              == batch[None, :]).astype(BF16)                    # (G, N)
    membert = member.T                                           # (N, G)

    # ---- per-layer weights, fused / folded, stacked along a leading layer axis ----
    lys = params["layers"]
    wf_stack = jnp.stack([jnp.concatenate([p["wq"], p["wk"], p["wv"], p["wskip"]],
                                          axis=1) for p in lys]).astype(BF16)
    bf_stack = jnp.stack([jnp.concatenate([p["bq"], p["bk"], p["bv"], p["bskip"]],
                                          axis=1) for p in lys])
    we_stack = jnp.stack([p["we"] for p in lys]).astype(BF16)
    wba_stack = jnp.stack([(p["wbeta"][:hidden] + p["wbeta"][2 * hidden:]).T
                           for p in lys])
    wbb_stack = jnp.stack([(p["wbeta"][hidden:2 * hidden] - p["wbeta"][2 * hidden:]).T
                           for p in lys])
    gamma_stack = jnp.stack([p["gamma"] for p in lys])
    lnb_stack = jnp.stack([p["lnb"] for p in lys])

    # ---- positional-encoder operands: single angle matmul + rearranged weights ----
    freq = params["pos_freq"][0]                                 # (F,)
    fe = jnp.kron(jnp.eye(3, dtype=f32), freq[None, :])          # (3, 3F)
    pw = params["pos_w"]                                         # (6F, H)
    nf = n_freq
    pw_sin = jnp.concatenate([pw[0:nf], pw[2 * nf:3 * nf], pw[4 * nf:5 * nf]], axis=0)
    pw_cos = jnp.concatenate([pw[nf:2 * nf], pw[3 * nf:4 * nf], pw[5 * nf:6 * nf]], axis=0)
    nb_tot = params["node_b"] + params["pos_b"]                  # bias(node)+bias(pos)

    inv_args = (
        x, pos, edge_attr,
        params["node_w"].astype(BF16), nb_tot, fe, pw_sin, pw_cos,
        params["edge_w"].astype(BF16), params["edge_b"],
        rn, re_, bdm_nk, bdm_ek, sbd, stbd, bsel, dmask_t, adj_t, hmean,
        member, membert,
        params["ro_w1"].astype(BF16), params["ro_b1"],
        params["ro_w2"].astype(BF16), params["ro_b2"],
        params["ro_w3"].astype(BF16), params["ro_b3"],
    )
    lay_args = (wf_stack, bf_stack, we_stack, wba_stack, wbb_stack,
                gamma_stack, lnb_stack)

    out = pl.pallas_call(
        functools.partial(fused_gnn_kernel, heads=heads, ch=hidden,
                          num_graphs=num_graphs),
        out_shape=jax.ShapeDtypeStruct((num_graphs, output_dim), f32),
        grid=(num_layers,),
        in_specs=([_inv(a.shape) for a in inv_args]
                  + [_per_layer(a.shape) for a in lay_args]),
        out_specs=_inv((num_graphs, output_dim)),
        scratch_shapes=[pltpu.VMEM((n, hidden), f32),                 # node state h
                        pltpu.VMEM((heads * n_edges, hidden), BF16)],  # per-head e_rep
        compiler_params=pltpu.CompilerParams(
            dimension_semantics=("arbitrary",),
            # TODO(synk): re-derive per generation when N grows (v7x: 64 MiB physical).
            vmem_limit_bytes=32 * 1024 * 1024),
    )(*inv_args, *lay_args)
    return out


# ----------------------------------------------------------------------------
# Main
# ----------------------------------------------------------------------------
if __name__ == "__main__":
    INPUT_DIM, HIDDEN, OUTPUT_DIM = 4, 32, 8
    NUM_LAYERS, NUM_HEADS, EDGE_DIM = 6, 8, 4
    NODES_PER_GRAPH, NUM_GRAPHS = 8, 2
    N = NODES_PER_GRAPH * NUM_GRAPHS

    key = jax.random.PRNGKey(0)
    k_param, k_x, k_e, k_p = jax.random.split(key, 4)

    params = init_params(k_param, INPUT_DIM, HIDDEN, OUTPUT_DIM,
                         NUM_LAYERS, NUM_HEADS, EDGE_DIM)

    # deterministic small graph batch: two 8-node bidirectional rings
    src_l, dst_l = [], []
    for g in range(NUM_GRAPHS):
        for i in range(NODES_PER_GRAPH):
            a = g * NODES_PER_GRAPH + i
            b = g * NODES_PER_GRAPH + (i + 1) % NODES_PER_GRAPH
            src_l += [a, b]
            dst_l += [b, a]
    edge_index = jnp.array([src_l, dst_l], dtype=jnp.int32)                  # (2, 32)
    E = edge_index.shape[1]

    x = jax.random.normal(k_x, (N, INPUT_DIM), jnp.float32)
    edge_attr = jax.random.normal(k_e, (E, EDGE_DIM), jnp.float32)
    pos = jax.random.normal(k_p, (N, 3), jnp.float32)
    batch = jnp.repeat(jnp.arange(NUM_GRAPHS, dtype=jnp.int32), NODES_PER_GRAPH)

    fwd = jax.jit(functools.partial(quantum_gnn_forward, num_graphs=NUM_GRAPHS))
    out = fwd(params, x, edge_index, edge_attr, pos, batch)
    out = jax.block_until_ready(out)
    assert out.shape == (NUM_GRAPHS, OUTPUT_DIM)
    assert bool(jnp.all(jnp.isfinite(out)))
    print("KERNEL_OK")
</pallas_src>

<mosaic_0001>
module attributes {stable_mosaic.version = 11 : i64} {
  func.func @fused_gnn_kernel(%arg0: i32, %arg1: memref<16x4xf32, #tpu.memory_space<vmem>>, %arg2: memref<16x3xf32, #tpu.memory_space<vmem>>, %arg3: memref<32x4xf32, #tpu.memory_space<vmem>>, %arg4: memref<4x32xbf16, #tpu.memory_space<vmem>>, %arg5: memref<1x32xf32, #tpu.memory_space<vmem>>, %arg6: memref<3x15xf32, #tpu.memory_space<vmem>>, %arg7: memref<15x32xf32, #tpu.memory_space<vmem>>, %arg8: memref<15x32xf32, #tpu.memory_space<vmem>>, %arg9: memref<4x32xbf16, #tpu.memory_space<vmem>>, %arg10: memref<1x32xf32, #tpu.memory_space<vmem>>, %arg11: memref<128x16xbf16, #tpu.memory_space<vmem>>, %arg12: memref<256x32xbf16, #tpu.memory_space<vmem>>, %arg13: memref<128x256xbf16, #tpu.memory_space<vmem>>, %arg14: memref<256x256xbf16, #tpu.memory_space<vmem>>, %arg15: memref<256x128xbf16, #tpu.memory_space<vmem>>, %arg16: memref<128x256xbf16, #tpu.memory_space<vmem>>, %arg17: memref<8x128xf32, #tpu.memory_space<vmem>>, %arg18: memref<16x256xbf16, #tpu.memory_space<vmem>>, %arg19: memref<16x128xbf16, #tpu.memory_space<vmem>>, %arg20: memref<256x32xf32, #tpu.memory_space<vmem>>, %arg21: memref<2x16xbf16, #tpu.memory_space<vmem>>, %arg22: memref<16x2xbf16, #tpu.memory_space<vmem>>, %arg23: memref<96x64xbf16, #tpu.memory_space<vmem>>, %arg24: memref<1x64xf32, #tpu.memory_space<vmem>>, %arg25: memref<64x32xbf16, #tpu.memory_space<vmem>>, %arg26: memref<1x32xf32, #tpu.memory_space<vmem>>, %arg27: memref<32x8xbf16, #tpu.memory_space<vmem>>, %arg28: memref<1x8xf32, #tpu.memory_space<vmem>>, %arg29: memref<1x32x800xbf16, #tpu.memory_space<vmem>>, %arg30: memref<1x1x800xf32, #tpu.memory_space<vmem>>, %arg31: memref<1x32x256xbf16, #tpu.memory_space<vmem>>, %arg32: memref<1x1x32xf32, #tpu.memory_space<vmem>>, %arg33: memref<1x1x32xf32, #tpu.memory_space<vmem>>, %arg34: memref<1x1x32xf32, #tpu.memory_space<vmem>>, %arg35: memref<1x1x32xf32, #tpu.memory_space<vmem>>, %arg36: memref<2x8xf32, #tpu.memory_space<vmem>>, %arg37: memref<16x32xf32, #tpu.memory_space<vmem>>, %arg38: memref<256x32xbf16, #tpu.memory_space<vmem>>) attributes {dimension_semantics = [#tpu.dimension_semantics<arbitrary>], iteration_bounds = array<i64: 6>, scalar_prefetch = 0 : i64, scratch_operands = 2 : i64, tpu.core_type = #tpu.core_type<tc>, window_params = [{pipeline_mode = #tpu.pipeline_mode<synchronous>, transform_indices = @transform_0, window_bounds = array<i64: 16, 4>}, {pipeline_mode = #tpu.pipeline_mode<synchronous>, transform_indices = @transform_1, window_bounds = array<i64: 16, 3>}, {pipeline_mode = #tpu.pipeline_mode<synchronous>, transform_indices = @transform_2, window_bounds = array<i64: 32, 4>}, {pipeline_mode = #tpu.pipeline_mode<synchronous>, transform_indices = @transform_3, window_bounds = array<i64: 4, 32>}, {pipeline_mode = #tpu.pipeline_mode<synchronous>, transform_indices = @transform_4, window_bounds = array<i64: 1, 32>}, {pipeline_mode = #tpu.pipeline_mode<synchronous>, transform_indices = @transform_5, window_bounds = array<i64: 3, 15>}, {pipeline_mode = #tpu.pipeline_mode<synchronous>, transform_indices = @transform_6, window_bounds = array<i64: 15, 32>}, {pipeline_mode = #tpu.pipeline_mode<synchronous>, transform_indices = @transform_7, window_bounds = array<i64: 15, 32>}, {pipeline_mode = #tpu.pipeline_mode<synchronous>, transform_indices = @transform_8, window_bounds = array<i64: 4, 32>}, {pipeline_mode = #tpu.pipeline_mode<synchronous>, transform_indices = @transform_9, window_bounds = array<i64: 1, 32>}, {pipeline_mode = #tpu.pipeline_mode<synchronous>, transform_indices = @transform_10, window_bounds = array<i64: 128, 16>}, {pipeline_mode = #tpu.pipeline_mode<synchronous>, transform_indices = @transform_11, window_bounds = array<i64: 256, 32>}, {pipeline_mode = #tpu.pipeline_mode<synchronous>, transform_indices = @transform_12, window_bounds = array<i64: 128, 256>}, {pipeline_mode = #tpu.pipeline_mode<synchronous>, transform_indices = @transform_13, window_bounds = array<i64: 256, 256>}, {pipeline_mode = #tpu.pipeline_mode<synchronous>, transform_indices = @transform_14, window_bounds = array<i64: 256, 128>}, {pipeline_mode = #tpu.pipeline_mode<synchronous>, transform_indices = @transform_15, window_bounds = array<i64: 128, 256>}, {pipeline_mode = #tpu.pipeline_mode<synchronous>, transform_indices = @transform_16, window_bounds = array<i64: 8, 128>}, {pipeline_mode = #tpu.pipeline_mode<synchronous>, transform_indices = @transform_17, window_bounds = array<i64: 16, 256>}, {pipeline_mode = #tpu.pipeline_mode<synchronous>, transform_indices = @transform_18, window_bounds = array<i64: 16, 128>}, {pipeline_mode = #tpu.pipeline_mode<synchronous>, transform_indices = @transform_19, window_bounds = array<i64: 256, 32>}, {pipeline_mode = #tpu.pipeline_mode<synchronous>, transform_indices = @transform_20, window_bounds = array<i64: 2, 16>}, {pipeline_mode = #tpu.pipeline_mode<synchronous>, transform_indices = @transform_21, window_bounds = array<i64: 16, 2>}, {pipeline_mode = #tpu.pipeline_mode<synchronous>, transform_indices = @transform_22, window_bounds = array<i64: 96, 64>}, {pipeline_mode = #tpu.pipeline_mode<synchronous>, transform_indices = @transform_23, window_bounds = array<i64: 1, 64>}, {pipeline_mode = #tpu.pipeline_mode<synchronous>, transform_indices = @transform_24, window_bounds = array<i64: 64, 32>}, {pipeline_mode = #tpu.pipeline_mode<synchronous>, transform_indices = @transform_25, window_bounds = array<i64: 1, 32>}, {pipeline_mode = #tpu.pipeline_mode<synchronous>, transform_indices = @transform_26, window_bounds = array<i64: 32, 8>}, {pipeline_mode = #tpu.pipeline_mode<synchronous>, transform_indices = @transform_27, window_bounds = array<i64: 1, 8>}, {transform_indices = @transform_28, window_bounds = array<i64: 1, 32, 800>}, {transform_indices = @transform_29, window_bounds = array<i64: 1, 1, 800>}, {transform_indices = @transform_30, window_bounds = array<i64: 1, 32, 256>}, {transform_indices = @transform_31, window_bounds = array<i64: 1, 1, 32>}, {transform_indices = @transform_32, window_bounds = array<i64: 1, 1, 32>}, {transform_indices = @transform_33, window_bounds = array<i64: 1, 1, 32>}, {transform_indices = @transform_34, window_bounds = array<i64: 1, 1, 32>}, {pipeline_mode = #tpu.pipeline_mode<synchronous>, transform_indices = @transform_35, window_bounds = array<i64: 2, 8>}]} {
    %c0_i32 = arith.constant 0 : i32
    %0 = arith.cmpi eq, %arg0, %c0_i32 : i32
    %1 = arith.extui %0 : i1 to i32
    %c0_i32_0 = arith.constant 0 : i32
    %2 = arith.cmpi ne, %1, %c0_i32_0 : i32
    scf.if %2 {
      %c0_76 = arith.constant 0 : index
      %c0_77 = arith.constant 0 : index
      %141 = vector.load %arg1[%c0_76, %c0_77] : memref<16x4xf32, #tpu.memory_space<vmem>>, vector<16x4xf32>
      %142 = arith.truncf %141 : vector<16x4xf32> to vector<16x4xbf16>
      %c0_78 = arith.constant 0 : index
      %c0_79 = arith.constant 0 : index
      %143 = vector.load %arg4[%c0_78, %c0_79] : memref<4x32xbf16, #tpu.memory_space<vmem>>, vector<4x32xbf16>
      %cst_80 = arith.constant dense<0.000000e+00> : vector<16x32xf32>
      %144 = tpu.matmul %142, %143, %cst_80 {dimension_numbers = #tpu.dot_dimension_numbers<[1], [0], [0], [1], [0, 0, 1, 1], [], []>} : vector<16x4xbf16>, vector<4x32xbf16>, vector<16x32xf32> -> vector<16x32xf32>
      %c0_81 = arith.constant 0 : index
      %c0_82 = arith.constant 0 : index
      %145 = vector.load %arg5[%c0_81, %c0_82] : memref<1x32xf32, #tpu.memory_space<vmem>>, vector<1x32xf32>
      %146 = vector.broadcast %145 : vector<1x32xf32> to vector<16x32xf32>
      %147 = arith.addf %144, %146 : vector<16x32xf32>
      %c0_83 = arith.constant 0 : index
      %c0_84 = arith.constant 0 : index
      %148 = vector.load %arg2[%c0_83, %c0_84] : memref<16x3xf32, #tpu.memory_space<vmem>>, vector<16x3xf32>
      %c0_85 = arith.constant 0 : index
      %c0_86 = arith.constant 0 : index
      %149 = vector.load %arg6[%c0_85, %c0_86] : memref<3x15xf32, #tpu.memory_space<vmem>>, vector<3x15xf32>
      %cst_87 = arith.constant dense<0.000000e+00> : vector<16x15xf32>
      %150 = tpu.matmul %148, %149, %cst_87 {dimension_numbers = #tpu.dot_dimension_numbers<[1], [0], [0], [1], [0, 0, 1, 1], [], []>} : vector<16x3xf32>, vector<3x15xf32>, vector<16x15xf32> -> vector<16x15xf32>
      %151 = math.sin %150 : vector<16x15xf32>
      %c0_88 = arith.constant 0 : index
      %c0_89 = arith.constant 0 : index
      %152 = vector.load %arg7[%c0_88, %c0_89] : memref<15x32xf32, #tpu.memory_space<vmem>>, vector<15x32xf32>
      %cst_90 = arith.constant dense<0.000000e+00> : vector<16x32xf32>
      %153 = tpu.matmul %151, %152, %cst_90 {dimension_numbers = #tpu.dot_dimension_numbers<[1], [0], [0], [1], [0, 0, 1, 1], [], []>} : vector<16x15xf32>, vector<15x32xf32>, vector<16x32xf32> -> vector<16x32xf32>
      %154 = arith.addf %147, %153 : vector<16x32xf32>
      %155 = math.cos %150 : vector<16x15xf32>
      %c0_91 = arith.constant 0 : index
      %c0_92 = arith.constant 0 : index
      %156 = vector.load %arg8[%c0_91, %c0_92] : memref<15x32xf32, #tpu.memory_space<vmem>>, vector<15x32xf32>
      %cst_93 = arith.constant dense<0.000000e+00> : vector<16x32xf32>
      %157 = tpu.matmul %155, %156, %cst_93 {dimension_numbers = #tpu.dot_dimension_numbers<[1], [0], [0], [1], [0, 0, 1, 1], [], []>} : vector<16x15xf32>, vector<15x32xf32>, vector<16x32xf32> -> vector<16x32xf32>
      %158 = arith.addf %154, %157 : vector<16x32xf32>
      %c0_94 = arith.constant 0 : index
      %c0_95 = arith.constant 0 : index
      %159 = vector.load %arg37[%c0_94, %c0_95] : memref<16x32xf32, #tpu.memory_space<vmem>>, vector<16x32xf32>
      tpu.vector_store %arg37[%c0_94, %c0_95], %158 {strides = array<i32>} : memref<16x32xf32, #tpu.memory_space<vmem>>, vector<16x32xf32>,
      %c0_96 = arith.constant 0 : index
      %c0_97 = arith.constant 0 : index
      %160 = vector.load %arg3[%c0_96, %c0_97] : memref<32x4xf32, #tpu.memory_space<vmem>>, vector<32x4xf32>
      %161 = arith.truncf %160 : vector<32x4xf32> to vector<32x4xbf16>
      %c0_98 = arith.constant 0 : index
      %c0_99 = arith.constant 0 : index
      %162 = vector.load %arg9[%c0_98, %c0_99] : memref<4x32xbf16, #tpu.memory_space<vmem>>, vector<4x32xbf16>
      %cst_100 = arith.constant dense<0.000000e+00> : vector<32x32xf32>
      %163 = tpu.matmul %161, %162, %cst_100 {dimension_numbers = #tpu.dot_dimension_numbers<[1], [0], [0], [1], [0, 0, 1, 1], [], []>} : vector<32x4xbf16>, vector<4x32xbf16>, vector<32x32xf32> -> vector<32x32xf32>
      %c0_101 = arith.constant 0 : index
      %c0_102 = arith.constant 0 : index
      %164 = vector.load %arg10[%c0_101, %c0_102] : memref<1x32xf32, #tpu.memory_space<vmem>>, vector<1x32xf32>
      %165 = vector.broadcast %164 : vector<1x32xf32> to vector<32x32xf32>
      %166 = arith.addf %163, %165 : vector<32x32xf32>
      %c0_103 = arith.constant 0 : index
      %c0_104 = arith.constant 0 : index
      %167 = vector.load %arg12[%c0_103, %c0_104] : memref<256x32xbf16, #tpu.memory_space<vmem>>, vector<256x32xbf16>
      %168 = arith.truncf %166 : vector<32x32xf32> to vector<32x32xbf16>
      %cst_105 = arith.constant dense<0.000000e+00> : vector<256x32xf32>
      %169 = tpu.matmul %167, %168, %cst_105 {dimension_numbers = #tpu.dot_dimension_numbers<[1], [0], [0], [1], [0, 0, 1, 1], [], []>} : vector<256x32xbf16>, vector<32x32xbf16>, vector<256x32xf32> -> vector<256x32xf32>
      %170 = arith.truncf %169 : vector<256x32xf32> to vector<256x32xbf16>
      %c0_106 = arith.constant 0 : index
      %c0_107 = arith.constant 0 : index
      %171 = vector.load %arg38[%c0_106, %c0_107] : memref<256x32xbf16, #tpu.memory_space<vmem>>, vector<256x32xbf16>
      tpu.vector_store %arg38[%c0_106, %c0_107], %170 {strides = array<i32>} : memref<256x32xbf16, #tpu.memory_space<vmem>>, vector<256x32xbf16>,
    } else {
    }
    %c0 = arith.constant 0 : index
    %c0_1 = arith.constant 0 : index
    %3 = vector.load %arg37[%c0, %c0_1] : memref<16x32xf32, #tpu.memory_space<vmem>>, vector<16x32xf32>
    %4 = arith.truncf %3 : vector<16x32xf32> to vector<16x32xbf16>
    %c0_2 = arith.constant 0 : index
    %c0_3 = arith.constant 0 : index
    %c0_4 = arith.constant 0 : index
    %5 = vector.load %arg29[%c0_2, %c0_3, %c0_4] : memref<1x32x800xbf16, #tpu.memory_space<vmem>>, vector<1x32x800xbf16>
    %6 = vector.shape_cast %5 : vector<1x32x800xbf16> to vector<32x800xbf16>
    %cst = arith.constant dense<0.000000e+00> : vector<16x800xf32>
    %7 = tpu.matmul %4, %6, %cst {dimension_numbers = #tpu.dot_dimension_numbers<[1], [0], [0], [1], [0, 0, 1, 1], [], []>} : vector<16x32xbf16>, vector<32x800xbf16>, vector<16x800xf32> -> vector<16x800xf32>
    %c0_5 = arith.constant 0 : index
    %c0_6 = arith.constant 0 : index
    %c0_7 = arith.constant 0 : index
    %8 = vector.load %arg30[%c0_5, %c0_6, %c0_7] : memref<1x1x800xf32, #tpu.memory_space<vmem>>, vector<1x1x800xf32>
    %9 = vector.shape_cast %8 : vector<1x1x800xf32> to vector<1x800xf32>
    %10 = vector.broadcast %9 : vector<1x800xf32> to vector<16x800xf32>
    %11 = arith.addf %7, %10 : vector<16x800xf32>
    %12 = vector.extract_strided_slice %11 {offsets = [0, 0], sizes = [16, 256], strides = [1, 1]} : vector<16x800xf32> to vector<16x256xf32>
    %13 = vector.extract_strided_slice %11 {offsets = [0, 256], sizes = [16, 256], strides = [1, 1]} : vector<16x800xf32> to vector<16x256xf32>
    %14 = vector.extract_strided_slice %11 {offsets = [0, 512], sizes = [16, 256], strides = [1, 1]} : vector<16x800xf32> to vector<16x256xf32>
    %15 = vector.extract_strided_slice %11 {offsets = [0, 768], sizes = [16, 32], strides = [1, 1]} : vector<16x800xf32> to vector<16x32xf32>
    %c0_8 = arith.constant 0 : index
    %c0_9 = arith.constant 0 : index
    %16 = vector.load %arg11[%c0_8, %c0_9] : memref<128x16xbf16, #tpu.memory_space<vmem>>, vector<128x16xbf16>
    %c0_10 = arith.constant 0 : index
    %c0_11 = arith.constant 0 : index
    %17 = vector.load %arg13[%c0_10, %c0_11] : memref<128x256xbf16, #tpu.memory_space<vmem>>, vector<128x256xbf16>
    %18 = arith.truncf %13 : vector<16x256xf32> to vector<16x256xbf16>
    %cst_12 = arith.constant dense<0.000000e+00> : vector<128x256xf32>
    %19 = tpu.matmul %16, %18, %cst_12 {dimension_numbers = #tpu.dot_dimension_numbers<[1], [0], [0], [1], [0, 0, 1, 1], [], []>} : vector<128x16xbf16>, vector<16x256xbf16>, vector<128x256xf32> -> vector<128x256xf32>
    %20 = arith.extf %17 : vector<128x256xbf16> to vector<128x256xf32>
    %21 = arith.mulf %19, %20 : vector<128x256xf32>
    %22 = arith.truncf %21 : vector<128x256xf32> to vector<128x256xbf16>
    %23 = arith.truncf %14 : vector<16x256xf32> to vector<16x256xbf16>
    %cst_13 = arith.constant dense<0.000000e+00> : vector<128x256xf32>
    %24 = tpu.matmul %16, %23, %cst_13 {dimension_numbers = #tpu.dot_dimension_numbers<[1], [0], [0], [1], [0, 0, 1, 1], [], []>} : vector<128x16xbf16>, vector<16x256xbf16>, vector<128x256xf32> -> vector<128x256xf32>
    %25 = arith.extf %17 : vector<128x256xbf16> to vector<128x256xf32>
    %26 = arith.mulf %24, %25 : vector<128x256xf32>
    %27 = arith.truncf %26 : vector<128x256xf32> to vector<128x256xbf16>
    %c0_14 = arith.constant 0 : index
    %c0_15 = arith.constant 0 : index
    %28 = vector.load %arg38[%c0_14, %c0_15] : memref<256x32xbf16, #tpu.memory_space<vmem>>, vector<256x32xbf16>
    %c0_16 = arith.constant 0 : index
    %c0_17 = arith.constant 0 : index
    %c0_18 = arith.constant 0 : index
    %29 = vector.load %arg31[%c0_16, %c0_17, %c0_18] : memref<1x32x256xbf16, #tpu.memory_space<vmem>>, vector<1x32x256xbf16>
    %30 = vector.shape_cast %29 : vector<1x32x256xbf16> to vector<32x256xbf16>
    %cst_19 = arith.constant dense<0.000000e+00> : vector<256x256xf32>
    %31 = tpu.matmul %28, %30, %cst_19 {dimension_numbers = #tpu.dot_dimension_numbers<[1], [0], [0], [1], [0, 0, 1, 1], [], []>} : vector<256x32xbf16>, vector<32x256xbf16>, vector<256x256xf32> -> vector<256x256xf32>
    %c0_20 = arith.constant 0 : index
    %c0_21 = arith.constant 0 : index
    %32 = vector.load %arg14[%c0_20, %c0_21] : memref<256x256xbf16, #tpu.memory_space<vmem>>, vector<256x256xbf16>
    %33 = arith.extf %32 : vector<256x256xbf16> to vector<256x256xf32>
    %34 = arith.mulf %31, %33 : vector<256x256xf32>
    %35 = arith.truncf %34 : vector<256x256xf32> to vector<256x256xbf16>
    %36 = arith.truncf %12 : vector<16x256xf32> to vector<16x256xbf16>
    %c0_22 = arith.constant 0 : index
    %c0_23 = arith.constant 0 : index
    %37 = vector.load %arg19[%c0_22, %c0_23] : memref<16x128xbf16, #tpu.memory_space<vmem>>, vector<16x128xbf16>
    %c0_24 = arith.constant 0 : index
    %c0_25 = arith.constant 0 : index
    %38 = vector.load %arg18[%c0_24, %c0_25] : memref<16x256xbf16, #tpu.memory_space<vmem>>, vector<16x256xbf16>
    %cst_26 = arith.constant dense<0.000000e+00> : vector<16x128xf32>
    %39 = tpu.matmul %36, %22, %cst_26 {dimension_numbers = #tpu.dot_dimension_numbers<[1], [1], [0], [0], [0, 0, 1, 0], [], []>} : vector<16x256xbf16>, vector<128x256xbf16>, vector<16x128xf32> -> vector<16x128xf32>
    %cst_27 = arith.constant dense<0.000000e+00> : vector<16x256xf32>
    %40 = tpu.matmul %36, %35, %cst_27 {dimension_numbers = #tpu.dot_dimension_numbers<[1], [1], [0], [0], [0, 0, 1, 0], [], []>} : vector<16x256xbf16>, vector<256x256xbf16>, vector<16x256xf32> -> vector<16x256xf32>
    %41 = arith.extf %38 : vector<16x256xbf16> to vector<16x256xf32>
    %42 = arith.mulf %40, %41 : vector<16x256xf32>
    %43 = arith.truncf %42 : vector<16x256xf32> to vector<16x256xbf16>
    %c0_28 = arith.constant 0 : index
    %c0_29 = arith.constant 0 : index
    %44 = vector.load %arg15[%c0_28, %c0_29] : memref<256x128xbf16, #tpu.memory_space<vmem>>, vector<256x128xbf16>
    %cst_30 = arith.constant dense<0.000000e+00> : vector<16x128xf32>
    %45 = tpu.matmul %43, %44, %cst_30 {dimension_numbers = #tpu.dot_dimension_numbers<[1], [0], [0], [1], [0, 0, 1, 1], [], []>} : vector<16x256xbf16>, vector<256x128xbf16>, vector<16x128xf32> -> vector<16x128xf32>
    %46 = arith.addf %39, %45 : vector<16x128xf32>
    %cst_31 = arith.constant 0.176776692 : f32
    %47 = vector.broadcast %cst_31 : f32 to vector<16x128xf32>
    %48 = arith.mulf %46, %47 : vector<16x128xf32>
    %cst_32 = arith.constant 0.000000e+00 : bf16
    %49 = vector.broadcast %cst_32 : bf16 to vector<16x128xbf16>
    %50 = arith.cmpf ogt, %37, %49 : vector<16x128xbf16>
    %cst_33 = arith.constant -1.000000e+30 : f32
    %51 = vector.broadcast %cst_33 : f32 to vector<16x128xf32>
    %52 = arith.select %50, %48, %51 : vector<16x128xi1>, vector<16x128xf32>
    %cst_34 = arith.constant dense<0xFF800000> : vector<16xf32>
    %53 = vector.multi_reduction <maximumf>, %52, %cst_34 [1] : vector<16x128xf32> to vector<16xf32>
    %54 = vector.shape_cast %53 : vector<16xf32> to vector<16x1xf32>
    %55 = vector.broadcast %54 : vector<16x1xf32> to vector<16x128xf32>
    %56 = arith.subf %52, %55 : vector<16x128xf32>
    %57 = math.exp %56 : vector<16x128xf32>
    %58 = arith.extf %37 : vector<16x128xbf16> to vector<16x128xf32>
    %59 = arith.mulf %57, %58 : vector<16x128xf32>
    %c0_35 = arith.constant 0 : index
    %c0_36 = arith.constant 0 : index
    %60 = vector.load %arg17[%c0_35, %c0_36] : memref<8x128xf32, #tpu.memory_space<vmem>>, vector<8x128xf32>
    %cst_37 = arith.constant dense<0.000000e+00> : vector<16x8xf32>
    %61 = tpu.matmul %59, %60, %cst_37 {dimension_numbers = #tpu.dot_dimension_numbers<[1], [1], [0], [0], [0, 0, 1, 0], [], []>} : vector<16x128xf32>, vector<8x128xf32>, vector<16x8xf32> -> vector<16x8xf32>
    %c0_38 = arith.constant 0 : index
    %c0_39 = arith.constant 0 : index
    %62 = vector.load %arg17[%c0_38, %c0_39] : memref<8x128xf32, #tpu.memory_space<vmem>>, vector<8x128xf32>
    %cst_40 = arith.constant dense<0.000000e+00> : vector<16x128xf32>
    %63 = tpu.matmul %61, %62, %cst_40 {dimension_numbers = #tpu.dot_dimension_numbers<[1], [0], [0], [1], [0, 0, 1, 1], [], []>} : vector<16x8xf32>, vector<8x128xf32>, vector<16x128xf32> -> vector<16x128xf32>
    %cst_41 = arith.constant 1.000000e-16 : f32
    %64 = vector.broadcast %cst_41 : f32 to vector<16x128xf32>
    %65 = arith.maximumf %63, %64 : vector<16x128xf32>
    %66 = arith.divf %59, %65 : vector<16x128xf32>
    %67 = arith.truncf %66 : vector<16x128xf32> to vector<16x128xbf16>
    %c0_42 = arith.constant 0 : index
    %c0_43 = arith.constant 0 : index
    %68 = vector.load %arg16[%c0_42, %c0_43] : memref<128x256xbf16, #tpu.memory_space<vmem>>, vector<128x256xbf16>
    %cst_44 = arith.constant dense<0.000000e+00> : vector<16x256xf32>
    %69 = tpu.matmul %67, %68, %cst_44 {dimension_numbers = #tpu.dot_dimension_numbers<[1], [0], [0], [1], [0, 0, 1, 1], [], []>} : vector<16x128xbf16>, vector<128x256xbf16>, vector<16x256xf32> -> vector<16x256xf32>
    %70 = arith.extf %38 : vector<16x256xbf16> to vector<16x256xf32>
    %71 = arith.mulf %69, %70 : vector<16x256xf32>
    %72 = arith.truncf %71 : vector<16x256xf32> to vector<16x256xbf16>
    %cst_45 = arith.constant dense<0.000000e+00> : vector<16x256xf32>
    %73 = tpu.matmul %67, %27, %cst_45 {dimension_numbers = #tpu.dot_dimension_numbers<[1], [0], [0], [1], [0, 0, 1, 1], [], []>} : vector<16x128xbf16>, vector<128x256xbf16>, vector<16x256xf32> -> vector<16x256xf32>
    %cst_46 = arith.constant dense<0.000000e+00> : vector<16x256xf32>
    %74 = tpu.matmul %72, %35, %cst_46 {dimension_numbers = #tpu.dot_dimension_numbers<[1], [0], [0], [1], [0, 0, 1, 1], [], []>} : vector<16x256xbf16>, vector<256x256xbf16>, vector<16x256xf32> -> vector<16x256xf32>
    %75 = arith.addf %73, %74 : vector<16x256xf32>
    %c0_47 = arith.constant 0 : index
    %c0_48 = arith.constant 0 : index
    %76 = vector.load %arg20[%c0_47, %c0_48] : memref<256x32xf32, #tpu.memory_space<vmem>>, vector<256x32xf32>
    %cst_49 = arith.constant dense<0.000000e+00> : vector<16x32xf32>
    %77 = tpu.matmul %75, %76, %cst_49 {dimension_numbers = #tpu.dot_dimension_numbers<[1], [0], [0], [1], [0, 0, 1, 1], [], []>} : vector<16x256xf32>, vector<256x32xf32>, vector<16x32xf32> -> vector<16x32xf32>
    %c0_50 = arith.constant 0 : index
    %c0_51 = arith.constant 0 : index
    %c0_52 = arith.constant 0 : index
    %78 = vector.load %arg32[%c0_50, %c0_51, %c0_52] : memref<1x1x32xf32, #tpu.memory_space<vmem>>, vector<1x1x32xf32>
    %79 = vector.shape_cast %78 : vector<1x1x32xf32> to vector<1x32xf32>
    %80 = vector.broadcast %79 : vector<1x32xf32> to vector<16x32xf32>
    %81 = arith.mulf %77, %80 : vector<16x32xf32>
    %cst_53 = arith.constant dense<0.000000e+00> : vector<16xf32>
    %82 = vector.multi_reduction <add>, %81, %cst_53 [1] : vector<16x32xf32> to vector<16xf32>
    %83 = vector.shape_cast %82 : vector<16xf32> to vector<16x1xf32>
    %c0_54 = arith.constant 0 : index
    %c0_55 = arith.constant 0 : index
    %c0_56 = arith.constant 0 : index
    %84 = vector.load %arg33[%c0_54, %c0_55, %c0_56] : memref<1x1x32xf32, #tpu.memory_space<vmem>>, vector<1x1x32xf32>
    %85 = vector.shape_cast %84 : vector<1x1x32xf32> to vector<1x32xf32>
    %86 = vector.broadcast %85 : vector<1x32xf32> to vector<16x32xf32>
    %87 = arith.mulf %15, %86 : vector<16x32xf32>
    %cst_57 = arith.constant dense<0.000000e+00> : vector<16xf32>
    %88 = vector.multi_reduction <add>, %87, %cst_57 [1] : vector<16x32xf32> to vector<16xf32>
    %89 = vector.shape_cast %88 : vector<16xf32> to vector<16x1xf32>
    %90 = arith.addf %83, %89 : vector<16x1xf32>
    %91 = arith.negf %90 : vector<16x1xf32>
    %92 = math.exp %91 : vector<16x1xf32>
    %cst_58 = arith.constant 1.000000e+00 : f32
    %93 = vector.broadcast %cst_58 : f32 to vector<16x1xf32>
    %94 = arith.addf %93, %92 : vector<16x1xf32>
    %95 = arith.divf %93, %94 : vector<16x1xf32>
    %96 = vector.broadcast %95 : vector<16x1xf32> to vector<16x32xf32>
    %97 = arith.mulf %96, %15 : vector<16x32xf32>
    %cst_59 = arith.constant 1.000000e+00 : f32
    %98 = vector.broadcast %cst_59 : f32 to vector<16x1xf32>
    %99 = arith.subf %98, %95 : vector<16x1xf32>
    %100 = vector.broadcast %99 : vector<16x1xf32> to vector<16x32xf32>
    %101 = arith.mulf %100, %77 : vector<16x32xf32>
    %102 = arith.addf %97, %101 : vector<16x32xf32>
    %cst_60 = arith.constant dense<0.000000e+00> : vector<16xf32>
    %103 = vector.multi_reduction <add>, %102, %cst_60 [1] : vector<16x32xf32> to vector<16xf32>
    %104 = vector.shape_cast %103 : vector<16xf32> to vector<16x1xf32>
    %cst_61 = arith.constant 3.200000e+01 : f32
    %105 = vector.broadcast %cst_61 : f32 to vector<16x1xf32>
    %106 = arith.divf %104, %105 : vector<16x1xf32>
    %107 = vector.broadcast %106 : vector<16x1xf32> to vector<16x32xf32>
    %108 = arith.subf %102, %107 : vector<16x32xf32>
    %109 = arith.mulf %108, %108 : vector<16x32xf32>
    %cst_62 = arith.constant dense<0.000000e+00> : vector<16xf32>
    %110 = vector.multi_reduction <add>, %109, %cst_62 [1] : vector<16x32xf32> to vector<16xf32>
    %111 = vector.shape_cast %110 : vector<16xf32> to vector<16x1xf32>
    %cst_63 = arith.constant 3.200000e+01 : f32
    %112 = vector.broadcast %cst_63 : f32 to vector<16x1xf32>
    %113 = arith.divf %111, %112 : vector<16x1xf32>
    %114 = vector.broadcast %106 : vector<16x1xf32> to vector<16x32xf32>
    %115 = arith.subf %102, %114 : vector<16x32xf32>
    %cst_64 = arith.constant 9.99999974E-6 : f32
    %116 = vector.broadcast %cst_64 : f32 to vector<16x1xf32>
    %117 = arith.addf %113, %116 : vector<16x1xf32>
    %118 = math.rsqrt %117 : vector<16x1xf32>
    %119 = vector.broadcast %118 : vector<16x1xf32> to vector<16x32xf32>
    %120 = arith.mulf %115, %119 : vector<16x32xf32>
    %c0_65 = arith.constant 0 : index
    %c0_66 = arith.constant 0 : index
    %c0_67 = arith.constant 0 : index
    %121 = vector.load %arg34[%c0_65, %c0_66, %c0_67] : memref<1x1x32xf32, #tpu.memory_space<vmem>>, vector<1x1x32xf32>
    %122 = vector.shape_cast %121 : vector<1x1x32xf32> to vector<1x32xf32>
    %123 = vector.broadcast %122 : vector<1x32xf32> to vector<16x32xf32>
    %124 = arith.mulf %120, %123 : vector<16x32xf32>
    %c0_68 = arith.constant 0 : index
    %c0_69 = arith.constant 0 : index
    %c0_70 = arith.constant 0 : index
    %125 = vector.load %arg35[%c0_68, %c0_69, %c0_70] : memref<1x1x32xf32, #tpu.memory_space<vmem>>, vector<1x1x32xf32>
    %126 = vector.shape_cast %125 : vector<1x1x32xf32> to vector<1x32xf32>
    %127 = vector.broadcast %126 : vector<1x32xf32> to vector<16x32xf32>
    %128 = arith.addf %124, %127 : vector<16x32xf32>
    %cst_71 = arith.constant 0.000000e+00 : f32
    %129 = vector.broadcast %cst_71 : f32 to vector<16x32xf32>
    %130 = arith.maximumf %128, %129 : vector<16x32xf32>
    %c0_i32_72 = arith.constant 0 : i32
    %131 = arith.cmpi sgt, %arg0, %c0_i32_72 : i32
    %132 = arith.extui %131 : i1 to i32
    %133 = arith.sitofp %132 : i32 to f32
    %134 = vector.broadcast %133 : f32 to vector<16x32xf32>
    %135 = arith.mulf %134, %3 : vector<16x32xf32>
    %136 = arith.addf %130, %135 : vector<16x32xf32>
    %c0_73 = arith.constant 0 : index
    %c0_74 = arith.constant 0 : index
    %137 = vector.load %arg37[%c0_73, %c0_74] : memref<16x32xf32, #tpu.memory_space<vmem>>, vector<16x32xf32>
    tpu.vector_store %arg37[%c0_73, %c0_74], %136 {strides = array<i32>} : memref<16x32xf32, #tpu.memory_space<vmem>>, vector<16x32xf32>,
    %c5_i32 = arith.constant 5 : i32
    %138 = arith.cmpi eq, %arg0, %c5_i32 : i32
    %139 = arith.extui %138 : i1 to i32
    %c0_i32_75 = arith.constant 0 : i32
    %140 = arith.cmpi ne, %139, %c0_i32_75 : i32
    scf.if %140 {
      %c0_76 = arith.constant 0 : index
      %c0_77 = arith.constant 0 : index
      %141 = vector.load %arg21[%c0_76, %c0_77] : memref<2x16xbf16, #tpu.memory_space<vmem>>, vector<2x16xbf16>
      %142 = arith.truncf %136 : vector<16x32xf32> to vector<16x32xbf16>
      %cst_78 = arith.constant dense<0.000000e+00> : vector<2x32xf32>
      %143 = tpu.matmul %141, %142, %cst_78 {dimension_numbers = #tpu.dot_dimension_numbers<[1], [0], [0], [1], [0, 0, 1, 1], [], []>} : vector<2x16xbf16>, vector<16x32xbf16>, vector<2x32xf32> -> vector<2x32xf32>
      %144 = arith.extf %141 : vector<2x16xbf16> to vector<2x16xf32>
      %cst_79 = arith.constant dense<0.000000e+00> : vector<2xf32>
      %145 = vector.multi_reduction <add>, %144, %cst_79 [1] : vector<2x16xf32> to vector<2xf32>
      %146 = vector.shape_cast %145 : vector<2xf32> to vector<2x1xf32>
      %cst_80 = arith.constant 1.000000e+00 : f32
      %147 = vector.broadcast %cst_80 : f32 to vector<2x1xf32>
      %148 = arith.maximumf %146, %147 : vector<2x1xf32>
      %149 = vector.broadcast %148 : vector<2x1xf32> to vector<2x32xf32>
      %150 = arith.divf %143, %149 : vector<2x32xf32>
      %c0_81 = arith.constant 0 : index
      %c0_82 = arith.constant 0 : index
      %151 = vector.load %arg22[%c0_81, %c0_82] : memref<16x2xbf16, #tpu.memory_space<vmem>>, vector<16x2xbf16>
      %152 = vector.extract_strided_slice %151 {offsets = [0, 0], sizes = [16, 1], strides = [1, 1]} : vector<16x2xbf16> to vector<16x1xbf16>
      %cst_83 = arith.constant 0.000000e+00 : bf16
      %153 = vector.broadcast %cst_83 : bf16 to vector<16x1xbf16>
      %154 = arith.cmpf ogt, %152, %153 : vector<16x1xbf16>
      %cst_84 = arith.constant -3.000000e+38 : f32
      %155 = vector.shape_cast %154 : vector<16x1xi1> to vector<16x1xi1>
      %156 = vector.broadcast %155 : vector<16x1xi1> to vector<16x32xi1>
      %157 = vector.broadcast %cst_84 : f32 to vector<16x32xf32>
      %158 = arith.select %156, %136, %157 : vector<16x32xi1>, vector<16x32xf32>
      %cst_85 = arith.constant dense<0xFF800000> : vector<32xf32>
      %159 = vector.multi_reduction <maximumf>, %158, %cst_85 [0] : vector<16x32xf32> to vector<32xf32>
      %160 = vector.shape_cast %159 : vector<32xf32> to vector<1x32xf32>
      %161 = vector.extract_strided_slice %151 {offsets = [0, 1], sizes = [16, 1], strides = [1, 1]} : vector<16x2xbf16> to vector<16x1xbf16>
      %cst_86 = arith.constant 0.000000e+00 : bf16
      %162 = vector.broadcast %cst_86 : bf16 to vector<16x1xbf16>
      %163 = arith.cmpf ogt, %161, %162 : vector<16x1xbf16>
      %cst_87 = arith.constant -3.000000e+38 : f32
      %164 = vector.shape_cast %163 : vector<16x1xi1> to vector<16x1xi1>
      %165 = vector.broadcast %164 : vector<16x1xi1> to vector<16x32xi1>
      %166 = vector.broadcast %cst_87 : f32 to vector<16x32xf32>
      %167 = arith.select %165, %136, %166 : vector<16x32xi1>, vector<16x32xf32>
      %cst_88 = arith.constant dense<0xFF800000> : vector<32xf32>
      %168 = vector.multi_reduction <maximumf>, %167, %cst_88 [0] : vector<16x32xf32> to vector<32xf32>
      %169 = vector.shape_cast %168 : vector<32xf32> to vector<1x32xf32>
      %170 = tpu.concatenate %160, %169 in 0 : vector<1x32xf32>, vector<1x32xf32> -> vector<2x32xf32>
      %c0_89 = arith.constant 0 : index
      %c0_90 = arith.constant 0 : index
      %171 = vector.load %arg23[%c0_89, %c0_90] : memref<96x64xbf16, #tpu.memory_space<vmem>>, vector<96x64xbf16>
      %172 = arith.truncf %150 : vector<2x32xf32> to vector<2x32xbf16>
      %173 = vector.extract_strided_slice %171 {offsets = [0, 0], sizes = [32, 64], strides = [1, 1]} : vector<96x64xbf16> to vector<32x64xbf16>
      %cst_91 = arith.constant dense<0.000000e+00> : vector<2x64xf32>
      %174 = tpu.matmul %172, %173, %cst_91 {dimension_numbers = #tpu.dot_dimension_numbers<[1], [0], [0], [1], [0, 0, 1, 1], [], []>} : vector<2x32xbf16>, vector<32x64xbf16>, vector<2x64xf32> -> vector<2x64xf32>
      %175 = arith.truncf %170 : vector<2x32xf32> to vector<2x32xbf16>
      %176 = vector.extract_strided_slice %171 {offsets = [32, 0], sizes = [32, 64], strides = [1, 1]} : vector<96x64xbf16> to vector<32x64xbf16>
      %cst_92 = arith.constant dense<0.000000e+00> : vector<2x64xf32>
      %177 = tpu.matmul %175, %176, %cst_92 {dimension_numbers = #tpu.dot_dimension_numbers<[1], [0], [0], [1], [0, 0, 1, 1], [], []>} : vector<2x32xbf16>, vector<32x64xbf16>, vector<2x64xf32> -> vector<2x64xf32>
      %178 = arith.addf %174, %177 : vector<2x64xf32>
      %179 = arith.truncf %143 : vector<2x32xf32> to vector<2x32xbf16>
      %180 = vector.extract_strided_slice %171 {offsets = [64, 0], sizes = [32, 64], strides = [1, 1]} : vector<96x64xbf16> to vector<32x64xbf16>
      %cst_93 = arith.constant dense<0.000000e+00> : vector<2x64xf32>
      %181 = tpu.matmul %179, %180, %cst_93 {dimension_numbers = #tpu.dot_dimension_numbers<[1], [0], [0], [1], [0, 0, 1, 1], [], []>} : vector<2x32xbf16>, vector<32x64xbf16>, vector<2x64xf32> -> vector<2x64xf32>
      %182 = arith.addf %178, %181 : vector<2x64xf32>
      %c0_94 = arith.constant 0 : index
      %c0_95 = arith.constant 0 : index
      %183 = vector.load %arg24[%c0_94, %c0_95] : memref<1x64xf32, #tpu.memory_space<vmem>>, vector<1x64xf32>
      %184 = vector.broadcast %183 : vector<1x64xf32> to vector<2x64xf32>
      %185 = arith.addf %182, %184 : vector<2x64xf32>
      %cst_96 = arith.constant 0.000000e+00 : f32
      %186 = vector.broadcast %cst_96 : f32 to vector<2x64xf32>
      %187 = arith.maximumf %185, %186 : vector<2x64xf32>
      %188 = arith.truncf %187 : vector<2x64xf32> to vector<2x64xbf16>
      %c0_97 = arith.constant 0 : index
      %c0_98 = arith.constant 0 : index
      %189 = vector.load %arg25[%c0_97, %c0_98] : memref<64x32xbf16, #tpu.memory_space<vmem>>, vector<64x32xbf16>
      %cst_99 = arith.constant dense<0.000000e+00> : vector<2x32xf32>
      %190 = tpu.matmul %188, %189, %cst_99 {dimension_numbers = #tpu.dot_dimension_numbers<[1], [0], [0], [1], [0, 0, 1, 1], [], []>} : vector<2x64xbf16>, vector<64x32xbf16>, vector<2x32xf32> -> vector<2x32xf32>
      %c0_100 = arith.constant 0 : index
      %c0_101 = arith.constant 0 : index
      %191 = vector.load %arg26[%c0_100, %c0_101] : memref<1x32xf32, #tpu.memory_space<vmem>>, vector<1x32xf32>
      %192 = vector.broadcast %191 : vector<1x32xf32> to vector<2x32xf32>
      %193 = arith.addf %190, %192 : vector<2x32xf32>
      %cst_102 = arith.constant 0.000000e+00 : f32
      %194 = vector.broadcast %cst_102 : f32 to vector<2x32xf32>
      %195 = arith.maximumf %193, %194 : vector<2x32xf32>
      %196 = arith.truncf %195 : vector<2x32xf32> to vector<2x32xbf16>
      %c0_103 = arith.constant 0 : index
      %c0_104 = arith.constant 0 : index
      %197 = vector.load %arg27[%c0_103, %c0_104] : memref<32x8xbf16, #tpu.memory_space<vmem>>, vector<32x8xbf16>
      %cst_105 = arith.constant dense<0.000000e+00> : vector<2x8xf32>
      %198 = tpu.matmul %196, %197, %cst_105 {dimension_numbers = #tpu.dot_dimension_numbers<[1], [0], [0], [1], [0, 0, 1, 1], [], []>} : vector<2x32xbf16>, vector<32x8xbf16>, vector<2x8xf32> -> vector<2x8xf32>
      %c0_106 = arith.constant 0 : index
      %c0_107 = arith.constant 0 : index
      %199 = vector.load %arg28[%c0_106, %c0_107] : memref<1x8xf32, #tpu.memory_space<vmem>>, vector<1x8xf32>
      %200 = vector.broadcast %199 : vector<1x8xf32> to vector<2x8xf32>
      %201 = arith.addf %198, %200 : vector<2x8xf32>
      %c0_108 = arith.constant 0 : index
      %c0_109 = arith.constant 0 : index
      %202 = vector.load %arg36[%c0_108, %c0_109] : memref<2x8xf32, #tpu.memory_space<vmem>>, vector<2x8xf32>
      tpu.vector_store %arg36[%c0_108, %c0_109], %201 {strides = array<i32>} : memref<2x8xf32, #tpu.memory_space<vmem>>, vector<2x8xf32>,
    } else {
    }
    return
  }
  func.func @transform_0(%arg0: i32) -> (i32, i32) {
    %c0_i32 = arith.constant 0 : i32
    %c0_i32_0 = arith.constant 0 : i32
    %c0_i32_1 = arith.constant 0 : i32
    return %c0_i32, %c0_i32_0 : i32, i32
  }
  func.func @transform_1(%arg0: i32) -> (i32, i32) {
    %c0_i32 = arith.constant 0 : i32
    %c0_i32_0 = arith.constant 0 : i32
    %c0_i32_1 = arith.constant 0 : i32
    return %c0_i32, %c0_i32_0 : i32, i32
  }
  func.func @transform_2(%arg0: i32) -> (i32, i32) {
    %c0_i32 = arith.constant 0 : i32
    %c0_i32_0 = arith.constant 0 : i32
    %c0_i32_1 = arith.constant 0 : i32
    return %c0_i32, %c0_i32_0 : i32, i32
  }
  func.func @transform_3(%arg0: i32) -> (i32, i32) {
    %c0_i32 = arith.constant 0 : i32
    %c0_i32_0 = arith.constant 0 : i32
    %c0_i32_1 = arith.constant 0 : i32
    return %c0_i32, %c0_i32_0 : i32, i32
  }
  func.func @transform_4(%arg0: i32) -> (i32, i32) {
    %c0_i32 = arith.constant 0 : i32
    %c0_i32_0 = arith.constant 0 : i32
    %c0_i32_1 = arith.constant 0 : i32
    return %c0_i32, %c0_i32_0 : i32, i32
  }
  func.func @transform_5(%arg0: i32) -> (i32, i32) {
    %c0_i32 = arith.constant 0 : i32
    %c0_i32_0 = arith.constant 0 : i32
    %c0_i32_1 = arith.constant 0 : i32
    return %c0_i32, %c0_i32_0 : i32, i32
  }
  func.func @transform_6(%arg0: i32) -> (i32, i32) {
    %c0_i32 = arith.constant 0 : i32
    %c0_i32_0 = arith.constant 0 : i32
    %c0_i32_1 = arith.constant 0 : i32
    return %c0_i32, %c0_i32_0 : i32, i32
  }
  func.func @transform_7(%arg0: i32) -> (i32, i32) {
    %c0_i32 = arith.constant 0 : i32
    %c0_i32_0 = arith.constant 0 : i32
    %c0_i32_1 = arith.constant 0 : i32
    return %c0_i32, %c0_i32_0 : i32, i32
  }
  func.func @transform_8(%arg0: i32) -> (i32, i32) {
    %c0_i32 = arith.constant 0 : i32
    %c0_i32_0 = arith.constant 0 : i32
    %c0_i32_1 = arith.constant 0 : i32
    return %c0_i32, %c0_i32_0 : i32, i32
  }
  func.func @transform_9(%arg0: i32) -> (i32, i32) {
    %c0_i32 = arith.constant 0 : i32
    %c0_i32_0 = arith.constant 0 : i32
    %c0_i32_1 = arith.constant 0 : i32
    return %c0_i32, %c0_i32_0 : i32, i32
  }
  func.func @transform_10(%arg0: i32) -> (i32, i32) {
    %c0_i32 = arith.constant 0 : i32
    %c0_i32_0 = arith.constant 0 : i32
    %c0_i32_1 = arith.constant 0 : i32
    return %c0_i32, %c0_i32_0 : i32, i32
  }
  func.func @transform_11(%arg0: i32) -> (i32, i32) {
    %c0_i32 = arith.constant 0 : i32
    %c0_i32_0 = arith.constant 0 : i32
    %c0_i32_1 = arith.constant 0 : i32
    return %c0_i32, %c0_i32_0 : i32, i32
  }
  func.func @transform_12(%arg0: i32) -> (i32, i32) {
    %c0_i32 = arith.constant 0 : i32
    %c0_i32_0 = arith.constant 0 : i32
    %c0_i32_1 = arith.constant 0 : i32
    return %c0_i32, %c0_i32_0 : i32, i32
  }
  func.func @transform_13(%arg0: i32) -> (i32, i32) {
    %c0_i32 = arith.constant 0 : i32
    %c0_i32_0 = arith.constant 0 : i32
    %c0_i32_1 = arith.constant 0 : i32
    return %c0_i32, %c0_i32_0 : i32, i32
  }
  func.func @transform_14(%arg0: i32) -> (i32, i32) {
    %c0_i32 = arith.constant 0 : i32
    %c0_i32_0 = arith.constant 0 : i32
    %c0_i32_1 = arith.constant 0 : i32
    return %c0_i32, %c0_i32_0 : i32, i32
  }
  func.func @transform_15(%arg0: i32) -> (i32, i32) {
    %c0_i32 = arith.constant 0 : i32
    %c0_i32_0 = arith.constant 0 : i32
    %c0_i32_1 = arith.constant 0 : i32
    return %c0_i32, %c0_i32_0 : i32, i32
  }
  func.func @transform_16(%arg0: i32) -> (i32, i32) {
    %c0_i32 = arith.constant 0 : i32
    %c0_i32_0 = arith.constant 0 : i32
    %c0_i32_1 = arith.constant 0 : i32
    return %c0_i32, %c0_i32_0 : i32, i32
  }
  func.func @transform_17(%arg0: i32) -> (i32, i32) {
    %c0_i32 = arith.constant 0 : i32
    %c0_i32_0 = arith.constant 0 : i32
    %c0_i32_1 = arith.constant 0 : i32
    return %c0_i32, %c0_i32_0 : i32, i32
  }
  func.func @transform_18(%arg0: i32) -> (i32, i32) {
    %c0_i32 = arith.constant 0 : i32
    %c0_i32_0 = arith.constant 0 : i32
    %c0_i32_1 = arith.constant 0 : i32
    return %c0_i32, %c0_i32_0 : i32, i32
  }
  func.func @transform_19(%arg0: i32) -> (i32, i32) {
    %c0_i32 = arith.constant 0 : i32
    %c0_i32_0 = arith.constant 0 : i32
    %c0_i32_1 = arith.constant 0 : i32
    return %c0_i32, %c0_i32_0 : i32, i32
  }
  func.func @transform_20(%arg0: i32) -> (i32, i32) {
    %c0_i32 = arith.constant 0 : i32
    %c0_i32_0 = arith.constant 0 : i32
    %c0_i32_1 = arith.constant 0 : i32
    return %c0_i32, %c0_i32_0 : i32, i32
  }
  func.func @transform_21(%arg0: i32) -> (i32, i32) {
    %c0_i32 = arith.constant 0 : i32
    %c0_i32_0 = arith.constant 0 : i32
    %c0_i32_1 = arith.constant 0 : i32
    return %c0_i32, %c0_i32_0 : i32, i32
  }
  func.func @transform_22(%arg0: i32) -> (i32, i32) {
    %c0_i32 = arith.constant 0 : i32
    %c0_i32_0 = arith.constant 0 : i32
    %c0_i32_1 = arith.constant 0 : i32
    return %c0_i32, %c0_i32_0 : i32, i32
  }
  func.func @transform_23(%arg0: i32) -> (i32, i32) {
    %c0_i32 = arith.constant 0 : i32
    %c0_i32_0 = arith.constant 0 : i32
    %c0_i32_1 = arith.constant 0 : i32
    return %c0_i32, %c0_i32_0 : i32, i32
  }
  func.func @transform_24(%arg0: i32) -> (i32, i32) {
    %c0_i32 = arith.constant 0 : i32
    %c0_i32_0 = arith.constant 0 : i32
    %c0_i32_1 = arith.constant 0 : i32
    return %c0_i32, %c0_i32_0 : i32, i32
  }
  func.func @transform_25(%arg0: i32) -> (i32, i32) {
    %c0_i32 = arith.constant 0 : i32
    %c0_i32_0 = arith.constant 0 : i32
    %c0_i32_1 = arith.constant 0 : i32
    return %c0_i32, %c0_i32_0 : i32, i32
  }
  func.func @transform_26(%arg0: i32) -> (i32, i32) {
    %c0_i32 = arith.constant 0 : i32
    %c0_i32_0 = arith.constant 0 : i32
    %c0_i32_1 = arith.constant 0 : i32
    return %c0_i32, %c0_i32_0 : i32, i32
  }
  func.func @transform_27(%arg0: i32) -> (i32, i32) {
    %c0_i32 = arith.constant 0 : i32
    %c0_i32_0 = arith.constant 0 : i32
    %c0_i32_1 = arith.constant 0 : i32
    return %c0_i32, %c0_i32_0 : i32, i32
  }
  func.func @transform_28(%arg0: i32) -> (i32, i32, i32) {
    %c0_i32 = arith.constant 0 : i32
    %c0_i32_0 = arith.constant 0 : i32
    %c0_i32_1 = arith.constant 0 : i32
    return %arg0, %c0_i32, %c0_i32_0 : i32, i32, i32
  }
  func.func @transform_29(%arg0: i32) -> (i32, i32, i32) {
    %c0_i32 = arith.constant 0 : i32
    %c0_i32_0 = arith.constant 0 : i32
    %c0_i32_1 = arith.constant 0 : i32
    return %arg0, %c0_i32, %c0_i32_0 : i32, i32, i32
  }
  func.func @transform_30(%arg0: i32) -> (i32, i32, i32) {
    %c0_i32 = arith.constant 0 : i32
    %c0_i32_0 = arith.constant 0 : i32
    %c0_i32_1 = arith.constant 0 : i32
    return %arg0, %c0_i32, %c0_i32_0 : i32, i32, i32
  }
  func.func @transform_31(%arg0: i32) -> (i32, i32, i32) {
    %c0_i32 = arith.constant 0 : i32
    %c0_i32_0 = arith.constant 0 : i32
    %c0_i32_1 = arith.constant 0 : i32
    return %arg0, %c0_i32, %c0_i32_0 : i32, i32, i32
  }
  func.func @transform_32(%arg0: i32) -> (i32, i32, i32) {
    %c0_i32 = arith.constant 0 : i32
    %c0_i32_0 = arith.constant 0 : i32
    %c0_i32_1 = arith.constant 0 : i32
    return %arg0, %c0_i32, %c0_i32_0 : i32, i32, i32
  }
  func.func @transform_33(%arg0: i32) -> (i32, i32, i32) {
    %c0_i32 = arith.constant 0 : i32
    %c0_i32_0 = arith.constant 0 : i32
    %c0_i32_1 = arith.constant 0 : i32
    return %arg0, %c0_i32, %c0_i32_0 : i32, i32, i32
  }
  func.func @transform_34(%arg0: i32) -> (i32, i32, i32) {
    %c0_i32 = arith.constant 0 : i32
    %c0_i32_0 = arith.constant 0 : i32
    %c0_i32_1 = arith.constant 0 : i32
    return %arg0, %c0_i32, %c0_i32_0 : i32, i32, i32
  }
  func.func @transform_35(%arg0: i32) -> (i32, i32) {
    %c0_i32 = arith.constant 0 : i32
    %c0_i32_0 = arith.constant 0 : i32
    %c0_i32_1 = arith.constant 0 : i32
    return %c0_i32, %c0_i32_0 : i32, i32
  }
}

</mosaic_0001>

<llo_original>
// kernel: quantum_gnn_forward.1
$region0: #{quantum_gnn_forward.1}
  #allocation0 [shape = 'u32[]', space=smem, size = 0x4, offset = 0x4, fixed_abs, tag = 'smem constant byte address 0x4 - core index']
  #allocation1 [shape = 'u32[144,128]{1,0:T(1,128)}', space=vmem, size = 0x12000, scoped, tag = 'internal scratch']
  #allocation2 [shape = 'f32[16,32]{1,0:T(8,128)}', space=vmem, size = 0x2000, scoped, tag = 'scratch operand']
  #allocation3 [shape = 'bf16[256,32]{1,0:T(16,128)(2,1)}', space=vmem, size = 0x10000, scoped, tag = 'scratch operand']
  %s0 = inlined_call_operand.smem [shape: u32[36], index: -1, kind: input, shape index: {}]
  %s1 = sld [smem:[%s0]]
  %s2 = scalar_lea.smem %s0, 1
  %s3 = sld [smem:[%s2]]
  %s4 = scalar_lea.smem %s0, 2
  %s5 = sld [smem:[%s4]]
  %s6 = scalar_lea.smem %s0, 3
  %s7 = sld [smem:[%s6]]
  %s8 = scalar_lea.smem %s0, 4
  %s9 = sld [smem:[%s8]]
  %s10 = scalar_lea.smem %s0, 5
  %s11 = sld [smem:[%s10]]
  %s12 = scalar_lea.smem %s0, 6
  %s13 = sld [smem:[%s12]]
  %s14 = scalar_lea.smem %s0, 7
  %s15 = sld [smem:[%s14]]
  %s16 = scalar_lea.smem %s0, 8
  %s17 = sld [smem:[%s16]]
  %s18 = scalar_lea.smem %s0, 9
  %s19 = sld [smem:[%s18]]
  %s20 = scalar_lea.smem %s0, 10
  %s21 = sld [smem:[%s20]]
  %s22 = scalar_lea.smem %s0, 11
  %s23 = sld [smem:[%s22]]
  %s24 = scalar_lea.smem %s0, 12
  %s25 = sld [smem:[%s24]]
  %s26 = scalar_lea.smem %s0, 13
  %s27 = sld [smem:[%s26]]
  %s28 = scalar_lea.smem %s0, 14
  %s29 = sld [smem:[%s28]]
  %s30 = scalar_lea.smem %s0, 15
  %s31 = sld [smem:[%s30]]
  %s32 = scalar_lea.smem %s0, 16
  %s33 = sld [smem:[%s32]]
  %s34 = scalar_lea.smem %s0, 17
  %s35 = sld [smem:[%s34]]
  %s36 = scalar_lea.smem %s0, 18
  %s37 = sld [smem:[%s36]]
  %s38 = scalar_lea.smem %s0, 19
  %s39 = sld [smem:[%s38]]
  %s40 = scalar_lea.smem %s0, 20
  %s41 = sld [smem:[%s40]]
  %s42 = scalar_lea.smem %s0, 21
  %s43 = sld [smem:[%s42]]
  %s44 = scalar_lea.smem %s0, 22
  %s45 = sld [smem:[%s44]]
  %s46 = scalar_lea.smem %s0, 23
  %s47 = sld [smem:[%s46]]
  %s48 = scalar_lea.smem %s0, 24
  %s49 = sld [smem:[%s48]]
  %s50 = scalar_lea.smem %s0, 25
  %s51 = sld [smem:[%s50]]
  %s52 = scalar_lea.smem %s0, 26
  %s53 = sld [smem:[%s52]]
  %s54 = scalar_lea.smem %s0, 27
  %s55 = sld [smem:[%s54]]
  %s56 = scalar_lea.smem %s0, 28
  %s57 = sld [smem:[%s56]]
  %s58 = scalar_lea.smem %s0, 29
  %s59 = sld [smem:[%s58]]
  %s60 = scalar_lea.smem %s0, 30
  %s61 = sld [smem:[%s60]]
  %s62 = scalar_lea.smem %s0, 31
  %s63 = sld [smem:[%s62]]
  %s64 = scalar_lea.smem %s0, 32
  %s65 = sld [smem:[%s64]]
  %s66 = scalar_lea.smem %s0, 33
  %s67 = sld [smem:[%s66]]
  %s68 = scalar_lea.smem %s0, 34
  %s69 = sld [smem:[%s68]]
  %s70 = scalar_lea.smem %s0, 35
  %s71 = sld [smem:[%s70]]
  %s72 = sld [smem:[#allocation0]]
  $region181: #{quantum_gnn_forward.1} parent=0
    _
  %s74 = ssub.s32 1, %s72
  %s75 = scalar_select 0, %s74, %s72
  $region1: #{quantum_gnn_forward.1} parent=0
    #allocation4 [shape = 'u8[1024]{0}', space=vmem, size = 0x400, scoped, tag = 'output window, operand 0, single buffered']
    #allocation5 [shape = 's32[2]{0}', space=sflag, size = 0x8, scoped, tag = 'scoped memory for quantum_gnn_forward.1']
    %76 = vsyncpa [#allocation5], 0
    loop: start=0, step=1, limit=8
    $region2: #{quantum_gnn_forward.1} parent=1 // loop_pre_header
      _
    $region3: #{quantum_gnn_forward.1} parent=1 // loop_header
      %s78 = sphi 0, %s82
      %p79 = scmp.ge.s32.totalorder %s78, 8
      %s86 = sphi 0, %s86
      %s88 = sphi 0, %s86
      %s89 = sphi 0, %s88
      %s103 = sphi 0, %s89
      %s107 = sphi 0, %s107
      %s109 = sphi 0, %s107
      %s110 = sphi 0, %s109
      %s124 = sphi 0, %s110
      %s128 = sphi 0, %s128
      %s130 = sphi 0, %s128
      %s131 = sphi 0, %s130
      %s145 = sphi 0, %s131
      %s149 = sphi 0, %s149
      %s151 = sphi 0, %s149
      %s152 = sphi 0, %s151
      %s166 = sphi 0, %s152
      %s170 = sphi 0, %s170
      %s172 = sphi 0, %s170
      %s173 = sphi 0, %s172
      %s187 = sphi 0, %s173
      %s191 = sphi 0, %s191
      %s193 = sphi 0, %s191
      %s194 = sphi 0, %s193
      %s208 = sphi 0, %s194
      %s212 = sphi 0, %s212
      %s214 = sphi 0, %s212
      %s215 = sphi 0, %s214
      %s229 = sphi 0, %s215
      %s233 = sphi 0, %s233
      %s235 = sphi 0, %s233
      %s236 = sphi 0, %s235
      %s250 = sphi 0, %s236
      %s254 = sphi 0, %s254
      %s256 = sphi 0, %s254
      %s257 = sphi 0, %s256
      %s271 = sphi 0, %s257
      %s275 = sphi 0, %s275
      %s277 = sphi 0, %s275
      %s278 = sphi 0, %s277
      %s292 = sphi 0, %s278
      %s296 = sphi 0, %s296
      %s298 = sphi 0, %s296
      %s299 = sphi 0, %s298
      %s313 = sphi 0, %s299
      %s317 = sphi 0, %s317
      %s319 = sphi 0, %s317
      %s320 = sphi 0, %s319
      %s334 = sphi 0, %s320
      %s338 = sphi 0, %s338
      %s340 = sphi 0, %s338
      %s341 = sphi 0, %s340
      %s355 = sphi 0, %s341
      %s359 = sphi 0, %s359
      %s361 = sphi 0, %s359
      %s362 = sphi 0, %s361
      %s376 = sphi 0, %s362
      %s380 = sphi 0, %s380
      %s382 = sphi 0, %s380
      %s383 = sphi 0, %s382
      %s397 = sphi 0, %s383
      %s401 = sphi 0, %s401
      %s403 = sphi 0, %s401
      %s404 = sphi 0, %s403
      %s418 = sphi 0, %s404
      %s422 = sphi 0, %s422
      %s424 = sphi 0, %s422
      %s425 = sphi 0, %s424
      %s439 = sphi 0, %s425
      %s443 = sphi 0, %s443
      %s445 = sphi 0, %s443
      %s446 = sphi 0, %s445
      %s460 = sphi 0, %s446
      %s464 = sphi 0, %s464
      %s466 = sphi 0, %s464
      %s467 = sphi 0, %s466
      %s481 = sphi 0, %s467
      %s485 = sphi 0, %s485
      %s487 = sphi 0, %s485
      %s488 = sphi 0, %s487
      %s502 = sphi 0, %s488
      %s506 = sphi 0, %s506
      %s508 = sphi 0, %s506
      %s509 = sphi 0, %s508
      %s523 = sphi 0, %s509
      %s527 = sphi 0, %s527
      %s529 = sphi 0, %s527
      %s530 = sphi 0, %s529
      %s544 = sphi 0, %s530
      %s548 = sphi 0, %s548
      %s550 = sphi 0, %s548
      %s551 = sphi 0, %s550
      %s565 = sphi 0, %s551
      %s569 = sphi 0, %s569
      %s571 = sphi 0, %s569
      %s572 = sphi 0, %s571
      %s586 = sphi 0, %s572
      %s590 = sphi 0, %s590
      %s592 = sphi 0, %s590
      %s593 = sphi 0, %s592
      %s607 = sphi 0, %s593
      %s611 = sphi 0, %s611
      %s613 = sphi 0, %s611
      %s614 = sphi 0, %s613
      %s628 = sphi 0, %s614
      %s632 = sphi 0, %s632
      %s634 = sphi 0, %s632
      %s635 = sphi 0, %s634
      %s649 = sphi 0, %s635
      %s653 = sphi 0, %s653
      %s655 = sphi 0, %s653
      %s656 = sphi 0, %s655
      %s670 = sphi 0, %s656
      %s676 = sphi 0, %s678
      %s679 = sphi 0, %s676
      %s680 = sphi 0, %s679
      %s696 = sphi 0, %s680
      %s702 = sphi 0, %s704
      %s705 = sphi 0, %s702
      %s706 = sphi 0, %s705
      %s722 = sphi 0, %s706
      %s728 = sphi 0, %s730
      %s731 = sphi 0, %s728
      %s732 = sphi 0, %s731
      %s748 = sphi 0, %s732
      %s754 = sphi 0, %s756
      %s757 = sphi 0, %s754
      %s758 = sphi 0, %s757
      %s774 = sphi 0, %s758
      %s780 = sphi 0, %s782
      %s783 = sphi 0, %s780
      %s784 = sphi 0, %s783
      %s800 = sphi 0, %s784
      %s806 = sphi 0, %s808
      %s809 = sphi 0, %s806
      %s810 = sphi 0, %s809
      %s826 = sphi 0, %s810
      %s832 = sphi 0, %s834
      %s835 = sphi 0, %s832
      %s836 = sphi 0, %s835
      %s852 = sphi 0, %s836
      %s856 = sphi 0, %s856
      %s858 = sphi 0, %s856
      %s859 = sphi 0, %s858
      %s873 = sphi 0, %s859
    $region4: #{quantum_gnn_forward.1} parent=1 // loop_header_branch
      %81 = sbr.rel (%p79) target = $region8
    $region5: #{quantum_gnn_forward.1} parent=1 // loop_body
      %s83 = ssub.s32 %s78, 1
      %s84 = ssub.s32 %s78, 2
      %s85 = sadd.s32 %s78, 1
      %s87 = sadd.s32 %s86, 1
      %p90 = scmp.eq.s32.totalorder %s78, 5
      %p91 = scmp.ne.s32.totalorder %s86, %s88
      %p92 = scmp.eq.s32.totalorder %s78, 0
      %p93 = por %p91, %p92
      %p94 = scmp.ne.s32.totalorder %s86, %s88
      %p95 = scmp.eq.s32.totalorder %s83, 5
      %p96 = por %p94, %p95
      %p97 = scmp.ne.s32.totalorder %s88, %s89
      %p98 = scmp.eq.s32.totalorder %s83, 0
      %p99 = por %p97, %p98
      %p100 = scmp.ne.s32.totalorder %s88, %s89
      %p101 = scmp.eq.s32.totalorder %s84, 5
      %p102 = por %p100, %p101
      %p104 = scmp.ne.s32.totalorder %s89, %s103
      %p105 = scmp.eq.s32.totalorder %s84, 0
      %p106 = por %p104, %p105
      %s108 = sadd.s32 %s107, 1
      %p111 = scmp.eq.s32.totalorder %s78, 5
      %p112 = scmp.ne.s32.totalorder %s107, %s109
      %p113 = scmp.eq.s32.totalorder %s78, 0
      %p114 = por %p112, %p113
      %p115 = scmp.ne.s32.totalorder %s107, %s109
      %p116 = scmp.eq.s32.totalorder %s83, 5
      %p117 = por %p115, %p116
      %p118 = scmp.ne.s32.totalorder %s109, %s110
      %p119 = scmp.eq.s32.totalorder %s83, 0
      %p120 = por %p118, %p119
      %p121 = scmp.ne.s32.totalorder %s109, %s110
      %p122 = scmp.eq.s32.totalorder %s84, 5
      %p123 = por %p121, %p122
      %p125 = scmp.ne.s32.totalorder %s110, %s124
      %p126 = scmp.eq.s32.totalorder %s84, 0
      %p127 = por %p125, %p126
      %s129 = sadd.s32 %s128, 1
      %p132 = scmp.eq.s32.totalorder %s78, 5
      %p133 = scmp.ne.s32.totalorder %s128, %s130
      %p134 = scmp.eq.s32.totalorder %s78, 0
      %p135 = por %p133, %p134
      %p136 = scmp.ne.s32.totalorder %s128, %s130
      %p137 = scmp.eq.s32.totalorder %s83, 5
      %p138 = por %p136, %p137
      %p139 = scmp.ne.s32.totalorder %s130, %s131
      %p140 = scmp.eq.s32.totalorder %s83, 0
      %p141 = por %p139, %p140
      %p142 = scmp.ne.s32.totalorder %s130, %s131
      %p143 = scmp.eq.s32.totalorder %s84, 5
      %p144 = por %p142, %p143
      %p146 = scmp.ne.s32.totalorder %s131, %s145
      %p147 = scmp.eq.s32.totalorder %s84, 0
      %p148 = por %p146, %p147
      %s150 = sadd.s32 %s149, 1
      %p153 = scmp.eq.s32.totalorder %s78, 5
      %p154 = scmp.ne.s32.totalorder %s149, %s151
      %p155 = scmp.eq.s32.totalorder %s78, 0
      %p156 = por %p154, %p155
      %p157 = scmp.ne.s32.totalorder %s149, %s151
      %p158 = scmp.eq.s32.totalorder %s83, 5
      %p159 = por %p157, %p158
      %p160 = scmp.ne.s32.totalorder %s151, %s152
      %p161 = scmp.eq.s32.totalorder %s83, 0
      %p162 = por %p160, %p161
      %p163 = scmp.ne.s32.totalorder %s151, %s152
      %p164 = scmp.eq.s32.totalorder %s84, 5
      %p165 = por %p163, %p164
      %p167 = scmp.ne.s32.totalorder %s152, %s166
      %p168 = scmp.eq.s32.totalorder %s84, 0
      %p169 = por %p167, %p168
      %s171 = sadd.s32 %s170, 1
      %p174 = scmp.eq.s32.totalorder %s78, 5
      %p175 = scmp.ne.s32.totalorder %s170, %s172
      %p176 = scmp.eq.s32.totalorder %s78, 0
      %p177 = por %p175, %p176
      %p178 = scmp.ne.s32.totalorder %s170, %s172
      %p179 = scmp.eq.s32.totalorder %s83, 5
      %p180 = por %p178, %p179
      %p181 = scmp.ne.s32.totalorder %s172, %s173
      %p182 = scmp.eq.s32.totalorder %s83, 0
      %p183 = por %p181, %p182
      %p184 = scmp.ne.s32.totalorder %s172, %s173
      %p185 = scmp.eq.s32.totalorder %s84, 5
      %p186 = por %p184, %p185
      %p188 = scmp.ne.s32.totalorder %s173, %s187
      %p189 = scmp.eq.s32.totalorder %s84, 0
      %p190 = por %p188, %p189
      %s192 = sadd.s32 %s191, 1
      %p195 = scmp.eq.s32.totalorder %s78, 5
      %p196 = scmp.ne.s32.totalorder %s191, %s193
      %p197 = scmp.eq.s32.totalorder %s78, 0
      %p198 = por %p196, %p197
      %p199 = scmp.ne.s32.totalorder %s191, %s193
      %p200 = scmp.eq.s32.totalorder %s83, 5
      %p201 = por %p199, %p200
      %p202 = scmp.ne.s32.totalorder %s193, %s194
      %p203 = scmp.eq.s32.totalorder %s83, 0
      %p204 = por %p202, %p203
      %p205 = scmp.ne.s32.totalorder %s193, %s194
      %p206 = scmp.eq.s32.totalorder %s84, 5
      %p207 = por %p205, %p206
      %p209 = scmp.ne.s32.totalorder %s194, %s208
      %p210 = scmp.eq.s32.totalorder %s84, 0
      %p211 = por %p209, %p210
      %s213 = sadd.s32 %s212, 1
      %p216 = scmp.eq.s32.totalorder %s78, 5
      %p217 = scmp.ne.s32.totalorder %s212, %s214
      %p218 = scmp.eq.s32.totalorder %s78, 0
      %p219 = por %p217, %p218
      %p220 = scmp.ne.s32.totalorder %s212, %s214
      %p221 = scmp.eq.s32.totalorder %s83, 5
      %p222 = por %p220, %p221
      %p223 = scmp.ne.s32.totalorder %s214, %s215
      %p224 = scmp.eq.s32.totalorder %s83, 0
      %p225 = por %p223, %p224
      %p226 = scmp.ne.s32.totalorder %s214, %s215
      %p227 = scmp.eq.s32.totalorder %s84, 5
      %p228 = por %p226, %p227
      %p230 = scmp.ne.s32.totalorder %s215, %s229
      %p231 = scmp.eq.s32.totalorder %s84, 0
      %p232 = por %p230, %p231
      %s234 = sadd.s32 %s233, 1
      %p237 = scmp.eq.s32.totalorder %s78, 5
      %p238 = scmp.ne.s32.totalorder %s233, %s235
      %p239 = scmp.eq.s32.totalorder %s78, 0
      %p240 = por %p238, %p239
      %p241 = scmp.ne.s32.totalorder %s233, %s235
      %p242 = scmp.eq.s32.totalorder %s83, 5
      %p243 = por %p241, %p242
      %p244 = scmp.ne.s32.totalorder %s235, %s236
      %p245 = scmp.eq.s32.totalorder %s83, 0
      %p246 = por %p244, %p245
      %p247 = scmp.ne.s32.totalorder %s235, %s236
      %p248 = scmp.eq.s32.totalorder %s84, 5
      %p249 = por %p247, %p248
      %p251 = scmp.ne.s32.totalorder %s236, %s250
      %p252 = scmp.eq.s32.totalorder %s84, 0
      %p253 = por %p251, %p252
      %s255 = sadd.s32 %s254, 1
      %p258 = scmp.eq.s32.totalorder %s78, 5
      %p259 = scmp.ne.s32.totalorder %s254, %s256
      %p260 = scmp.eq.s32.totalorder %s78, 0
      %p261 = por %p259, %p260
      %p262 = scmp.ne.s32.totalorder %s254, %s256
      %p263 = scmp.eq.s32.totalorder %s83, 5
      %p264 = por %p262, %p263
      %p265 = scmp.ne.s32.totalorder %s256, %s257
      %p266 = scmp.eq.s32.totalorder %s83, 0
      %p267 = por %p265, %p266
      %p268 = scmp.ne.s32.totalorder %s256, %s257
      %p269 = scmp.eq.s32.totalorder %s84, 5
      %p270 = por %p268, %p269
      %p272 = scmp.ne.s32.totalorder %s257, %s271
      %p273 = scmp.eq.s32.totalorder %s84, 0
      %p274 = por %p272, %p273
      %s276 = sadd.s32 %s275, 1
      %p279 = scmp.eq.s32.totalorder %s78, 5
      %p280 = scmp.ne.s32.totalorder %s275, %s277
      %p281 = scmp.eq.s32.totalorder %s78, 0
      %p282 = por %p280, %p281
      %p283 = scmp.ne.s32.totalorder %s275, %s277
      %p284 = scmp.eq.s32.totalorder %s83, 5
      %p285 = por %p283, %p284
      %p286 = scmp.ne.s32.totalorder %s277, %s278
      %p287 = scmp.eq.s32.totalorder %s83, 0
      %p288 = por %p286, %p287
      %p289 = scmp.ne.s32.totalorder %s277, %s278
      %p290 = scmp.eq.s32.totalorder %s84, 5
      %p291 = por %p289, %p290
      %p293 = scmp.ne.s32.totalorder %s278, %s292
      %p294 = scmp.eq.s32.totalorder %s84, 0
      %p295 = por %p293, %p294
      %s297 = sadd.s32 %s296, 1
      %p300 = scmp.eq.s32.totalorder %s78, 5
      %p301 = scmp.ne.s32.totalorder %s296, %s298
      %p302 = scmp.eq.s32.totalorder %s78, 0
      %p303 = por %p301, %p302
      %p304 = scmp.ne.s32.totalorder %s296, %s298
      %p305 = scmp.eq.s32.totalorder %s83, 5
      %p306 = por %p304, %p305
      %p307 = scmp.ne.s32.totalorder %s298, %s299
      %p308 = scmp.eq.s32.totalorder %s83, 0
      %p309 = por %p307, %p308
      %p310 = scmp.ne.s32.totalorder %s298, %s299
      %p311 = scmp.eq.s32.totalorder %s84, 5
      %p312 = por %p310, %p311
      %p314 = scmp.ne.s32.totalorder %s299, %s313
      %p315 = scmp.eq.s32.totalorder %s84, 0
      %p316 = por %p314, %p315
      %s318 = sadd.s32 %s317, 1
      %p321 = scmp.eq.s32.totalorder %s78, 5
      %p322 = scmp.ne.s32.totalorder %s317, %s319
      %p323 = scmp.eq.s32.totalorder %s78, 0
      %p324 = por %p322, %p323
      %p325 = scmp.ne.s32.totalorder %s317, %s319
      %p326 = scmp.eq.s32.totalorder %s83, 5
      %p327 = por %p325, %p326
      %p328 = scmp.ne.s32.totalorder %s319, %s320
      %p329 = scmp.eq.s32.totalorder %s83, 0
      %p330 = por %p328, %p329
      %p331 = scmp.ne.s32.totalorder %s319, %s320
      %p332 = scmp.eq.s32.totalorder %s84, 5
      %p333 = por %p331, %p332
      %p335 = scmp.ne.s32.totalorder %s320, %s334
      %p336 = scmp.eq.s32.totalorder %s84, 0
      %p337 = por %p335, %p336
      %s339 = sadd.s32 %s338, 1
      %p342 = scmp.eq.s32.totalorder %s78, 5
      %p343 = scmp.ne.s32.totalorder %s338, %s340
      %p344 = scmp.eq.s32.totalorder %s78, 0
      %p345 = por %p343, %p344
      %p346 = scmp.ne.s32.totalorder %s338, %s340
      %p347 = scmp.eq.s32.totalorder %s83, 5
      %p348 = por %p346, %p347
      %p349 = scmp.ne.s32.totalorder %s340, %s341
      %p350 = scmp.eq.s32.totalorder %s83, 0
      %p351 = por %p349, %p350
      %p352 = scmp.ne.s32.totalorder %s340, %s341
      %p353 = scmp.eq.s32.totalorder %s84, 5
      %p354 = por %p352, %p353
      %p356 = scmp.ne.s32.totalorder %s341, %s355
      %p357 = scmp.eq.s32.totalorder %s84, 0
      %p358 = por %p356, %p357
      %s360 = sadd.s32 %s359, 1
      %p363 = scmp.eq.s32.totalorder %s78, 5
      %p364 = scmp.ne.s32.totalorder %s359, %s361
      %p365 = scmp.eq.s32.totalorder %s78, 0
      %p366 = por %p364, %p365
      %p367 = scmp.ne.s32.totalorder %s359, %s361
      %p368 = scmp.eq.s32.totalorder %s83, 5
      %p369 = por %p367, %p368
      %p370 = scmp.ne.s32.totalorder %s361, %s362
      %p371 = scmp.eq.s32.totalorder %s83, 0
      %p372 = por %p370, %p371
      %p373 = scmp.ne.s32.totalorder %s361, %s362
      %p374 = scmp.eq.s32.totalorder %s84, 5
      %p375 = por %p373, %p374
      %p377 = scmp.ne.s32.totalorder %s362, %s376
      %p378 = scmp.eq.s32.totalorder %s84, 0
      %p379 = por %p377, %p378
      %s381 = sadd.s32 %s380, 1
      %p384 = scmp.eq.s32.totalorder %s78, 5
      %p385 = scmp.ne.s32.totalorder %s380, %s382
      %p386 = scmp.eq.s32.totalorder %s78, 0
      %p387 = por %p385, %p386
      %p388 = scmp.ne.s32.totalorder %s380, %s382
      %p389 = scmp.eq.s32.totalorder %s83, 5
      %p390 = por %p388, %p389
      %p391 = scmp.ne.s32.totalorder %s382, %s383
      %p392 = scmp.eq.s32.totalorder %s83, 0
      %p393 = por %p391, %p392
      %p394 = scmp.ne.s32.totalorder %s382, %s383
      %p395 = scmp.eq.s32.totalorder %s84, 5
      %p396 = por %p394, %p395
      %p398 = scmp.ne.s32.totalorder %s383, %s397
      %p399 = scmp.eq.s32.totalorder %s84, 0
      %p400 = por %p398, %p399
      %s402 = sadd.s32 %s401, 1
      %p405 = scmp.eq.s32.totalorder %s78, 5
      %p406 = scmp.ne.s32.totalorder %s401, %s403
      %p407 = scmp.eq.s32.totalorder %s78, 0
      %p408 = por %p406, %p407
      %p409 = scmp.ne.s32.totalorder %s401, %s403
      %p410 = scmp.eq.s32.totalorder %s83, 5
      %p411 = por %p409, %p410
      %p412 = scmp.ne.s32.totalorder %s403, %s404
      %p413 = scmp.eq.s32.totalorder %s83, 0
      %p414 = por %p412, %p413
      %p415 = scmp.ne.s32.totalorder %s403, %s404
      %p416 = scmp.eq.s32.totalorder %s84, 5
      %p417 = por %p415, %p416
      %p419 = scmp.ne.s32.totalorder %s404, %s418
      %p420 = scmp.eq.s32.totalorder %s84, 0
      %p421 = por %p419, %p420
      %s423 = sadd.s32 %s422, 1
      %p426 = scmp.eq.s32.totalorder %s78, 5
      %p427 = scmp.ne.s32.totalorder %s422, %s424
      %p428 = scmp.eq.s32.totalorder %s78, 0
      %p429 = por %p427, %p428
      %p430 = scmp.ne.s32.totalorder %s422, %s424
      %p431 = scmp.eq.s32.totalorder %s83, 5
      %p432 = por %p430, %p431
      %p433 = scmp.ne.s32.totalorder %s424, %s425
      %p434 = scmp.eq.s32.totalorder %s83, 0
      %p435 = por %p433, %p434
      %p436 = scmp.ne.s32.totalorder %s424, %s425
      %p437 = scmp.eq.s32.totalorder %s84, 5
      %p438 = por %p436, %p437
      %p440 = scmp.ne.s32.totalorder %s425, %s439
      %p441 = scmp.eq.s32.totalorder %s84, 0
      %p442 = por %p440, %p441
      %s444 = sadd.s32 %s443, 1
      %p447 = scmp.eq.s32.totalorder %s78, 5
      %p448 = scmp.ne.s32.totalorder %s443, %s445
      %p449 = scmp.eq.s32.totalorder %s78, 0
      %p450 = por %p448, %p449
      %p451 = scmp.ne.s32.totalorder %s443, %s445
      %p452 = scmp.eq.s32.totalorder %s83, 5
      %p453 = por %p451, %p452
      %p454 = scmp.ne.s32.totalorder %s445, %s446
      %p455 = scmp.eq.s32.totalorder %s83, 0
      %p456 = por %p454, %p455
      %p457 = scmp.ne.s32.totalorder %s445, %s446
      %p458 = scmp.eq.s32.totalorder %s84, 5
      %p459 = por %p457, %p458
      %p461 = scmp.ne.s32.totalorder %s446, %s460
      %p462 = scmp.eq.s32.totalorder %s84, 0
      %p463 = por %p461, %p462
      %s465 = sadd.s32 %s464, 1
      %p468 = scmp.eq.s32.totalorder %s78, 5
      %p469 = scmp.ne.s32.totalorder %s464, %s466
      %p470 = scmp.eq.s32.totalorder %s78, 0
      %p471 = por %p469, %p470
      %p472 = scmp.ne.s32.totalorder %s464, %s466
      %p473 = scmp.eq.s32.totalorder %s83, 5
      %p474 = por %p472, %p473
      %p475 = scmp.ne.s32.totalorder %s466, %s467
      %p476 = scmp.eq.s32.totalorder %s83, 0
      %p477 = por %p475, %p476
      %p478 = scmp.ne.s32.totalorder %s466, %s467
      %p479 = scmp.eq.s32.totalorder %s84, 5
      %p480 = por %p478, %p479
      %p482 = scmp.ne.s32.totalorder %s467, %s481
      %p483 = scmp.eq.s32.totalorder %s84, 0
      %p484 = por %p482, %p483
      %s486 = sadd.s32 %s485, 1
      %p489 = scmp.eq.s32.totalorder %s78, 5
      %p490 = scmp.ne.s32.totalorder %s485, %s487
      %p491 = scmp.eq.s32.totalorder %s78, 0
      %p492 = por %p490, %p491
      %p493 = scmp.ne.s32.totalorder %s485, %s487
      %p494 = scmp.eq.s32.totalorder %s83, 5
      %p495 = por %p493, %p494
      %p496 = scmp.ne.s32.totalorder %s487, %s488
      %p497 = scmp.eq.s32.totalorder %s83, 0
      %p498 = por %p496, %p497
      %p499 = scmp.ne.s32.totalorder %s487, %s488
      %p500 = scmp.eq.s32.totalorder %s84, 5
      %p501 = por %p499, %p500
      %p503 = scmp.ne.s32.totalorder %s488, %s502
      %p504 = scmp.eq.s32.totalorder %s84, 0
      %p505 = por %p503, %p504
      %s507 = sadd.s32 %s506, 1
      %p510 = scmp.eq.s32.totalorder %s78, 5
      %p511 = scmp.ne.s32.totalorder %s506, %s508
      %p512 = scmp.eq.s32.totalorder %s78, 0
      %p513 = por %p511, %p512
      %p514 = scmp.ne.s32.totalorder %s506, %s508
      %p515 = scmp.eq.s32.totalorder %s83, 5
      %p516 = por %p514, %p515
      %p517 = scmp.ne.s32.totalorder %s508, %s509
      %p518 = scmp.eq.s32.totalorder %s83, 0
      %p519 = por %p517, %p518
      %p520 = scmp.ne.s32.totalorder %s508, %s509
      %p521 = scmp.eq.s32.totalorder %s84, 5
      %p522 = por %p520, %p521
      %p524 = scmp.ne.s32.totalorder %s509, %s523
      %p525 = scmp.eq.s32.totalorder %s84, 0
      %p526 = por %p524, %p525
      %s528 = sadd.s32 %s527, 1
      %p531 = scmp.eq.s32.totalorder %s78, 5
      %p532 = scmp.ne.s32.totalorder %s527, %s529
      %p533 = scmp.eq.s32.totalorder %s78, 0
      %p534 = por %p532, %p533
      %p535 = scmp.ne.s32.totalorder %s527, %s529
      %p536 = scmp.eq.s32.totalorder %s83, 5
      %p537 = por %p535, %p536
      %p538 = scmp.ne.s32.totalorder %s529, %s530
      %p539 = scmp.eq.s32.totalorder %s83, 0
      %p540 = por %p538, %p539
      %p541 = scmp.ne.s32.totalorder %s529, %s530
      %p542 = scmp.eq.s32.totalorder %s84, 5
      %p543 = por %p541, %p542
      %p545 = scmp.ne.s32.totalorder %s530, %s544
      %p546 = scmp.eq.s32.totalorder %s84, 0
      %p547 = por %p545, %p546
      %s549 = sadd.s32 %s548, 1
      %p552 = scmp.eq.s32.totalorder %s78, 5
      %p553 = scmp.ne.s32.totalorder %s548, %s550
      %p554 = scmp.eq.s32.totalorder %s78, 0
      %p555 = por %p553, %p554
      %p556 = scmp.ne.s32.totalorder %s548, %s550
      %p557 = scmp.eq.s32.totalorder %s83, 5
      %p558 = por %p556, %p557
      %p559 = scmp.ne.s32.totalorder %s550, %s551
      %p560 = scmp.eq.s32.totalorder %s83, 0
      %p561 = por %p559, %p560
      %p562 = scmp.ne.s32.totalorder %s550, %s551
      %p563 = scmp.eq.s32.totalorder %s84, 5
      %p564 = por %p562, %p563
      %p566 = scmp.ne.s32.totalorder %s551, %s565
      %p567 = scmp.eq.s32.totalorder %s84, 0
      %p568 = por %p566, %p567
      %s570 = sadd.s32 %s569, 1
      %p573 = scmp.eq.s32.totalorder %s78, 5
      %p574 = scmp.ne.s32.totalorder %s569, %s571
      %p575 = scmp.eq.s32.totalorder %s78, 0
      %p576 = por %p574, %p575
      %p577 = scmp.ne.s32.totalorder %s569, %s571
      %p578 = scmp.eq.s32.totalorder %s83, 5
      %p579 = por %p577, %p578
      %p580 = scmp.ne.s32.totalorder %s571, %s572
      %p581 = scmp.eq.s32.totalorder %s83, 0
      %p582 = por %p580, %p581
      %p583 = scmp.ne.s32.totalorder %s571, %s572
      %p584 = scmp.eq.s32.totalorder %s84, 5
      %p585 = por %p583, %p584
      %p587 = scmp.ne.s32.totalorder %s572, %s586
      %p588 = scmp.eq.s32.totalorder %s84, 0
      %p589 = por %p587, %p588
      %s591 = sadd.s32 %s590, 1
      %p594 = scmp.eq.s32.totalorder %s78, 5
      %p595 = scmp.ne.s32.totalorder %s590, %s592
      %p596 = scmp.eq.s32.totalorder %s78, 0
      %p597 = por %p595, %p596
      %p598 = scmp.ne.s32.totalorder %s590, %s592
      %p599 = scmp.eq.s32.totalorder %s83, 5
      %p600 = por %p598, %p599
      %p601 = scmp.ne.s32.totalorder %s592, %s593
      %p602 = scmp.eq.s32.totalorder %s83, 0
      %p603 = por %p601, %p602
      %p604 = scmp.ne.s32.totalorder %s592, %s593
      %p605 = scmp.eq.s32.totalorder %s84, 5
      %p606 = por %p604, %p605
      %p608 = scmp.ne.s32.totalorder %s593, %s607
      %p609 = scmp.eq.s32.totalorder %s84, 0
      %p610 = por %p608, %p609
      %s612 = sadd.s32 %s611, 1
      %p615 = scmp.eq.s32.totalorder %s78, 5
      %p616 = scmp.ne.s32.totalorder %s611, %s613
      %p617 = scmp.eq.s32.totalorder %s78, 0
      %p618 = por %p616, %p617
      %p619 = scmp.ne.s32.totalorder %s611, %s613
      %p620 = scmp.eq.s32.totalorder %s83, 5
      %p621 = por %p619, %p620
      %p622 = scmp.ne.s32.totalorder %s613, %s614
      %p623 = scmp.eq.s32.totalorder %s83, 0
      %p624 = por %p622, %p623
      %p625 = scmp.ne.s32.totalorder %s613, %s614
      %p626 = scmp.eq.s32.totalorder %s84, 5
      %p627 = por %p625, %p626
      %p629 = scmp.ne.s32.totalorder %s614, %s628
      %p630 = scmp.eq.s32.totalorder %s84, 0
      %p631 = por %p629, %p630
      %s633 = sadd.s32 %s632, 1
      %p636 = scmp.eq.s32.totalorder %s78, 5
      %p637 = scmp.ne.s32.totalorder %s632, %s634
      %p638 = scmp.eq.s32.totalorder %s78, 0
      %p639 = por %p637, %p638
      %p640 = scmp.ne.s32.totalorder %s632, %s634
      %p641 = scmp.eq.s32.totalorder %s83, 5
      %p642 = por %p640, %p641
      %p643 = scmp.ne.s32.totalorder %s634, %s635
      %p644 = scmp.eq.s32.totalorder %s83, 0
      %p645 = por %p643, %p644
      %p646 = scmp.ne.s32.totalorder %s634, %s635
      %p647 = scmp.eq.s32.totalorder %s84, 5
      %p648 = por %p646, %p647
      %p650 = scmp.ne.s32.totalorder %s635, %s649
      %p651 = scmp.eq.s32.totalorder %s84, 0
      %p652 = por %p650, %p651
      %s654 = sadd.s32 %s653, 1
      %p657 = scmp.eq.s32.totalorder %s78, 5
      %p658 = scmp.ne.s32.totalorder %s653, %s655
      %p659 = scmp.eq.s32.totalorder %s78, 0
      %p660 = por %p658, %p659
      %p661 = scmp.ne.s32.totalorder %s653, %s655
      %p662 = scmp.eq.s32.totalorder %s83, 5
      %p663 = por %p661, %p662
      %p664 = scmp.ne.s32.totalorder %s655, %s656
      %p665 = scmp.eq.s32.totalorder %s83, 0
      %p666 = por %p664, %p665
      %p667 = scmp.ne.s32.totalorder %s655, %s656
      %p668 = scmp.eq.s32.totalorder %s84, 5
      %p669 = por %p667, %p668
      %p671 = scmp.ne.s32.totalorder %s656, %s670
      %p672 = scmp.eq.s32.totalorder %s84, 0
      %p673 = por %p671, %p672
      %s674 = ssub.s32 %s78, %s85
      %p675 = scmp.eq.s32.totalorder %s674, 0
      %s677 = sadd.s32 %s676, 1
      %s678 = scalar_select %p675, %s676, %s677
      %p681 = pneg %p675
      %p682 = scmp.eq.s32.totalorder %s78, 5
      %p683 = por %p681, %p682
      %p684 = scmp.ne.s32.totalorder %s676, %s679
      %p685 = scmp.eq.s32.totalorder %s78, 0
      %p686 = por %p684, %p685
      %p687 = scmp.ne.s32.totalorder %s676, %s679
      %p688 = scmp.eq.s32.totalorder %s83, 5
      %p689 = por %p687, %p688
      %p690 = scmp.ne.s32.totalorder %s679, %s680
      %p691 = scmp.eq.s32.totalorder %s83, 0
      %p692 = por %p690, %p691
      %p693 = scmp.ne.s32.totalorder %s679, %s680
      %p694 = scmp.eq.s32.totalorder %s84, 5
      %p695 = por %p693, %p694
      %p697 = scmp.ne.s32.totalorder %s680, %s696
      %p698 = scmp.eq.s32.totalorder %s84, 0
      %p699 = por %p697, %p698
      %s700 = ssub.s32 %s78, %s85
      %p701 = scmp.eq.s32.totalorder %s700, 0
      %s703 = sadd.s32 %s702, 1
      %s704 = scalar_select %p701, %s702, %s703
      %p707 = pneg %p701
      %p708 = scmp.eq.s32.totalorder %s78, 5
      %p709 = por %p707, %p708
      %p710 = scmp.ne.s32.totalorder %s702, %s705
      %p711 = scmp.eq.s32.totalorder %s78, 0
      %p712 = por %p710, %p711
      %p713 = scmp.ne.s32.totalorder %s702, %s705
      %p714 = scmp.eq.s32.totalorder %s83, 5
      %p715 = por %p713, %p714
      %p716 = scmp.ne.s32.totalorder %s705, %s706
      %p717 = scmp.eq.s32.totalorder %s83, 0
      %p718 = por %p716, %p717
      %p719 = scmp.ne.s32.totalorder %s705, %s706
      %p720 = scmp.eq.s32.totalorder %s84, 5
      %p721 = por %p719, %p720
      %p723 = scmp.ne.s32.totalorder %s706, %s722
      %p724 = scmp.eq.s32.totalorder %s84, 0
      %p725 = por %p723, %p724
      %s726 = ssub.s32 %s78, %s85
      %p727 = scmp.eq.s32.totalorder %s726, 0
      %s729 = sadd.s32 %s728, 1
      %s730 = scalar_select %p727, %s728, %s729
      %p733 = pneg %p727
      %p734 = scmp.eq.s32.totalorder %s78, 5
      %p735 = por %p733, %p734
      %p736 = scmp.ne.s32.totalorder %s728, %s731
      %p737 = scmp.eq.s32.totalorder %s78, 0
      %p738 = por %p736, %p737
      %p739 = scmp.ne.s32.totalorder %s728, %s731
      %p740 = scmp.eq.s32.totalorder %s83, 5
      %p741 = por %p739, %p740
      %p742 = scmp.ne.s32.totalorder %s731, %s732
      %p743 = scmp.eq.s32.totalorder %s83, 0
      %p744 = por %p742, %p743
      %p745 = scmp.ne.s32.totalorder %s731, %s732
      %p746 = scmp.eq.s32.totalorder %s84, 5
      %p747 = por %p745, %p746
      %p749 = scmp.ne.s32.totalorder %s732, %s748
      %p750 = scmp.eq.s32.totalorder %s84, 0
      %p751 = por %p749, %p750
      %s752 = ssub.s32 %s78, %s85
      %p753 = scmp.eq.s32.totalorder %s752, 0
      %s755 = sadd.s32 %s754, 1
      %s756 = scalar_select %p753, %s754, %s755
      %p759 = pneg %p753
      %p760 = scmp.eq.s32.totalorder %s78, 5
      %p761 = por %p759, %p760
      %p762 = scmp.ne.s32.totalorder %s754, %s757
      %p763 = scmp.eq.s32.totalorder %s78, 0
      %p764 = por %p762, %p763
      %p765 = scmp.ne.s32.totalorder %s754, %s757
      %p766 = scmp.eq.s32.totalorder %s83, 5
      %p767 = por %p765, %p766
      %p768 = scmp.ne.s32.totalorder %s757, %s758
      %p769 = scmp.eq.s32.totalorder %s83, 0
      %p770 = por %p768, %p769
      %p771 = scmp.ne.s32.totalorder %s757, %s758
      %p772 = scmp.eq.s32.totalorder %s84, 5
      %p773 = por %p771, %p772
      %p775 = scmp.ne.s32.totalorder %s758, %s774
      %p776 = scmp.eq.s32.totalorder %s84, 0
      %p777 = por %p775, %p776
      %s778 = ssub.s32 %s78, %s85
      %p779 = scmp.eq.s32.totalorder %s778, 0
      %s781 = sadd.s32 %s780, 1
      %s782 = scalar_select %p779, %s780, %s781
      %p785 = pneg %p779
      %p786 = scmp.eq.s32.totalorder %s78, 5
      %p787 = por %p785, %p786
      %p788 = scmp.ne.s32.totalorder %s780, %s783
      %p789 = scmp.eq.s32.totalorder %s78, 0
      %p790 = por %p788, %p789
      %p791 = scmp.ne.s32.totalorder %s780, %s783
      %p792 = scmp.eq.s32.totalorder %s83, 5
      %p793 = por %p791, %p792
      %p794 = scmp.ne.s32.totalorder %s783, %s784
      %p795 = scmp.eq.s32.totalorder %s83, 0
      %p796 = por %p794, %p795
      %p797 = scmp.ne.s32.totalorder %s783, %s784
      %p798 = scmp.eq.s32.totalorder %s84, 5
      %p799 = por %p797, %p798
      %p801 = scmp.ne.s32.totalorder %s784, %s800
      %p802 = scmp.eq.s32.totalorder %s84, 0
      %p803 = por %p801, %p802
      %s804 = ssub.s32 %s78, %s85
      %p805 = scmp.eq.s32.totalorder %s804, 0
      %s807 = sadd.s32 %s806, 1
      %s808 = scalar_select %p805, %s806, %s807
      %p811 = pneg %p805
      %p812 = scmp.eq.s32.totalorder %s78, 5
      %p813 = por %p811, %p812
      %p814 = scmp.ne.s32.totalorder %s806, %s809
      %p815 = scmp.eq.s32.totalorder %s78, 0
      %p816 = por %p814, %p815
      %p817 = scmp.ne.s32.totalorder %s806, %s809
      %p818 = scmp.eq.s32.totalorder %s83, 5
      %p819 = por %p817, %p818
      %p820 = scmp.ne.s32.totalorder %s809, %s810
      %p821 = scmp.eq.s32.totalorder %s83, 0
      %p822 = por %p820, %p821
      %p823 = scmp.ne.s32.totalorder %s809, %s810
      %p824 = scmp.eq.s32.totalorder %s84, 5
      %p825 = por %p823, %p824
      %p827 = scmp.ne.s32.totalorder %s810, %s826
      %p828 = scmp.eq.s32.totalorder %s84, 0
      %p829 = por %p827, %p828
      %s830 = ssub.s32 %s78, %s85
      %p831 = scmp.eq.s32.totalorder %s830, 0
      %s833 = sadd.s32 %s832, 1
      %s834 = scalar_select %p831, %s832, %s833
      %p837 = pneg %p831
      %p838 = scmp.eq.s32.totalorder %s78, 5
      %p839 = por %p837, %p838
      %p840 = scmp.ne.s32.totalorder %s832, %s835
      %p841 = scmp.eq.s32.totalorder %s78, 0
      %p842 = por %p840, %p841
      %p843 = scmp.ne.s32.totalorder %s832, %s835
      %p844 = scmp.eq.s32.totalorder %s83, 5
      %p845 = por %p843, %p844
      %p846 = scmp.ne.s32.totalorder %s835, %s836
      %p847 = scmp.eq.s32.totalorder %s83, 0
      %p848 = por %p846, %p847
      %p849 = scmp.ne.s32.totalorder %s835, %s836
      %p850 = scmp.eq.s32.totalorder %s84, 5
      %p851 = por %p849, %p850
      %p853 = scmp.ne.s32.totalorder %s836, %s852
      %p854 = scmp.eq.s32.totalorder %s84, 0
      %p855 = por %p853, %p854
      %s857 = sadd.s32 %s856, 1
      %p860 = scmp.eq.s32.totalorder %s78, 5
      %p861 = scmp.ne.s32.totalorder %s856, %s858
      %p862 = scmp.eq.s32.totalorder %s78, 0
      %p863 = por %p861, %p862
      %p864 = scmp.ne.s32.totalorder %s856, %s858
      %p865 = scmp.eq.s32.totalorder %s83, 5
      %p866 = por %p864, %p865
      %p867 = scmp.ne.s32.totalorder %s858, %s859
      %p868 = scmp.eq.s32.totalorder %s83, 0
      %p869 = por %p867, %p868
      %p870 = scmp.ne.s32.totalorder %s858, %s859
      %p871 = scmp.eq.s32.totalorder %s84, 5
      %p872 = por %p870, %p871
      %p874 = scmp.ne.s32.totalorder %s859, %s873
      %p875 = scmp.eq.s32.totalorder %s84, 0
      %p876 = por %p874, %p875
      %p877 = scmp.le.s32.totalorder 1, %s78
      %p878 = scmp.lt.s32.totalorder %s78, 7
      %p879 = pnand %p877, %p878
      %p880 = pneg %p879
      // Predicated region
      $region9: #{quantum_gnn_forward.1} parent=5 // pred_check
        _
      $region10: #{quantum_gnn_forward.1} parent=5 // pred_check_branch
        %882 = sbr.rel (%p879) target = $region12
      $region11: #{quantum_gnn_forward.1} parent=5 // pred_region
        %s883 = ssub.s32 %s78, 1
        // Predicated region
        $region13: #{quantum_gnn_forward.1} parent=11 // pred_check
          %p884 = pneg %p99
        $region14: #{quantum_gnn_forward.1} parent=11 // pred_check_branch
          %886 = sbr.rel (%p884) target = $region16
        $region15: #{quantum_gnn_forward.1} parent=11 // pred_region
          _
        $region16: #{quantum_gnn_forward.1} parent=11 // pred_fallthru
          _
        // Predicated region
        $region17: #{quantum_gnn_forward.1} parent=11 // pred_check
          %p887 = pneg %p120
        $region18: #{quantum_gnn_forward.1} parent=11 // pred_check_branch
          %889 = sbr.rel (%p887) target = $region20
        $region19: #{quantum_gnn_forward.1} parent=11 // pred_region
          _
        $region20: #{quantum_gnn_forward.1} parent=11 // pred_fallthru
          _
        // Predicated region
        $region21: #{quantum_gnn_forward.1} parent=11 // pred_check
          %p890 = pneg %p141
        $region22: #{quantum_gnn_forward.1} parent=11 // pred_check_branch
          %892 = sbr.rel (%p890) target = $region24
        $region23: #{quantum_gnn_forward.1} parent=11 // pred_region
          _
        $region24: #{quantum_gnn_forward.1} parent=11 // pred_fallthru
          _
        // Predicated region
        $region25: #{quantum_gnn_forward.1} parent=11 // pred_check
          %p893 = pneg %p162
        $region26: #{quantum_gnn_forward.1} parent=11 // pred_check_branch
          %895 = sbr.rel (%p893) target = $region28
        $region27: #{quantum_gnn_forward.1} parent=11 // pred_region
          _
        $region28: #{quantum_gnn_forward.1} parent=11 // pred_fallthru
          _
        // Predicated region
        $region29: #{quantum_gnn_forward.1} parent=11 // pred_check
          %p896 = pneg %p183
        $region30: #{quantum_gnn_forward.1} parent=11 // pred_check_branch
          %898 = sbr.rel (%p896) target = $region32
        $region31: #{quantum_gnn_forward.1} parent=11 // pred_region
          _
        $region32: #{quantum_gnn_forward.1} parent=11 // pred_fallthru
          _
        // Predicated region
        $region33: #{quantum_gnn_forward.1} parent=11 // pred_check
          %p899 = pneg %p204
        $region34: #{quantum_gnn_forward.1} parent=11 // pred_check_branch
          %901 = sbr.rel (%p899) target = $region36
        $region35: #{quantum_gnn_forward.1} parent=11 // pred_region
          _
        $region36: #{quantum_gnn_forward.1} parent=11 // pred_fallthru
          _
        // Predicated region
        $region37: #{quantum_gnn_forward.1} parent=11 // pred_check
          %p902 = pneg %p225
        $region38: #{quantum_gnn_forward.1} parent=11 // pred_check_branch
          %904 = sbr.rel (%p902) target = $region40
        $region39: #{quantum_gnn_forward.1} parent=11 // pred_region
          _
        $region40: #{quantum_gnn_forward.1} parent=11 // pred_fallthru
          _
        // Predicated region
        $region41: #{quantum_gnn_forward.1} parent=11 // pred_check
          %p905 = pneg %p246
        $region42: #{quantum_gnn_forward.1} parent=11 // pred_check_branch
          %907 = sbr.rel (%p905) target = $region44
        $region43: #{quantum_gnn_forward.1} parent=11 // pred_region
          _
        $region44: #{quantum_gnn_forward.1} parent=11 // pred_fallthru
          _
        // Predicated region
        $region45: #{quantum_gnn_forward.1} parent=11 // pred_check
          %p908 = pneg %p267
        $region46: #{quantum_gnn_forward.1} parent=11 // pred_check_branch
          %910 = sbr.rel (%p908) target = $region48
        $region47: #{quantum_gnn_forward.1} parent=11 // pred_region
          _
        $region48: #{quantum_gnn_forward.1} parent=11 // pred_fallthru
          _
        // Predicated region
        $region49: #{quantum_gnn_forward.1} parent=11 // pred_check
          %p911 = pneg %p288
        $region50: #{quantum_gnn_forward.1} parent=11 // pred_check_branch
          %913 = sbr.rel (%p911) target = $region52
        $region51: #{quantum_gnn_forward.1} parent=11 // pred_region
          _
        $region52: #{quantum_gnn_forward.1} parent=11 // pred_fallthru
          _
        // Predicated region
        $region53: #{quantum_gnn_forward.1} parent=11 // pred_check
          %p914 = pneg %p309
        $region54: #{quantum_gnn_forward.1} parent=11 // pred_check_branch
          %916 = sbr.rel (%p914) target = $region56
        $region55: #{quantum_gnn_forward.1} parent=11 // pred_region
          _
        $region56: #{quantum_gnn_forward.1} parent=11 // pred_fallthru
          _
        // Predicated region
        $region57: #{quantum_gnn_forward.1} parent=11 // pred_check
          %p917 = pneg %p330
        $region58: #{quantum_gnn_forward.1} parent=11 // pred_check_branch
          %919 = sbr.rel (%p917) target = $region60
        $region59: #{quantum_gnn_forward.1} parent=11 // pred_region
          _
        $region60: #{quantum_gnn_forward.1} parent=11 // pred_fallthru
          _
        // Predicated region
        $region61: #{quantum_gnn_forward.1} parent=11 // pred_check
          %p920 = pneg %p351
        $region62: #{quantum_gnn_forward.1} parent=11 // pred_check_branch
          %922 = sbr.rel (%p920) target = $region64
        $region63: #{quantum_gnn_forward.1} parent=11 // pred_region
          _
        $region64: #{quantum_gnn_forward.1} parent=11 // pred_fallthru
          _
        // Predicated region
        $region65: #{quantum_gnn_forward.1} parent=11 // pred_check
          %p923 = pneg %p372
        $region66: #{quantum_gnn_forward.1} parent=11 // pred_check_branch
          %925 = sbr.rel (%p923) target = $region68
        $region67: #{quantum_gnn_forward.1} parent=11 // pred_region
          _
        $region68: #{quantum_gnn_forward.1} parent=11 // pred_fallthru
          _
        // Predicated region
        $region69: #{quantum_gnn_forward.1} parent=11 // pred_check
          %p926 = pneg %p393
        $region70: #{quantum_gnn_forward.1} parent=11 // pred_check_branch
          %928 = sbr.rel (%p926) target = $region72
        $region71: #{quantum_gnn_forward.1} parent=11 // pred_region
          _
        $region72: #{quantum_gnn_forward.1} parent=11 // pred_fallthru
          _
        // Predicated region
        $region73: #{quantum_gnn_forward.1} parent=11 // pred_check
          %p929 = pneg %p414
        $region74: #{quantum_gnn_forward.1} parent=11 // pred_check_branch
          %931 = sbr.rel (%p929) target = $region76
        $region75: #{quantum_gnn_forward.1} parent=11 // pred_region
          _
        $region76: #{quantum_gnn_forward.1} parent=11 // pred_fallthru
          _
        // Predicated region
        $region77: #{quantum_gnn_forward.1} parent=11 // pred_check
          %p932 = pneg %p435
        $region78: #{quantum_gnn_forward.1} parent=11 // pred_check_branch
          %934 = sbr.rel (%p932) target = $region80
        $region79: #{quantum_gnn_forward.1} parent=11 // pred_region
          _
        $region80: #{quantum_gnn_forward.1} parent=11 // pred_fallthru
          _
        // Predicated region
        $region81: #{quantum_gnn_forward.1} parent=11 // pred_check
          %p935 = pneg %p456
        $region82: #{quantum_gnn_forward.1} parent=11 // pred_check_branch
          %937 = sbr.rel (%p935) target = $region84
        $region83: #{quantum_gnn_forward.1} parent=11 // pred_region
          _
        $region84: #{quantum_gnn_forward.1} parent=11 // pred_fallthru
          _
        // Predicated region
        $region85: #{quantum_gnn_forward.1} parent=11 // pred_check
          %p938 = pneg %p477
        $region86: #{quantum_gnn_forward.1} parent=11 // pred_check_branch
          %940 = sbr.rel (%p938) target = $region88
        $region87: #{quantum_gnn_forward.1} parent=11 // pred_region
          _
        $region88: #{quantum_gnn_forward.1} parent=11 // pred_fallthru
          _
        // Predicated region
        $region89: #{quantum_gnn_forward.1} parent=11 // pred_check
          %p941 = pneg %p498
        $region90: #{quantum_gnn_forward.1} parent=11 // pred_check_branch
          %943 = sbr.rel (%p941) target = $region92
        $region91: #{quantum_gnn_forward.1} parent=11 // pred_region
          _
        $region92: #{quantum_gnn_forward.1} parent=11 // pred_fallthru
          _
        // Predicated region
        $region93: #{quantum_gnn_forward.1} parent=11 // pred_check
          %p944 = pneg %p519
        $region94: #{quantum_gnn_forward.1} parent=11 // pred_check_branch
          %946 = sbr.rel (%p944) target = $region96
        $region95: #{quantum_gnn_forward.1} parent=11 // pred_region
          _
        $region96: #{quantum_gnn_forward.1} parent=11 // pred_fallthru
          _
        // Predicated region
        $region97: #{quantum_gnn_forward.1} parent=11 // pred_check
          %p947 = pneg %p540
        $region98: #{quantum_gnn_forward.1} parent=11 // pred_check_branch
          %949 = sbr.rel (%p947) target = $region100
        $region99: #{quantum_gnn_forward.1} parent=11 // pred_region
          _
        $region100: #{quantum_gnn_forward.1} parent=11 // pred_fallthru
          _
        // Predicated region
        $region101: #{quantum_gnn_forward.1} parent=11 // pred_check
          %p950 = pneg %p561
        $region102: #{quantum_gnn_forward.1} parent=11 // pred_check_branch
          %952 = sbr.rel (%p950) target = $region104
        $region103: #{quantum_gnn_forward.1} parent=11 // pred_region
          _
        $region104: #{quantum_gnn_forward.1} parent=11 // pred_fallthru
          _
        // Predicated region
        $region105: #{quantum_gnn_forward.1} parent=11 // pred_check
          %p953 = pneg %p582
        $region106: #{quantum_gnn_forward.1} parent=11 // pred_check_branch
          %955 = sbr.rel (%p953) target = $region108
        $region107: #{quantum_gnn_forward.1} parent=11 // pred_region
          _
        $region108: #{quantum_gnn_forward.1} parent=11 // pred_fallthru
          _
        // Predicated region
        $region109: #{quantum_gnn_forward.1} parent=11 // pred_check
          %p956 = pneg %p603
        $region110: #{quantum_gnn_forward.1} parent=11 // pred_check_branch
          %958 = sbr.rel (%p956) target = $region112
        $region111: #{quantum_gnn_forward.1} parent=11 // pred_region
          _
        $region112: #{quantum_gnn_forward.1} parent=11 // pred_fallthru
          _
        // Predicated region
        $region113: #{quantum_gnn_forward.1} parent=11 // pred_check
          %p959 = pneg %p624
        $region114: #{quantum_gnn_forward.1} parent=11 // pred_check_branch
          %961 = sbr.rel (%p959) target = $region116
        $region115: #{quantum_gnn_forward.1} parent=11 // pred_region
          _
        $region116: #{quantum_gnn_forward.1} parent=11 // pred_fallthru
          _
        // Predicated region
        $region117: #{quantum_gnn_forward.1} parent=11 // pred_check
          %p962 = pneg %p645
        $region118: #{quantum_gnn_forward.1} parent=11 // pred_check_branch
          %964 = sbr.rel (%p962) target = $region120
        $region119: #{quantum_gnn_forward.1} parent=11 // pred_region
          _
        $region120: #{quantum_gnn_forward.1} parent=11 // pred_fallthru
          _
        // Predicated region
        $region121: #{quantum_gnn_forward.1} parent=11 // pred_check
          %p965 = pneg %p666
        $region122: #{quantum_gnn_forward.1} parent=11 // pred_check_branch
          %967 = sbr.rel (%p965) target = $region124
        $region123: #{quantum_gnn_forward.1} parent=11 // pred_region
          _
        $region124: #{quantum_gnn_forward.1} parent=11 // pred_fallthru
          _
      $region12: #{quantum_gnn_forward.1} parent=5 // pred_fallthru
        _
      %p968 = scmp.lt.s32.totalorder %s78, 6
      // Predicated region
      $region125: #{quantum_gnn_forward.1} parent=5 // pred_check
        %p969 = pneg %p968
      $region126: #{quantum_gnn_forward.1} parent=5 // pred_check_branch
        %971 = sbr.rel (%p969) target = $region128
      $region127: #{quantum_gnn_forward.1} parent=5 // pred_region
        // Predicated region
        $region129: #{quantum_gnn_forward.1} parent=127 // pred_check
          %p972 = pneg %p686
        $region130: #{quantum_gnn_forward.1} parent=127 // pred_check_branch
          %974 = sbr.rel (%p972) target = $region132
        $region131: #{quantum_gnn_forward.1} parent=127 // pred_region
          %p975 = scmp.lt.s32.totalorder %s78, 5
          %s976 = scalar_select %p975, %s78, 5
          %s977 = smul.addr %s976, 28
          %s978 = smul.addr %s977, 4
          %s979 = scalar_lea.vmem %s57, %s978
        $region132: #{quantum_gnn_forward.1} parent=127 // pred_fallthru
          _
        // Predicated region
        $region133: #{quantum_gnn_forward.1} parent=127 // pred_check
          %p980 = pneg %p712
        $region134: #{quantum_gnn_forward.1} parent=127 // pred_check_branch
          %982 = sbr.rel (%p980) target = $region136
        $region135: #{quantum_gnn_forward.1} parent=127 // pred_region
          %p983 = scmp.lt.s32.totalorder %s78, 5
          %s984 = scalar_select %p983, %s78, 5
          %s985 = smul.addr %s984, 7
          %s986 = scalar_lea.vmem %s59, %s985
        $region136: #{quantum_gnn_forward.1} parent=127 // pred_fallthru
          _
        // Predicated region
        $region137: #{quantum_gnn_forward.1} parent=127 // pred_check
          %p987 = pneg %p738
        $region138: #{quantum_gnn_forward.1} parent=127 // pred_check_branch
          %989 = sbr.rel (%p987) target = $region140
        $region139: #{quantum_gnn_forward.1} parent=127 // pred_region
          %p990 = scmp.lt.s32.totalorder %s78, 5
          %s991 = scalar_select %p990, %s78, 5
          %s992 = smul.addr %s991, 8
          %s993 = smul.addr %s992, 4
          %s994 = scalar_lea.vmem %s61, %s993
        $region140: #{quantum_gnn_forward.1} parent=127 // pred_fallthru
          _
        // Predicated region
        $region141: #{quantum_gnn_forward.1} parent=127 // pred_check
          %p995 = pneg %p764
        $region142: #{quantum_gnn_forward.1} parent=127 // pred_check_branch
          %997 = sbr.rel (%p995) target = $region144
        $region143: #{quantum_gnn_forward.1} parent=127 // pred_region
          %p998 = scmp.lt.s32.totalorder %s78, 5
          %s999 = scalar_select %p998, %s78, 5
          %s1000 = scalar_lea.vmem %s63, %s999
        $region144: #{quantum_gnn_forward.1} parent=127 // pred_fallthru
          _
        // Predicated region
        $region145: #{quantum_gnn_forward.1} parent=127 // pred_check
          %p1001 = pneg %p790
        $region146: #{quantum_gnn_forward.1} parent=127 // pred_check_branch
          %1003 = sbr.rel (%p1001) target = $region148
        $region147: #{quantum_gnn_forward.1} parent=127 // pred_region
          %p1004 = scmp.lt.s32.totalorder %s78, 5
          %s1005 = scalar_select %p1004, %s78, 5
          %s1006 = scalar_lea.vmem %s65, %s1005
        $region148: #{quantum_gnn_forward.1} parent=127 // pred_fallthru
          _
        // Predicated region
        $region149: #{quantum_gnn_forward.1} parent=127 // pred_check
          %p1007 = pneg %p816
        $region150: #{quantum_gnn_forward.1} parent=127 // pred_check_branch
          %1009 = sbr.rel (%p1007) target = $region152
        $region151: #{quantum_gnn_forward.1} parent=127 // pred_region
          %p1010 = scmp.lt.s32.totalorder %s78, 5
          %s1011 = scalar_select %p1010, %s78, 5
          %s1012 = scalar_lea.vmem %s67, %s1011
        $region152: #{quantum_gnn_forward.1} parent=127 // pred_fallthru
          _
        // Predicated region
        $region153: #{quantum_gnn_forward.1} parent=127 // pred_check
          %p1013 = pneg %p842
        $region154: #{quantum_gnn_forward.1} parent=127 // pred_check_branch
          %1015 = sbr.rel (%p1013) target = $region156
        $region155: #{quantum_gnn_forward.1} parent=127 // pred_region
          %p1016 = scmp.lt.s32.totalorder %s78, 5
          %s1017 = scalar_select %p1016, %s78, 5
          %s1018 = scalar_lea.vmem %s69, %s1017
        $region156: #{quantum_gnn_forward.1} parent=127 // pred_fallthru
          _
      $region128: #{quantum_gnn_forward.1} parent=5 // pred_fallthru
        _
      %p1019 = scmp.le.s32.totalorder 1, %s78
      %p1020 = scmp.lt.s32.totalorder %s78, 7
      %p1021 = pnand %p1019, %p1020
      %p1022 = pneg %p1021
      // Predicated region
      $region157: #{quantum_gnn_forward.1} parent=5 // pred_check
        _
      $region158: #{quantum_gnn_forward.1} parent=5 // pred_check_branch
        %1024 = sbr.rel (%p1021) target = $region160
      $region159: #{quantum_gnn_forward.1} parent=5 // pred_region
        %s1025 = ssub.s32 %s78, 1
        %p1026 = pneg %p99
        %p1027 = pneg %p96
        %p1028 = pneg %p120
        %p1029 = pneg %p117
        %p1030 = pneg %p141
        %p1031 = pneg %p138
        %p1032 = pneg %p162
        %p1033 = pneg %p159
        %p1034 = pneg %p183
        %p1035 = pneg %p180
        %p1036 = pneg %p204
        %p1037 = pneg %p201
        %p1038 = pneg %p225
        %p1039 = pneg %p222
        %p1040 = pneg %p246
        %p1041 = pneg %p243
        %p1042 = pneg %p267
        %p1043 = pneg %p264
        %p1044 = pneg %p288
        %p1045 = pneg %p285
        %p1046 = pneg %p309
        %p1047 = pneg %p306
        %p1048 = pneg %p330
        %p1049 = pneg %p327
        %p1050 = pneg %p351
        %p1051 = pneg %p348
        %p1052 = pneg %p372
        %p1053 = pneg %p369
        %p1054 = pneg %p393
        %p1055 = pneg %p390
        %p1056 = pneg %p414
        %p1057 = pneg %p411
        %p1058 = pneg %p435
        %p1059 = pneg %p432
        %p1060 = pneg %p456
        %p1061 = pneg %p453
        %p1062 = pneg %p477
        %p1063 = pneg %p474
        %p1064 = pneg %p498
        %p1065 = pneg %p495
        %p1066 = pneg %p519
        %p1067 = pneg %p516
        %p1068 = pneg %p540
        %p1069 = pneg %p537
        %p1070 = pneg %p561
        %p1071 = pneg %p558
        %p1072 = pneg %p582
        %p1073 = pneg %p579
        %p1074 = pneg %p603
        %p1075 = pneg %p600
        %p1076 = pneg %p624
        %p1077 = pneg %p621
        %p1078 = pneg %p645
        %p1079 = pneg %p642
        %p1080 = pneg %p666
        %p1081 = pneg %p663
        %p1082 = scmp.lt.s32.totalorder %s83, 5
        %s1083 = scalar_select %p1082, %s83, 5
        %s1084 = smul.addr %s1083, 28
        %s1085 = smul.addr %s1084, 4
        %s1086 = scalar_lea.vmem %s57, %s1085
        %p1087 = pneg %p692
        %p1088 = pneg %p689
        %p1089 = scmp.lt.s32.totalorder %s83, 5
        %s1090 = scalar_select %p1089, %s83, 5
        %s1091 = smul.addr %s1090, 7
        %s1092 = scalar_lea.vmem %s59, %s1091
        %p1093 = pneg %p718
        %p1094 = pneg %p715
        %p1095 = scmp.lt.s32.totalorder %s83, 5
        %s1096 = scalar_select %p1095, %s83, 5
        %s1097 = smul.addr %s1096, 8
        %s1098 = smul.addr %s1097, 4
        %s1099 = scalar_lea.vmem %s61, %s1098
        %p1100 = pneg %p744
        %p1101 = pneg %p741
        %p1102 = scmp.lt.s32.totalorder %s83, 5
        %s1103 = scalar_select %p1102, %s83, 5
        %s1104 = scalar_lea.vmem %s63, %s1103
        %p1105 = pneg %p770
        %p1106 = pneg %p767
        %p1107 = scmp.lt.s32.totalorder %s83, 5
        %s1108 = scalar_select %p1107, %s83, 5
        %s1109 = scalar_lea.vmem %s65, %s1108
        %p1110 = pneg %p796
        %p1111 = pneg %p793
        %p1112 = scmp.lt.s32.totalorder %s83, 5
        %s1113 = scalar_select %p1112, %s83, 5
        %s1114 = scalar_lea.vmem %s67, %s1113
        %p1115 = pneg %p822
        %p1116 = pneg %p819
        %p1117 = scmp.lt.s32.totalorder %s83, 5
        %s1118 = scalar_select %p1117, %s83, 5
        %s1119 = scalar_lea.vmem %s69, %s1118
        %p1120 = pneg %p848
        %p1121 = pneg %p845
        %p1122 = pneg %p869
        %p1123 = pneg %p866
        %p1124 = scmp.lt.s32.totalorder %s83, 5
        %s1125 = scalar_select %p1124, %s83, 5
        %s1126 = smul.addr %s1125, 28
        %s1127 = smul.addr %s1126, 4
        %s1128 = scalar_lea.vmem %s57, %s1127
        %p1129 = scmp.lt.s32.totalorder %s83, 5
        %s1130 = scalar_select %p1129, %s83, 5
        %s1131 = smul.addr %s1130, 7
        %s1132 = scalar_lea.vmem %s59, %s1131
        %p1133 = scmp.lt.s32.totalorder %s83, 5
        %s1134 = scalar_select %p1133, %s83, 5
        %s1135 = smul.addr %s1134, 8
        %s1136 = smul.addr %s1135, 4
        %s1137 = scalar_lea.vmem %s61, %s1136
        %p1138 = scmp.lt.s32.totalorder %s83, 5
        %s1139 = scalar_select %p1138, %s83, 5
        %s1140 = scalar_lea.vmem %s63, %s1139
        %p1141 = scmp.lt.s32.totalorder %s83, 5
        %s1142 = scalar_select %p1141, %s83, 5
        %s1143 = scalar_lea.vmem %s65, %s1142
        %p1144 = scmp.lt.s32.totalorder %s83, 5
        %s1145 = scalar_select %p1144, %s83, 5
        %s1146 = scalar_lea.vmem %s67, %s1145
        %p1147 = scmp.lt.s32.totalorder %s83, 5
        %s1148 = scalar_select %p1147, %s83, 5
        %s1149 = scalar_lea.vmem %s69, %s1148
        %p1153 = scmp.eq.s32.totalorder %s83, 0
        // Predicated region
        $region161: #{quantum_gnn_forward.1} parent=159 // pred_check
          %p1154 = pneg %p1153
        $region162: #{quantum_gnn_forward.1} parent=159 // pred_check_branch
          %1156 = sbr.rel (%p1154) target = $region164
        $region163: #{quantum_gnn_forward.1} parent=159 // pred_region
          %v1157 = vld [vmem:[%s1] sm:$0xff]
          %v1158 = vld [vmem:[%s1 + $0x8] sm:$0xff]
          %v1159 = vpack.c.bf16 %v1158, %v1157
          %v1160 = vld [vmem:[%s7] sm:$0x3]
          %v1161 = vld [vmem:[%s9] sm:$0x1]
          %v1163 = vlaneseq
          %v1164 = vshrl.u32 %v1163, 7
          %v1165 = vsub.s32 0, %v1164
          %v1166 = vrot.slane %v1161, %v1165
          %vm1168 = vcmask 31744
          %v1170 = vsel %vm1168, %v1159, 0
          %vm1172 = vcmask 1041408
          %v1174 = vsel %vm1172, %v1160, 0
          %1176 = vmatprep.subr.bf16.mxu0 0
          %1177 = vmatpush1.bf16.msra.mxu0 %v1174
          %1178 = vmatprep.subr.bf16.mxu0 0
          %1179 = vmatpush1.bf16.msra.mxu0 0
          %1180 = vmatprep.subr.bf16.mxu0 0
          %1181 = vmatpush1.bf16.msra.mxu0 0
          %1182 = vmatprep.subr.bf16.mxu0 0
          %1183 = vmatpush1.bf16.msra.mxu0 0
          %1184 = vmatprep.subr.bf16.mxu0 0
          %1185 = vmatpush1.bf16.msra.mxu0 0
          %1186 = vmatprep.subr.bf16.mxu0 0
          %1187 = vmatpush1.bf16.msra.mxu0 0
          %1188 = vmatprep.subr.bf16.mxu0 0
          %1189 = vmatpush1.bf16.msra.mxu0 0
          %1190 = vmatprep.subr.bf16.mxu0 0
          %1191 = vmatpush1.bf16.msra.mxu0 0
          %1192 = vmatprep.subr.bf16.mxu0 0
          %1193 = vmatpush1.bf16.msra.mxu0 0
          %1194 = vmatprep.subr.bf16.mxu0 0
          %1195 = vmatpush1.bf16.msra.mxu0 0
          %1196 = vmatprep.subr.bf16.mxu0 0
          %1197 = vmatpush1.bf16.msra.mxu0 0
          %1198 = vmatprep.subr.bf16.mxu0 0
          %1199 = vmatpush1.bf16.msra.mxu0 0
          %1200 = vmatprep.subr.bf16.mxu0 0
          %1201 = vmatpush1.bf16.msra.mxu0 0
          %1202 = vmatprep.subr.bf16.mxu0 0
          %1203 = vmatpush1.bf16.msra.mxu0 0
          %1204 = vmatprep.subr.bf16.mxu0 0
          %1205 = vmatpush1.bf16.msra.mxu0 0
          %1206 = vmatprep.subr.bf16.mxu0 0
          %1207 = vmatpush1.bf16.msra.mxu0 0
          %1208 = vmatprep.mubr.bf16.mxu0 0
          %1209 = vmatmul.mubr.bf16.gmra.mrb[0].mxu0 %v1170
          %v1210 = vpop.f32.mrb[0].mxu0
          %v1211 = vadd.f32 %v1166, %v1210
          %v1212 = vpop.f32.mrb[0].mxu0
          %v1213 = vpop.f32.mrb[0].mxu0
          %v1214 = vadd.f32 %v1166, %v1213
          %v1215 = vpop.f32.mrb[0].mxu0
          %1216 = vdwg.mxu0
          %v1217 = vld [vmem:[%s3] sm:$0xff]
          %v1218 = vld [vmem:[%s3 + $0x8] sm:$0xff]
          %v1219 = vld [vmem:[%s11] sm:$0x7]
          %vm1220 = vcmask 23552
          %v1222 = vsel %vm1220, %v1217, 0
          %v1225 = vsel %vm1220, %v1218, 0
          %vm1227 = vcmask 1042432
          %v1229 = vsel %vm1227, %v1219, 0
          %1231 = vmatprep.subr.mxu0 0.0
          %1232 = vmatpush1.msra.mxu0 %v1229
          %1233 = vmatprep.subr.mxu0 0.0
          %1234 = vmatpush1.msra.mxu0 0.0
          %1235 = vmatprep.subr.mxu0 0.0
          %1236 = vmatpush1.msra.mxu0 0.0
          %1237 = vmatprep.subr.mxu0 0.0
          %1238 = vmatpush1.msra.mxu0 0.0
          %1239 = vmatprep.subr.mxu0 0.0
          %1240 = vmatpush1.msra.mxu0 0.0
          %1241 = vmatprep.subr.mxu0 0.0
          %1242 = vmatpush1.msra.mxu0 0.0
          %1243 = vmatprep.subr.mxu0 0.0
          %1244 = vmatpush1.msra.mxu0 0.0
          %1245 = vmatprep.subr.mxu0 0.0
          %1246 = vmatpush1.msra.mxu0 0.0
          %1247 = vmatprep.subr.mxu0 0.0
          %1248 = vmatpush1.msra.mxu0 0.0
          %1249 = vmatprep.subr.mxu0 0.0
          %1250 = vmatpush1.msra.mxu0 0.0
          %1251 = vmatprep.subr.mxu0 0.0
          %1252 = vmatpush1.msra.mxu0 0.0
          %1253 = vmatprep.subr.mxu0 0.0
          %1254 = vmatpush1.msra.mxu0 0.0
          %1255 = vmatprep.subr.mxu0 0.0
          %1256 = vmatpush1.msra.mxu0 0.0
          %1257 = vmatprep.subr.mxu0 0.0
          %1258 = vmatpush1.msra.mxu0 0.0
          %1259 = vmatprep.subr.mxu0 0.0
          %1260 = vmatpush1.msra.mxu0 0.0
          %1261 = vmatprep.subr.mxu0 0.0
          %1262 = vmatpush1.msra.mxu0 0.0
          %1263 = vmatprep.subr.mxu0 0.0
          %1264 = vmatpush1.msra.mxu0 0.0
          %1265 = vmatprep.subr.mxu0 0.0
          %1266 = vmatpush1.msra.mxu0 0.0
          %1267 = vmatprep.subr.mxu0 0.0
          %1268 = vmatpush1.msra.mxu0 0.0
          %1269 = vmatprep.subr.mxu0 0.0
          %1270 = vmatpush1.msra.mxu0 0.0
          %1271 = vmatprep.subr.mxu0 0.0
          %1272 = vmatpush1.msra.mxu0 0.0
          %1273 = vmatprep.subr.mxu0 0.0
          %1274 = vmatpush1.msra.mxu0 0.0
          %1275 = vmatprep.subr.mxu0 0.0
          %1276 = vmatpush1.msra.mxu0 0.0
          %1277 = vmatprep.subr.mxu0 0.0
          %1278 = vmatpush1.msra.mxu0 0.0
          %1279 = vmatprep.subr.mxu0 0.0
          %1280 = vmatpush1.msra.mxu0 0.0
          %1281 = vmatprep.subr.mxu0 0.0
          %1282 = vmatpush1.msra.mxu0 0.0
          %1283 = vmatprep.subr.mxu0 0.0
          %1284 = vmatpush1.msra.mxu0 0.0
          %1285 = vmatprep.subr.mxu0 0.0
          %1286 = vmatpush1.msra.mxu0 0.0
          %1287 = vmatprep.subr.mxu0 0.0
          %1288 = vmatpush1.msra.mxu0 0.0
          %1289 = vmatprep.subr.mxu0 0.0
          %1290 = vmatpush1.msra.mxu0 0.0
          %1291 = vmatprep.subr.mxu0 0.0
          %1292 = vmatpush1.msra.mxu0 0.0
          %1293 = vmatprep.subr.mxu0 0.0
          %1294 = vmatpush1.msra.mxu0 0.0
          %1295 = vmatprep.mubr.f32.mxu0 0.0
          %1296 = vmatmul.mubr.f32.gmra.mrb[0].mxu0 %v1222
          %v1297 = vpop.f32.mrb[0].mxu0
          %v1298 = vadd.f32 0.0, %v1297
          %v1299 = vpop.f32.mrb[0].mxu0
          %1300 = vmatprep.mubr.f32.mxu0 0.0
          %1301 = vmatmul.mubr.f32.gmra.mrb[0].mxu0 %v1225
          %v1302 = vpop.f32.mrb[0].mxu0
          %v1303 = vadd.f32 0.0, %v1302
          %v1304 = vpop.f32.mrb[0].mxu0
          %1305 = vdwg.mxu0
          %v1306 = vand.u32 2147483647, %v1298
          %vm1307 = vcmp.le.f32.partialorder %v1306, 0.7853982
          %vm1308 = vcmp.lt.s32.totalorder %v1298, 0
          %v1309 = vand.u32 %v1298, 2139095040
          %v1310 = vshrl.u32 %v1309, 23
          %v1311 = vsub.s32 %v1310, 127
          %v1312 = vand.u32 2147483647, %v1298
          %v1313 = vand.u32 %v1312, 8388607
          %v1314 = vor.u32 %v1313, 8388608
          %v1315 = vsub.s32 0, %v1314
          %v1316 = vadd.s32 %v1311, 1
          %vm1317 = vcmp.gt.s32.totalorder %v1316, 0
          %v1318 = vsel %vm1317, %v1316, 0
          %v1319 = vshrl.u32 %v1318, 5
          %v1320 = vand.u32 %v1318, 31
          %v1321 = vsub.s32 32, %v1320
          %v1322 = vshrl.u32 683565275, %v1321
          %v1323 = vshll.u32 683565275, %v1320
          %v1324 = vshrl.u32 2475754826, %v1321
          %v1325 = vor.u32 %v1323, %v1324
          %v1326 = vshll.u32 2475754826, %v1320
          %v1327 = vshrl.u32 2131351028, %v1321
          %v1328 = vor.u32 %v1326, %v1327
          %v1329 = vshll.u32 2131351028, %v1320
          %v1330 = vshrl.u32 2102212464, %v1321
          %v1331 = vor.u32 %v1329, %v1330
          %v1332 = vshll.u32 2102212464, %v1320
          %v1333 = vshrl.u32 920167782, %v1321
          %v1334 = vor.u32 %v1332, %v1333
          %v1335 = vshll.u32 920167782, %v1320
          %v1336 = vshrl.u32 1326507024, %v1321
          %v1337 = vor.u32 %v1335, %v1336
          %vm1338 = vcmp.lt.s32.totalorder %v1319, 1
          %vm1339 = vcmp.lt.s32.totalorder %v1319, 2
          %vm1340 = vcmp.lt.s32.totalorder %v1319, 3
          %vm1341 = vcmp.lt.s32.totalorder %v1319, 4
          %v1342 = vsel %vm1338, %v1322, %v1325
          %v1343 = vsel %vm1341, %v1331, 2102212464
          %v1344 = vsel %vm1340, %v1328, %v1343
          %v1345 = vsel %vm1339, %v1342, %v1344
          %v1346 = vsel %vm1338, %v1325, %v1328
          %v1347 = vsel %vm1341, %v1334, 920167782
          %v1348 = vsel %vm1340, %v1331, %v1347
          %v1349 = vsel %vm1339, %v1346, %v1348
          %v1350 = vsel %vm1338, %v1328, %v1331
          %v1351 = vsel %vm1341, %v1337, 1326507024
          %v1352 = vsel %vm1340, %v1334, %v1351
          %v1353 = vsel %vm1339, %v1350, %v1352
          %v1354 = vshll.u32 %v1314, 8
          %v1355 = vmul.u32.u64.compose %v1354, %v1353
          %v1356 = vextract.low.u32 %v1355
          %v1357 = vextract.high.u32 %v1355
          %v1358 = vmul.u32.u64.compose %v1354, %v1349
          %v1359 = vextract.low.u32 %v1358
          %v1360 = vextract.high.u32 %v1358
          %v1361 = vmul.u32 %v1354, %v1345
          %v1362 = vadd.s32 %v1357, %v1359
          %vm1363 = vc.u32 %v1357, %v1359
          %v1364 = vadd.s32 %v1360, 1
          %v1365 = vsel %vm1363, %v1364, %v1360
          %v1366 = vadd.s32 %v1361, %v1365
          %v1367 = vadd.s32 %v1366, 536870912
          %v1368 = vshrl.u32 %v1367, 30
          %v1369 = vshll.u32 %v1368, 30
          %v1370 = vsub.s32 %v1366, %v1369
          %vm1371 = vcmp.lt.s32.totalorder %v1370, 0
          %v1372 = vsub.s32 0, %v1370
          %v1373 = vsel %vm1371, %v1372, %v1370
          %v1374 = vclz %v1373
          %v1375 = vsub.s32 %v1374, 2
          %vm1376 = vcmp.gt.s32.totalorder 0, %v1375
          %v1377 = vsel %vm1376, 0, %v1375
          %v1378 = vsub.s32 32, %v1377
          %v1379 = vshll.u32 %v1370, %v1377
          %v1380 = vshrl.u32 %v1362, %v1378
          %v1381 = vor.u32 %v1379, %v1380
          %v1382 = vsub.s32 4294967266, %v1377
          %v1383 = vadd.s32 %v1382, 127
          %v1384 = vshll.u32 %v1383, 23
          %v1385 = vor.u32 4788187, %v1384
          %v1386 = vand.u32 2147483647, %v1385
          %v1388 = vcvt.s32.f32 %v1381
          %v1389 = vmul.f32 %v1388, %v1386
          %v1390 = vxor.u32 %v1389, 2147483648
          %v1391 = vsel %vm1308, %v1390, %v1389
          %v1392 = vsub.s32 4, %v1368
          %v1393 = vsel %vm1308, %v1392, %v1368
          %v1394 = vsel %vm1307, %v1298, %v1391
          %v1395 = vsel %vm1307, 0, %v1393
          %v1396 = vcosq.f32.pop %v1394
          %v1397 = vsinq.f32.pop %v1394
          %vm1398 = vweird.f32 %v1298
          %v1399 = vadd.s32 %v1395, 3
          %v1400 = vand.u32 %v1399, 3
          %vm1401 = vcmp.lt.s32.totalorder %v1400, 2
          %vm1402 = vcmp.eq.s32.totalorder %v1400, 0
          %v1403 = vxor.u32 %v1397, 2147483648
          %v1404 = vsel %vm1402, %v1396, %v1403
          %vm1405 = vcmp.eq.s32.totalorder %v1400, 2
          %v1406 = vxor.u32 %v1396, 2147483648
          %v1407 = vsel %vm1405, %v1406, %v1397
          %v1408 = vsel %vm1401, %v1404, %v1407
          %v1409 = vsel %vm1398, nan, %v1408
          %v1410 = vand.u32 2147483647, %v1303
          %vm1411 = vcmp.le.f32.partialorder %v1410, 0.7853982
          %vm1412 = vcmp.lt.s32.totalorder %v1303, 0
          %v1413 = vand.u32 %v1303, 2139095040
          %v1414 = vshrl.u32 %v1413, 23
          %v1415 = vsub.s32 %v1414, 127
          %v1416 = vand.u32 2147483647, %v1303
          %v1417 = vand.u32 %v1416, 8388607
          %v1418 = vor.u32 %v1417, 8388608
          %v1419 = vsub.s32 0, %v1418
          %v1420 = vadd.s32 %v1415, 1
          %vm1421 = vcmp.gt.s32.totalorder %v1420, 0
          %v1422 = vsel %vm1421, %v1420, 0
          %v1423 = vshrl.u32 %v1422, 5
          %v1424 = vand.u32 %v1422, 31
          %v1425 = vsub.s32 32, %v1424
          %v1426 = vshrl.u32 683565275, %v1425
          %v1427 = vshll.u32 683565275, %v1424
          %v1428 = vshrl.u32 2475754826, %v1425
          %v1429 = vor.u32 %v1427, %v1428
          %v1430 = vshll.u32 2475754826, %v1424
          %v1431 = vshrl.u32 2131351028, %v1425
          %v1432 = vor.u32 %v1430, %v1431
          %v1433 = vshll.u32 2131351028, %v1424
          %v1434 = vshrl.u32 2102212464, %v1425
          %v1435 = vor.u32 %v1433, %v1434
          %v1436 = vshll.u32 2102212464, %v1424
          %v1437 = vshrl.u32 920167782, %v1425
          %v1438 = vor.u32 %v1436, %v1437
          %v1439 = vshll.u32 920167782, %v1424
          %v1440 = vshrl.u32 1326507024, %v1425
          %v1441 = vor.u32 %v1439, %v1440
          %vm1442 = vcmp.lt.s32.totalorder %v1423, 1
          %vm1443 = vcmp.lt.s32.totalorder %v1423, 2
          %vm1444 = vcmp.lt.s32.totalorder %v1423, 3
          %vm1445 = vcmp.lt.s32.totalorder %v1423, 4
          %v1446 = vsel %vm1442, %v1426, %v1429
          %v1447 = vsel %vm1445, %v1435, 2102212464
          %v1448 = vsel %vm1444, %v1432, %v1447
          %v1449 = vsel %vm1443, %v1446, %v1448
          %v1450 = vsel %vm1442, %v1429, %v1432
          %v1451 = vsel %vm1445, %v1438, 920167782
          %v1452 = vsel %vm1444, %v1435, %v1451
          %v1453 = vsel %vm1443, %v1450, %v1452
          %v1454 = vsel %vm1442, %v1432, %v1435
          %v1455 = vsel %vm1445, %v1441, 1326507024
          %v1456 = vsel %vm1444, %v1438, %v1455
          %v1457 = vsel %vm1443, %v1454, %v1456
          %v1458 = vshll.u32 %v1418, 8
          %v1459 = vmul.u32.u64.compose %v1458, %v1457
          %v1460 = vextract.low.u32 %v1459
          %v1461 = vextract.high.u32 %v1459
          %v1462 = vmul.u32.u64.compose %v1458, %v1453
          %v1463 = vextract.low.u32 %v1462
          %v1464 = vextract.high.u32 %v1462
          %v1465 = vmul.u32 %v1458, %v1449
          %v1466 = vadd.s32 %v1461, %v1463
          %vm1467 = vc.u32 %v1461, %v1463
          %v1468 = vadd.s32 %v1464, 1
          %v1469 = vsel %vm1467, %v1468, %v1464
          %v1470 = vadd.s32 %v1465, %v1469
          %v1471 = vadd.s32 %v1470, 536870912
          %v1472 = vshrl.u32 %v1471, 30
          %v1473 = vshll.u32 %v1472, 30
          %v1474 = vsub.s32 %v1470, %v1473
          %vm1475 = vcmp.lt.s32.totalorder %v1474, 0
          %v1476 = vsub.s32 0, %v1474
          %v1477 = vsel %vm1475, %v1476, %v1474
          %v1478 = vclz %v1477
          %v1479 = vsub.s32 %v1478, 2
          %vm1480 = vcmp.gt.s32.totalorder 0, %v1479
          %v1481 = vsel %vm1480, 0, %v1479
          %v1482 = vsub.s32 32, %v1481
          %v1483 = vshll.u32 %v1474, %v1481
          %v1484 = vshrl.u32 %v1466, %v1482
          %v1485 = vor.u32 %v1483, %v1484
          %v1486 = vsub.s32 4294967266, %v1481
          %v1487 = vadd.s32 %v1486, 127
          %v1488 = vshll.u32 %v1487, 23
          %v1489 = vor.u32 4788187, %v1488
          %v1490 = vand.u32 2147483647, %v1489
          %v1492 = vcvt.s32.f32 %v1485
          %v1493 = vmul.f32 %v1492, %v1490
          %v1494 = vxor.u32 %v1493, 2147483648
          %v1495 = vsel %vm1412, %v1494, %v1493
          %v1496 = vsub.s32 4, %v1472
          %v1497 = vsel %vm1412, %v1496, %v1472
          %v1498 = vsel %vm1411, %v1303, %v1495
          %v1499 = vsel %vm1411, 0, %v1497
          %v1500 = vcosq.f32.pop %v1498
          %v1501 = vsinq.f32.pop %v1498
          %vm1502 = vweird.f32 %v1303
          %v1503 = vadd.s32 %v1499, 3
          %v1504 = vand.u32 %v1503, 3
          %vm1505 = vcmp.lt.s32.totalorder %v1504, 2
          %vm1506 = vcmp.eq.s32.totalorder %v1504, 0
          %v1507 = vxor.u32 %v1501, 2147483648
          %v1508 = vsel %vm1506, %v1500, %v1507
          %vm1509 = vcmp.eq.s32.totalorder %v1504, 2
          %v1510 = vxor.u32 %v1500, 2147483648
          %v1511 = vsel %vm1509, %v1510, %v1501
          %v1512 = vsel %vm1505, %v1508, %v1511
          %v1513 = vsel %vm1502, nan, %v1512
          %v1514 = vld [vmem:[%s13] sm:$0xff]
          %v1515 = vld [vmem:[%s13 + $0x8] sm:$0x7f]
          %vm1516 = vcmask 121856
          %v1518 = vsel %vm1516, %v1409, 0
          %v1521 = vsel %vm1516, %v1513, 0
          %vm1523 = vcmask 1046528
          %v1525 = vsel %vm1523, %v1515, 0
          %1527 = vmatprep.subr.mxu0 0.0
          %1528 = vmatpush1.msra.mxu0 %v1514
          %1529 = vmatprep.subr.mxu0 0.0
          %1530 = vmatpush1.msra.mxu0 %v1525
          %1531 = vmatprep.subr.mxu0 0.0
          %1532 = vmatpush1.msra.mxu0 0.0
          %1533 = vmatprep.subr.mxu0 0.0
          %1534 = vmatpush1.msra.mxu0 0.0
          %1535 = vmatprep.subr.mxu0 0.0
          %1536 = vmatpush1.msra.mxu0 0.0
          %1537 = vmatprep.subr.mxu0 0.0
          %1538 = vmatpush1.msra.mxu0 0.0
          %1539 = vmatprep.subr.mxu0 0.0
          %1540 = vmatpush1.msra.mxu0 0.0
          %1541 = vmatprep.subr.mxu0 0.0
          %1542 = vmatpush1.msra.mxu0 0.0
          %1543 = vmatprep.subr.mxu0 0.0
          %1544 = vmatpush1.msra.mxu0 0.0
          %1545 = vmatprep.subr.mxu0 0.0
          %1546 = vmatpush1.msra.mxu0 0.0
          %1547 = vmatprep.subr.mxu0 0.0
          %1548 = vmatpush1.msra.mxu0 0.0
          %1549 = vmatprep.subr.mxu0 0.0
          %1550 = vmatpush1.msra.mxu0 0.0
          %1551 = vmatprep.subr.mxu0 0.0
          %1552 = vmatpush1.msra.mxu0 0.0
          %1553 = vmatprep.subr.mxu0 0.0
          %1554 = vmatpush1.msra.mxu0 0.0
          %1555 = vmatprep.subr.mxu0 0.0
          %1556 = vmatpush1.msra.mxu0 0.0
          %1557 = vmatprep.subr.mxu0 0.0
          %1558 = vmatpush1.msra.mxu0 0.0
          %1559 = vmatprep.subr.mxu0 0.0
          %1560 = vmatpush1.msra.mxu0 0.0
          %1561 = vmatprep.subr.mxu0 0.0
          %1562 = vmatpush1.msra.mxu0 0.0
          %1563 = vmatprep.subr.mxu0 0.0
          %1564 = vmatpush1.msra.mxu0 0.0
          %1565 = vmatprep.subr.mxu0 0.0
          %1566 = vmatpush1.msra.mxu0 0.0
          %1567 = vmatprep.subr.mxu0 0.0
          %1568 = vmatpush1.msra.mxu0 0.0
          %1569 = vmatprep.subr.mxu0 0.0
          %1570 = vmatpush1.msra.mxu0 0.0
          %1571 = vmatprep.subr.mxu0 0.0
          %1572 = vmatpush1.msra.mxu0 0.0
          %1573 = vmatprep.subr.mxu0 0.0
          %1574 = vmatpush1.msra.mxu0 0.0
          %1575 = vmatprep.subr.mxu0 0.0
          %1576 = vmatpush1.msra.mxu0 0.0
          %1577 = vmatprep.subr.mxu0 0.0
          %1578 = vmatpush1.msra.mxu0 0.0
          %1579 = vmatprep.subr.mxu0 0.0
          %1580 = vmatpush1.msra.mxu0 0.0
          %1581 = vmatprep.subr.mxu0 0.0
          %1582 = vmatpush1.msra.mxu0 0.0
          %1583 = vmatprep.subr.mxu0 0.0
          %1584 = vmatpush1.msra.mxu0 0.0
          %1585 = vmatprep.subr.mxu0 0.0
          %1586 = vmatpush1.msra.mxu0 0.0
          %1587 = vmatprep.subr.mxu0 0.0
          %1588 = vmatpush1.msra.mxu0 0.0
          %1589 = vmatprep.subr.mxu0 0.0
          %1590 = vmatpush1.msra.mxu0 0.0
          %1591 = vmatprep.mubr.f32.mxu0 0.0
          %1592 = vmatmul.mubr.f32.gmra.mrb[0].mxu0 %v1518
          %v1593 = vpop.f32.mrb[0].mxu0
          %v1594 = vadd.f32 0.0, %v1593
          %v1595 = vpop.f32.mrb[0].mxu0
          %1596 = vmatprep.mubr.f32.mxu0 0.0
          %1597 = vmatmul.mubr.f32.gmra.mrb[0].mxu0 %v1521
          %v1598 = vpop.f32.mrb[0].mxu0
          %v1599 = vadd.f32 0.0, %v1598
          %v1600 = vpop.f32.mrb[0].mxu0
          %1601 = vdwg.mxu0
          %v1602 = vadd.f32 %v1211, %v1594
          %v1603 = vadd.f32 %v1214, %v1599
          %v1604 = vand.u32 2147483647, %v1298
          %vm1605 = vcmp.le.f32.partialorder %v1604, 0.7853982
          %vm1606 = vcmp.lt.s32.totalorder %v1298, 0
          %v1607 = vand.u32 %v1298, 2139095040
          %v1608 = vshrl.u32 %v1607, 23
          %v1609 = vsub.s32 %v1608, 127
          %v1610 = vand.u32 2147483647, %v1298
          %v1611 = vand.u32 %v1610, 8388607
          %v1612 = vor.u32 %v1611, 8388608
          %v1613 = vsub.s32 0, %v1612
          %v1614 = vadd.s32 %v1609, 1
          %vm1615 = vcmp.gt.s32.totalorder %v1614, 0
          %v1616 = vsel %vm1615, %v1614, 0
          %v1617 = vshrl.u32 %v1616, 5
          %v1618 = vand.u32 %v1616, 31
          %v1619 = vsub.s32 32, %v1618
          %v1620 = vshrl.u32 683565275, %v1619
          %v1621 = vshll.u32 683565275, %v1618
          %v1622 = vshrl.u32 2475754826, %v1619
          %v1623 = vor.u32 %v1621, %v1622
          %v1624 = vshll.u32 2475754826, %v1618
          %v1625 = vshrl.u32 2131351028, %v1619
          %v1626 = vor.u32 %v1624, %v1625
          %v1627 = vshll.u32 2131351028, %v1618
          %v1628 = vshrl.u32 2102212464, %v1619
          %v1629 = vor.u32 %v1627, %v1628
          %v1630 = vshll.u32 2102212464, %v1618
          %v1631 = vshrl.u32 920167782, %v1619
          %v1632 = vor.u32 %v1630, %v1631
          %v1633 = vshll.u32 920167782, %v1618
          %v1634 = vshrl.u32 1326507024, %v1619
          %v1635 = vor.u32 %v1633, %v1634
          %vm1636 = vcmp.lt.s32.totalorder %v1617, 1
          %vm1637 = vcmp.lt.s32.totalorder %v1617, 2
          %vm1638 = vcmp.lt.s32.totalorder %v1617, 3
          %vm1639 = vcmp.lt.s32.totalorder %v1617, 4
          %v1640 = vsel %vm1636, %v1620, %v1623
          %v1641 = vsel %vm1639, %v1629, 2102212464
          %v1642 = vsel %vm1638, %v1626, %v1641
          %v1643 = vsel %vm1637, %v1640, %v1642
          %v1644 = vsel %vm1636, %v1623, %v1626
          %v1645 = vsel %vm1639, %v1632, 920167782
          %v1646 = vsel %vm1638, %v1629, %v1645
          %v1647 = vsel %vm1637, %v1644, %v1646
          %v1648 = vsel %vm1636, %v1626, %v1629
          %v1649 = vsel %vm1639, %v1635, 1326507024
          %v1650 = vsel %vm1638, %v1632, %v1649
          %v1651 = vsel %vm1637, %v1648, %v1650
          %v1652 = vshll.u32 %v1612, 8
          %v1653 = vmul.u32.u64.compose %v1652, %v1651
          %v1654 = vextract.low.u32 %v1653
          %v1655 = vextract.high.u32 %v1653
          %v1656 = vmul.u32.u64.compose %v1652, %v1647
          %v1657 = vextract.low.u32 %v1656
          %v1658 = vextract.high.u32 %v1656
          %v1659 = vmul.u32 %v1652, %v1643
          %v1660 = vadd.s32 %v1655, %v1657
          %vm1661 = vc.u32 %v1655, %v1657
          %v1662 = vadd.s32 %v1658, 1
          %v1663 = vsel %vm1661, %v1662, %v1658
          %v1664 = vadd.s32 %v1659, %v1663
          %v1665 = vadd.s32 %v1664, 536870912
          %v1666 = vshrl.u32 %v1665, 30
          %v1667 = vshll.u32 %v1666, 30
          %v1668 = vsub.s32 %v1664, %v1667
          %vm1669 = vcmp.lt.s32.totalorder %v1668, 0
          %v1670 = vsub.s32 0, %v1668
          %v1671 = vsel %vm1669, %v1670, %v1668
          %v1672 = vclz %v1671
          %v1673 = vsub.s32 %v1672, 2
          %vm1674 = vcmp.gt.s32.totalorder 0, %v1673
          %v1675 = vsel %vm1674, 0, %v1673
          %v1676 = vsub.s32 32, %v1675
          %v1677 = vshll.u32 %v1668, %v1675
          %v1678 = vshrl.u32 %v1660, %v1676
          %v1679 = vor.u32 %v1677, %v1678
          %v1680 = vsub.s32 4294967266, %v1675
          %v1681 = vadd.s32 %v1680, 127
          %v1682 = vshll.u32 %v1681, 23
          %v1683 = vor.u32 4788187, %v1682
          %v1684 = vand.u32 2147483647, %v1683
          %v1686 = vcvt.s32.f32 %v1679
          %v1687 = vmul.f32 %v1686, %v1684
          %v1688 = vxor.u32 %v1687, 2147483648
          %v1689 = vsel %vm1606, %v1688, %v1687
          %v1690 = vsub.s32 4, %v1666
          %v1691 = vsel %vm1606, %v1690, %v1666
          %v1692 = vsel %vm1605, %v1298, %v1689
          %v1693 = vsel %vm1605, 0, %v1691
          %v1694 = vcosq.f32.pop %v1692
          %v1695 = vsinq.f32.pop %v1692
          %vm1696 = vweird.f32 %v1298
          %v1697 = vand.u32 %v1693, 3
          %vm1698 = vcmp.lt.s32.totalorder %v1697, 2
          %vm1699 = vcmp.eq.s32.totalorder %v1697, 0
          %v1700 = vxor.u32 %v1695, 2147483648
          %v1701 = vsel %vm1699, %v1694, %v1700
          %vm1702 = vcmp.eq.s32.totalorder %v1697, 2
          %v1703 = vxor.u32 %v1694, 2147483648
          %v1704 = vsel %vm1702, %v1703, %v1695
          %v1705 = vsel %vm1698, %v1701, %v1704
          %v1706 = vsel %vm1696, nan, %v1705
          %v1707 = vand.u32 2147483647, %v1303
          %vm1708 = vcmp.le.f32.partialorder %v1707, 0.7853982
          %vm1709 = vcmp.lt.s32.totalorder %v1303, 0
          %v1710 = vand.u32 %v1303, 2139095040
          %v1711 = vshrl.u32 %v1710, 23
          %v1712 = vsub.s32 %v1711, 127
          %v1713 = vand.u32 2147483647, %v1303
          %v1714 = vand.u32 %v1713, 8388607
          %v1715 = vor.u32 %v1714, 8388608
          %v1716 = vsub.s32 0, %v1715
          %v1717 = vadd.s32 %v1712, 1
          %vm1718 = vcmp.gt.s32.totalorder %v1717, 0
          %v1719 = vsel %vm1718, %v1717, 0
          %v1720 = vshrl.u32 %v1719, 5
          %v1721 = vand.u32 %v1719, 31
          %v1722 = vsub.s32 32, %v1721
          %v1723 = vshrl.u32 683565275, %v1722
          %v1724 = vshll.u32 683565275, %v1721
          %v1725 = vshrl.u32 2475754826, %v1722
          %v1726 = vor.u32 %v1724, %v1725
          %v1727 = vshll.u32 2475754826, %v1721
          %v1728 = vshrl.u32 2131351028, %v1722
          %v1729 = vor.u32 %v1727, %v1728
          %v1730 = vshll.u32 2131351028, %v1721
          %v1731 = vshrl.u32 2102212464, %v1722
          %v1732 = vor.u32 %v1730, %v1731
          %v1733 = vshll.u32 2102212464, %v1721
          %v1734 = vshrl.u32 920167782, %v1722
          %v1735 = vor.u32 %v1733, %v1734
          %v1736 = vshll.u32 920167782, %v1721
          %v1737 = vshrl.u32 1326507024, %v1722
          %v1738 = vor.u32 %v1736, %v1737
          %vm1739 = vcmp.lt.s32.totalorder %v1720, 1
          %vm1740 = vcmp.lt.s32.totalorder %v1720, 2
          %vm1741 = vcmp.lt.s32.totalorder %v1720, 3
          %vm1742 = vcmp.lt.s32.totalorder %v1720, 4
          %v1743 = vsel %vm1739, %v1723, %v1726
          %v1744 = vsel %vm1742, %v1732, 2102212464
          %v1745 = vsel %vm1741, %v1729, %v1744
          %v1746 = vsel %vm1740, %v1743, %v1745
          %v1747 = vsel %vm1739, %v1726, %v1729
          %v1748 = vsel %vm1742, %v1735, 920167782
          %v1749 = vsel %vm1741, %v1732, %v1748
          %v1750 = vsel %vm1740, %v1747, %v1749
          %v1751 = vsel %vm1739, %v1729, %v1732
          %v1752 = vsel %vm1742, %v1738, 1326507024
          %v1753 = vsel %vm1741, %v1735, %v1752
          %v1754 = vsel %vm1740, %v1751, %v1753
          %v1755 = vshll.u32 %v1715, 8
          %v1756 = vmul.u32.u64.compose %v1755, %v1754
          %v1757 = vextract.low.u32 %v1756
          %v1758 = vextract.high.u32 %v1756
          %v1759 = vmul.u32.u64.compose %v1755, %v1750
          %v1760 = vextract.low.u32 %v1759
          %v1761 = vextract.high.u32 %v1759
          %v1762 = vmul.u32 %v1755, %v1746
          %v1763 = vadd.s32 %v1758, %v1760
          %vm1764 = vc.u32 %v1758, %v1760
          %v1765 = vadd.s32 %v1761, 1
          %v1766 = vsel %vm1764, %v1765, %v1761
          %v1767 = vadd.s32 %v1762, %v1766
          %v1768 = vadd.s32 %v1767, 536870912
          %v1769 = vshrl.u32 %v1768, 30
          %v1770 = vshll.u32 %v1769, 30
          %v1771 = vsub.s32 %v1767, %v1770
          %vm1772 = vcmp.lt.s32.totalorder %v1771, 0
          %v1773 = vsub.s32 0, %v1771
          %v1774 = vsel %vm1772, %v1773, %v1771
          %v1775 = vclz %v1774
          %v1776 = vsub.s32 %v1775, 2
          %vm1777 = vcmp.gt.s32.totalorder 0, %v1776
          %v1778 = vsel %vm1777, 0, %v1776
          %v1779 = vsub.s32 32, %v1778
          %v1780 = vshll.u32 %v1771, %v1778
          %v1781 = vshrl.u32 %v1763, %v1779
          %v1782 = vor.u32 %v1780, %v1781
          %v1783 = vsub.s32 4294967266, %v1778
          %v1784 = vadd.s32 %v1783, 127
          %v1785 = vshll.u32 %v1784, 23
          %v1786 = vor.u32 4788187, %v1785
          %v1787 = vand.u32 2147483647, %v1786
          %v1789 = vcvt.s32.f32 %v1782
          %v1790 = vmul.f32 %v1789, %v1787
          %v1791 = vxor.u32 %v1790, 2147483648
          %v1792 = vsel %vm1709, %v1791, %v1790
          %v1793 = vsub.s32 4, %v1769
          %v1794 = vsel %vm1709, %v1793, %v1769
          %v1795 = vsel %vm1708, %v1303, %v1792
          %v1796 = vsel %vm1708, 0, %v1794
          %v1797 = vcosq.f32.pop %v1795
          %v1798 = vsinq.f32.pop %v1795
          %vm1799 = vweird.f32 %v1303
          %v1800 = vand.u32 %v1796, 3
          %vm1801 = vcmp.lt.s32.totalorder %v1800, 2
          %vm1802 = vcmp.eq.s32.totalorder %v1800, 0
          %v1803 = vxor.u32 %v1798, 2147483648
          %v1804 = vsel %vm1802, %v1797, %v1803
          %vm1805 = vcmp.eq.s32.totalorder %v1800, 2
          %v1806 = vxor.u32 %v1797, 2147483648
          %v1807 = vsel %vm1805, %v1806, %v1798
          %v1808 = vsel %vm1801, %v1804, %v1807
          %v1809 = vsel %vm1799, nan, %v1808
          %v1810 = vld [vmem:[%s15] sm:$0xff]
          %v1811 = vld [vmem:[%s15 + $0x8] sm:$0x7f]
          %v1813 = vsel %vm1516, %v1706, 0
          %v1816 = vsel %vm1516, %v1809, 0
          %v1819 = vsel %vm1523, %v1811, 0
          %1821 = vmatprep.subr.mxu0 0.0
          %1822 = vmatpush1.msra.mxu0 %v1810
          %1823 = vmatprep.subr.mxu0 0.0
          %1824 = vmatpush1.msra.mxu0 %v1819
          %1825 = vmatprep.subr.mxu0 0.0
          %1826 = vmatpush1.msra.mxu0 0.0
          %1827 = vmatprep.subr.mxu0 0.0
          %1828 = vmatpush1.msra.mxu0 0.0
          %1829 = vmatprep.subr.mxu0 0.0
          %1830 = vmatpush1.msra.mxu0 0.0
          %1831 = vmatprep.subr.mxu0 0.0
          %1832 = vmatpush1.msra.mxu0 0.0
          %1833 = vmatprep.subr.mxu0 0.0
          %1834 = vmatpush1.msra.mxu0 0.0
          %1835 = vmatprep.subr.mxu0 0.0
          %1836 = vmatpush1.msra.mxu0 0.0
          %1837 = vmatprep.subr.mxu0 0.0
          %1838 = vmatpush1.msra.mxu0 0.0
          %1839 = vmatprep.subr.mxu0 0.0
          %1840 = vmatpush1.msra.mxu0 0.0
          %1841 = vmatprep.subr.mxu0 0.0
          %1842 = vmatpush1.msra.mxu0 0.0
          %1843 = vmatprep.subr.mxu0 0.0
          %1844 = vmatpush1.msra.mxu0 0.0
          %1845 = vmatprep.subr.mxu0 0.0
          %1846 = vmatpush1.msra.mxu0 0.0
          %1847 = vmatprep.subr.mxu0 0.0
          %1848 = vmatpush1.msra.mxu0 0.0
          %1849 = vmatprep.subr.mxu0 0.0
          %1850 = vmatpush1.msra.mxu0 0.0
          %1851 = vmatprep.subr.mxu0 0.0
          %1852 = vmatpush1.msra.mxu0 0.0
          %1853 = vmatprep.subr.mxu0 0.0
          %1854 = vmatpush1.msra.mxu0 0.0
          %1855 = vmatprep.subr.mxu0 0.0
          %1856 = vmatpush1.msra.mxu0 0.0
          %1857 = vmatprep.subr.mxu0 0.0
          %1858 = vmatpush1.msra.mxu0 0.0
          %1859 = vmatprep.subr.mxu0 0.0
          %1860 = vmatpush1.msra.mxu0 0.0
          %1861 = vmatprep.subr.mxu0 0.0
          %1862 = vmatpush1.msra.mxu0 0.0
          %1863 = vmatprep.subr.mxu0 0.0
          %1864 = vmatpush1.msra.mxu0 0.0
          %1865 = vmatprep.subr.mxu0 0.0
          %1866 = vmatpush1.msra.mxu0 0.0
          %1867 = vmatprep.subr.mxu0 0.0
          %1868 = vmatpush1.msra.mxu0 0.0
          %1869 = vmatprep.subr.mxu0 0.0
          %1870 = vmatpush1.msra.mxu0 0.0
          %1871 = vmatprep.subr.mxu0 0.0
          %1872 = vmatpush1.msra.mxu0 0.0
          %1873 = vmatprep.subr.mxu0 0.0
          %1874 = vmatpush1.msra.mxu0 0.0
          %1875 = vmatprep.subr.mxu0 0.0
          %1876 = vmatpush1.msra.mxu0 0.0
          %1877 = vmatprep.subr.mxu0 0.0
          %1878 = vmatpush1.msra.mxu0 0.0
          %1879 = vmatprep.subr.mxu0 0.0
          %1880 = vmatpush1.msra.mxu0 0.0
          %1881 = vmatprep.subr.mxu0 0.0
          %1882 = vmatpush1.msra.mxu0 0.0
          %1883 = vmatprep.subr.mxu0 0.0
          %1884 = vmatpush1.msra.mxu0 0.0
          %1885 = vmatprep.mubr.f32.mxu0 0.0
          %1886 = vmatmul.mubr.f32.gmra.mrb[0].mxu0 %v1813
          %v1887 = vpop.f32.mrb[0].mxu0
          %v1888 = vadd.f32 0.0, %v1887
          %v1889 = vpop.f32.mrb[0].mxu0
          %1890 = vmatprep.mubr.f32.mxu0 0.0
          %1891 = vmatmul.mubr.f32.gmra.mrb[0].mxu0 %v1816
          %v1892 = vpop.f32.mrb[0].mxu0
          %v1893 = vadd.f32 0.0, %v1892
          %v1894 = vpop.f32.mrb[0].mxu0
          %1895 = vdwg.mxu0
          %v1896 = vadd.f32 %v1602, %v1888
          %v1897 = vadd.f32 %v1603, %v1893
          %vm1898 = vcmask 261120
          %1899 = vst.msk [vmem:[#allocation2] sm:$0xff] %vm1898, %v1896
          %1900 = vst.msk [vmem:[#allocation2 + $0x8] sm:$0xff] %vm1898, %v1897
          %v1901 = vld [vmem:[%s5] sm:$0xff]
          %v1902 = vld [vmem:[%s5 + $0x8] sm:$0xff]
          %v1903 = vld [vmem:[%s5 + $0x10] sm:$0xff]
          %v1904 = vld [vmem:[%s5 + $0x18] sm:$0xff]
          %v1905 = vpack.c.bf16 %v1902, %v1901
          %v1906 = vpack.c.bf16 %v1904, %v1903
          %v1907 = vld [vmem:[%s17] sm:$0x3]
          %v1908 = vld [vmem:[%s19] sm:$0x1]
          %v1910 = vlaneseq
          %v1911 = vshrl.u32 %v1910, 7
          %v1912 = vsub.s32 0, %v1911
          %v1913 = vrot.slane %v1908, %v1912
          %v1916 = vsel %vm1168, %v1905, 0
          %v1919 = vsel %vm1168, %v1906, 0
          %v1922 = vsel %vm1172, %v1907, 0
          %1924 = vmatprep.subr.bf16.mxu0 0
          %1925 = vmatpush1.bf16.msra.mxu0 %v1922
          %1926 = vmatprep.subr.bf16.mxu0 0
          %1927 = vmatpush1.bf16.msra.mxu0 0
          %1928 = vmatprep.subr.bf16.mxu0 0
          %1929 = vmatpush1.bf16.msra.mxu0 0
          %1930 = vmatprep.subr.bf16.mxu0 0
          %1931 = vmatpush1.bf16.msra.mxu0 0
          %1932 = vmatprep.subr.bf16.mxu0 0
          %1933 = vmatpush1.bf16.msra.mxu0 0
          %1934 = vmatprep.subr.bf16.mxu0 0
          %1935 = vmatpush1.bf16.msra.mxu0 0
          %1936 = vmatprep.subr.bf16.mxu0 0
          %1937 = vmatpush1.bf16.msra.mxu0 0
          %1938 = vmatprep.subr.bf16.mxu0 0
          %1939 = vmatpush1.bf16.msra.mxu0 0
          %1940 = vmatprep.subr.bf16.mxu0 0
          %1941 = vmatpush1.bf16.msra.mxu0 0
          %1942 = vmatprep.subr.bf16.mxu0 0
          %1943 = vmatpush1.bf16.msra.mxu0 0
          %1944 = vmatprep.subr.bf16.mxu0 0
          %1945 = vmatpush1.bf16.msra.mxu0 0
          %1946 = vmatprep.subr.bf16.mxu0 0
          %1947 = vmatpush1.bf16.msra.mxu0 0
          %1948 = vmatprep.subr.bf16.mxu0 0
          %1949 = vmatpush1.bf16.msra.mxu0 0
          %1950 = vmatprep.subr.bf16.mxu0 0
          %1951 = vmatpush1.bf16.msra.mxu0 0
          %1952 = vmatprep.subr.bf16.mxu0 0
          %1953 = vmatpush1.bf16.msra.mxu0 0
          %1954 = vmatprep.subr.bf16.mxu0 0
          %1955 = vmatpush1.bf16.msra.mxu0 0
          %1956 = vmatprep.mubr.bf16.mxu0 0
          %1957 = vmatmul.mubr.bf16.gmra.mrb[0].mxu0 %v1916
          %v1958 = vpop.f32.mrb[0].mxu0
          %v1959 = vadd.f32 %v1913, %v1958
          %v1960 = vpop.f32.mrb[0].mxu0
          %v1961 = vpop.f32.mrb[0].mxu0
          %v1962 = vadd.f32 %v1913, %v1961
          %v1963 = vpop.f32.mrb[0].mxu0
          %1964 = vmatprep.mubr.bf16.mxu0 0
          %1965 = vmatmul.mubr.bf16.gmra.mrb[0].mxu0 %v1919
          %v1966 = vpop.f32.mrb[0].mxu0
          %v1967 = vadd.f32 %v1913, %v1966
          %v1968 = vpop.f32.mrb[0].mxu0
          %v1969 = vpop.f32.mrb[0].mxu0
          %v1970 = vadd.f32 %v1913, %v1969
          %v1971 = vpop.f32.mrb[0].mxu0
          %1972 = vdwg.mxu0
          %v1973 = vld [vmem:[%s23] sm:$0xf]
          %v1974 = vld [vmem:[%s23 + $0x4] sm:$0xf]
          %v1975 = vld [vmem:[%s23 + $0x8] sm:$0xf]
          %v1976 = vld [vmem:[%s23 + $0xc] sm:$0xf]
          %v1977 = vld [vmem:[%s23 + $0x10] sm:$0xf]
          %v1978 = vld [vmem:[%s23 + $0x14] sm:$0xf]
          %v1979 = vld [vmem:[%s23 + $0x18] sm:$0xf]
          %v1980 = vld [vmem:[%s23 + $0x1c] sm:$0xf]
          %v1981 = vld [vmem:[%s23 + $0x20] sm:$0xf]
          %v1982 = vld [vmem:[%s23 + $0x24] sm:$0xf]
          %v1983 = vld [vmem:[%s23 + $0x28] sm:$0xf]
          %v1984 = vld [vmem:[%s23 + $0x2c] sm:$0xf]
          %v1985 = vld [vmem:[%s23 + $0x30] sm:$0xf]
          %v1986 = vld [vmem:[%s23 + $0x34] sm:$0xf]
          %v1987 = vld [vmem:[%s23 + $0x38] sm:$0xf]
          %v1988 = vld [vmem:[%s23 + $0x3c] sm:$0xf]
          %v1989 = vld [vmem:[%s23 + $0x40] sm:$0xf]
          %v1990 = vld [vmem:[%s23 + $0x44] sm:$0xf]
          %v1991 = vld [vmem:[%s23 + $0x48] sm:$0xf]
          %v1992 = vld [vmem:[%s23 + $0x4c] sm:$0xf]
          %v1993 = vld [vmem:[%s23 + $0x50] sm:$0xf]
          %v1994 = vld [vmem:[%s23 + $0x54] sm:$0xf]
          %v1995 = vld [vmem:[%s23 + $0x58] sm:$0xf]
          %v1996 = vld [vmem:[%s23 + $0x5c] sm:$0xf]
          %v1997 = vld [vmem:[%s23 + $0x60] sm:$0xf]
          %v1998 = vld [vmem:[%s23 + $0x64] sm:$0xf]
          %v1999 = vld [vmem:[%s23 + $0x68] sm:$0xf]
          %v2000 = vld [vmem:[%s23 + $0x6c] sm:$0xf]
          %v2001 = vld [vmem:[%s23 + $0x70] sm:$0xf]
          %v2002 = vld [vmem:[%s23 + $0x74] sm:$0xf]
          %v2003 = vld [vmem:[%s23 + $0x78] sm:$0xf]
          %v2004 = vld [vmem:[%s23 + $0x7c] sm:$0xf]
          %v2005 = vpack.c.bf16 %v1962, %v1959
          %v2006 = vpack.c.bf16 %v1970, %v1967
          %v2039 = vunpack.c.l.b16 %v1973
          %v2040 = vunpack.c.l.b16 %v1974
          %v2041 = vunpack.c.l.b16 %v1975
          %v2042 = vunpack.c.l.b16 %v1976
          %v2043 = vunpack.c.l.b16 %v1977
          %v2044 = vunpack.c.l.b16 %v1978
          %v2045 = vunpack.c.l.b16 %v1979
          %v2046 = vunpack.c.l.b16 %v1980
          %v2047 = vunpack.c.l.b16 %v1981
          %v2048 = vunpack.c.l.b16 %v1982
          %v2049 = vunpack.c.l.b16 %v1983
          %v2050 = vunpack.c.l.b16 %v1984
          %v2051 = vunpack.c.l.b16 %v1985
          %v2052 = vunpack.c.l.b16 %v1986
          %v2053 = vunpack.c.l.b16 %v1987
          %v2054 = vunpack.c.l.b16 %v1988
          %v2055 = vunpack.c.l.b16 %v1989
          %v2056 = vunpack.c.l.b16 %v1990
          %v2057 = vunpack.c.l.b16 %v1991
          %v2058 = vunpack.c.l.b16 %v1992
          %v2059 = vunpack.c.l.b16 %v1993
          %v2060 = vunpack.c.l.b16 %v1994
          %v2061 = vunpack.c.l.b16 %v1995
          %v2062 = vunpack.c.l.b16 %v1996
          %v2063 = vunpack.c.l.b16 %v1997
          %v2064 = vunpack.c.l.b16 %v1998
          %v2065 = vunpack.c.l.b16 %v1999
          %v2066 = vunpack.c.l.b16 %v2000
          %v2067 = vunpack.c.l.b16 %v2001
          %v2068 = vunpack.c.l.b16 %v2002
          %v2069 = vunpack.c.l.b16 %v2003
          %v2070 = vunpack.c.l.b16 %v2004
          %v2071 = vpack.c.b16 %v2040, %v2039
          %v2072 = vpack.c.b16 %v2042, %v2041
          %v2073 = vpack.c.b16 %v2044, %v2043
          %v2074 = vpack.c.b16 %v2046, %v2045
          %v2075 = vpack.c.b16 %v2048, %v2047
          %v2076 = vpack.c.b16 %v2050, %v2049
          %v2077 = vpack.c.b16 %v2052, %v2051
          %v2078 = vpack.c.b16 %v2054, %v2053
          %v2079 = vpack.c.b16 %v2056, %v2055
          %v2080 = vpack.c.b16 %v2058, %v2057
          %v2081 = vpack.c.b16 %v2060, %v2059
          %v2082 = vpack.c.b16 %v2062, %v2061
          %v2083 = vpack.c.b16 %v2064, %v2063
          %v2084 = vpack.c.b16 %v2066, %v2065
          %v2085 = vpack.c.b16 %v2068, %v2067
          %v2086 = vpack.c.b16 %v2070, %v2069
          %v2088 = vsel %vm1898, %v2071, 0
          %v2091 = vsel %vm1898, %v2072, 0
          %v2094 = vsel %vm1898, %v2073, 0
          %v2097 = vsel %vm1898, %v2074, 0
          %v2100 = vsel %vm1898, %v2075, 0
          %v2103 = vsel %vm1898, %v2076, 0
          %v2106 = vsel %vm1898, %v2077, 0
          %v2109 = vsel %vm1898, %v2078, 0
          %v2112 = vsel %vm1898, %v2079, 0
          %v2115 = vsel %vm1898, %v2080, 0
          %v2118 = vsel %vm1898, %v2081, 0
          %v2121 = vsel %vm1898, %v2082, 0
          %v2124 = vsel %vm1898, %v2083, 0
          %v2127 = vsel %vm1898, %v2084, 0
          %v2130 = vsel %vm1898, %v2085, 0
          %v2133 = vsel %vm1898, %v2086, 0
          %2135 = vmatprep.subr.bf16.mxu0 0
          %2136 = vmatpush1.bf16.msra.mxu0 %v2005
          %2137 = vmatprep.subr.bf16.mxu0 0
          %2138 = vmatpush1.bf16.msra.mxu0 %v2006
          %2139 = vmatprep.subr.bf16.mxu0 0
          %2140 = vmatpush1.bf16.msra.mxu0 0
          %2141 = vmatprep.subr.bf16.mxu0 0
          %2142 = vmatpush1.bf16.msra.mxu0 0
          %2143 = vmatprep.subr.bf16.mxu0 0
          %2144 = vmatpush1.bf16.msra.mxu0 0
          %2145 = vmatprep.subr.bf16.mxu0 0
          %2146 = vmatpush1.bf16.msra.mxu0 0
          %2147 = vmatprep.subr.bf16.mxu0 0
          %2148 = vmatpush1.bf16.msra.mxu0 0
          %2149 = vmatprep.subr.bf16.mxu0 0
          %2150 = vmatpush1.bf16.msra.mxu0 0
          %2151 = vmatprep.subr.bf16.mxu0 0
          %2152 = vmatpush1.bf16.msra.mxu0 0
          %2153 = vmatprep.subr.bf16.mxu0 0
          %2154 = vmatpush1.bf16.msra.mxu0 0
          %2155 = vmatprep.subr.bf16.mxu0 0
          %2156 = vmatpush1.bf16.msra.mxu0 0
          %2157 = vmatprep.subr.bf16.mxu0 0
          %2158 = vmatpush1.bf16.msra.mxu0 0
          %2159 = vmatprep.subr.bf16.mxu0 0
          %2160 = vmatpush1.bf16.msra.mxu0 0
          %2161 = vmatprep.subr.bf16.mxu0 0
          %2162 = vmatpush1.bf16.msra.mxu0 0
          %2163 = vmatprep.subr.bf16.mxu0 0
          %2164 = vmatpush1.bf16.msra.mxu0 0
          %2165 = vmatprep.subr.bf16.mxu0 0
          %2166 = vmatpush1.bf16.msra.mxu0 0
          %2167 = vmatprep.mubr.bf16.mxu0 0
          %2168 = vmatmul.mubr.bf16.gmra.mrb[0].mxu0 %v2088
          %v2169 = vpop.f32.mrb[0].mxu0
          %v2170 = vadd.f32 0.0, %v2169
          %v2171 = vpop.f32.mrb[0].mxu0
          %v2172 = vpop.f32.mrb[0].mxu0
          %v2173 = vadd.f32 0.0, %v2172
          %v2174 = vpop.f32.mrb[0].mxu0
          %2175 = vmatprep.mubr.bf16.mxu0 0
          %2176 = vmatmul.mubr.bf16.gmra.mrb[0].mxu0 %v2091
          %v2177 = vpop.f32.mrb[0].mxu0
          %v2178 = vadd.f32 0.0, %v2177
          %v2179 = vpop.f32.mrb[0].mxu0
          %v2180 = vpop.f32.mrb[0].mxu0
          %v2181 = vadd.f32 0.0, %v2180
          %v2182 = vpop.f32.mrb[0].mxu0
          %2183 = vmatprep.mubr.bf16.mxu0 0
          %2184 = vmatmul.mubr.bf16.gmra.mrb[0].mxu0 %v2094
          %v2185 = vpop.f32.mrb[0].mxu0
          %v2186 = vadd.f32 0.0, %v2185
          %v2187 = vpop.f32.mrb[0].mxu0
          %v2188 = vpop.f32.mrb[0].mxu0
          %v2189 = vadd.f32 0.0, %v2188
          %v2190 = vpop.f32.mrb[0].mxu0
          %2191 = vmatprep.mubr.bf16.mxu0 0
          %2192 = vmatmul.mubr.bf16.gmra.mrb[0].mxu0 %v2097
          %v2193 = vpop.f32.mrb[0].mxu0
          %v2194 = vadd.f32 0.0, %v2193
          %v2195 = vpop.f32.mrb[0].mxu0
          %v2196 = vpop.f32.mrb[0].mxu0
          %v2197 = vadd.f32 0.0, %v2196
          %v2198 = vpop.f32.mrb[0].mxu0
          %2199 = vmatprep.mubr.bf16.mxu0 0
          %2200 = vmatmul.mubr.bf16.gmra.mrb[0].mxu0 %v2100
          %v2201 = vpop.f32.mrb[0].mxu0
          %v2202 = vadd.f32 0.0, %v2201
          %v2203 = vpop.f32.mrb[0].mxu0
          %v2204 = vpop.f32.mrb[0].mxu0
          %v2205 = vadd.f32 0.0, %v2204
          %v2206 = vpop.f32.mrb[0].mxu0
          %2207 = vmatprep.mubr.bf16.mxu0 0
          %2208 = vmatmul.mubr.bf16.gmra.mrb[0].mxu0 %v2103
          %v2209 = vpop.f32.mrb[0].mxu0
          %v2210 = vadd.f32 0.0, %v2209
          %v2211 = vpop.f32.mrb[0].mxu0
          %v2212 = vpop.f32.mrb[0].mxu0
          %v2213 = vadd.f32 0.0, %v2212
          %v2214 = vpop.f32.mrb[0].mxu0
          %2215 = vmatprep.mubr.bf16.mxu0 0
          %2216 = vmatmul.mubr.bf16.gmra.mrb[0].mxu0 %v2106
          %v2217 = vpop.f32.mrb[0].mxu0
          %v2218 = vadd.f32 0.0, %v2217
          %v2219 = vpop.f32.mrb[0].mxu0
          %v2220 = vpop.f32.mrb[0].mxu0
          %v2221 = vadd.f32 0.0, %v2220
          %v2222 = vpop.f32.mrb[0].mxu0
          %2223 = vmatprep.mubr.bf16.mxu0 0
          %2224 = vmatmul.mubr.bf16.gmra.mrb[0].mxu0 %v2109
          %v2225 = vpop.f32.mrb[0].mxu0
          %v2226 = vadd.f32 0.0, %v2225
          %v2227 = vpop.f32.mrb[0].mxu0
          %v2228 = vpop.f32.mrb[0].mxu0
          %v2229 = vadd.f32 0.0, %v2228
          %v2230 = vpop.f32.mrb[0].mxu0
          %2231 = vmatprep.mubr.bf16.mxu0 0
          %2232 = vmatmul.mubr.bf16.gmra.mrb[0].mxu0 %v2112
          %v2233 = vpop.f32.mrb[0].mxu0
          %v2234 = vadd.f32 0.0, %v2233
          %v2235 = vpop.f32.mrb[0].mxu0
          %v2236 = vpop.f32.mrb[0].mxu0
          %v2237 = vadd.f32 0.0, %v2236
          %v2238 = vpop.f32.mrb[0].mxu0
          %2239 = vmatprep.mubr.bf16.mxu0 0
          %2240 = vmatmul.mubr.bf16.gmra.mrb[0].mxu0 %v2115
          %v2241 = vpop.f32.mrb[0].mxu0
          %v2242 = vadd.f32 0.0, %v2241
          %v2243 = vpop.f32.mrb[0].mxu0
          %v2244 = vpop.f32.mrb[0].mxu0
          %v2245 = vadd.f32 0.0, %v2244
          %v2246 = vpop.f32.mrb[0].mxu0
          %2247 = vmatprep.mubr.bf16.mxu0 0
          %2248 = vmatmul.mubr.bf16.gmra.mrb[0].mxu0 %v2118
          %v2249 = vpop.f32.mrb[0].mxu0
          %v2250 = vadd.f32 0.0, %v2249
          %v2251 = vpop.f32.mrb[0].mxu0
          %v2252 = vpop.f32.mrb[0].mxu0
          %v2253 = vadd.f32 0.0, %v2252
          %v2254 = vpop.f32.mrb[0].mxu0
          %2255 = vmatprep.mubr.bf16.mxu0 0
          %2256 = vmatmul.mubr.bf16.gmra.mrb[0].mxu0 %v2121
          %v2257 = vpop.f32.mrb[0].mxu0
          %v2258 = vadd.f32 0.0, %v2257
          %v2259 = vpop.f32.mrb[0].mxu0
          %v2260 = vpop.f32.mrb[0].mxu0
          %v2261 = vadd.f32 0.0, %v2260
          %v2262 = vpop.f32.mrb[0].mxu0
          %2263 = vmatprep.mubr.bf16.mxu0 0
          %2264 = vmatmul.mubr.bf16.gmra.mrb[0].mxu0 %v2124
          %v2265 = vpop.f32.mrb[0].mxu0
          %v2266 = vadd.f32 0.0, %v2265
          %v2267 = vpop.f32.mrb[0].mxu0
          %v2268 = vpop.f32.mrb[0].mxu0
          %v2269 = vadd.f32 0.0, %v2268
          %v2270 = vpop.f32.mrb[0].mxu0
          %2271 = vmatprep.mubr.bf16.mxu0 0
          %2272 = vmatmul.mubr.bf16.gmra.mrb[0].mxu0 %v2127
          %v2273 = vpop.f32.mrb[0].mxu0
          %v2274 = vadd.f32 0.0, %v2273
          %v2275 = vpop.f32.mrb[0].mxu0
          %v2276 = vpop.f32.mrb[0].mxu0
          %v2277 = vadd.f32 0.0, %v2276
          %v2278 = vpop.f32.mrb[0].mxu0
          %2279 = vmatprep.mubr.bf16.mxu0 0
          %2280 = vmatmul.mubr.bf16.gmra.mrb[0].mxu0 %v2130
          %v2281 = vpop.f32.mrb[0].mxu0
          %v2282 = vadd.f32 0.0, %v2281
          %v2283 = vpop.f32.mrb[0].mxu0
          %v2284 = vpop.f32.mrb[0].mxu0
          %v2285 = vadd.f32 0.0, %v2284
          %v2286 = vpop.f32.mrb[0].mxu0
          %2287 = vmatprep.mubr.bf16.mxu0 0
          %2288 = vmatmul.mubr.bf16.gmra.mrb[0].mxu0 %v2133
          %v2289 = vpop.f32.mrb[0].mxu0
          %v2290 = vadd.f32 0.0, %v2289
          %v2291 = vpop.f32.mrb[0].mxu0
          %v2292 = vpop.f32.mrb[0].mxu0
          %v2293 = vadd.f32 0.0, %v2292
          %v2294 = vpop.f32.mrb[0].mxu0
          %2295 = vdwg.mxu0
          %v2296 = vpack.c.bf16 %v2173, %v2170
          %v2297 = vpack.c.bf16 %v2181, %v2178
          %v2298 = vpack.c.bf16 %v2189, %v2186
          %v2299 = vpack.c.bf16 %v2197, %v2194
          %v2300 = vpack.c.bf16 %v2205, %v2202
          %v2301 = vpack.c.bf16 %v2213, %v2210
          %v2302 = vpack.c.bf16 %v2221, %v2218
          %v2303 = vpack.c.bf16 %v2229, %v2226
          %v2304 = vpack.c.bf16 %v2237, %v2234
          %v2305 = vpack.c.bf16 %v2245, %v2242
          %v2306 = vpack.c.bf16 %v2253, %v2250
          %v2307 = vpack.c.bf16 %v2261, %v2258
          %v2308 = vpack.c.bf16 %v2269, %v2266
          %v2309 = vpack.c.bf16 %v2277, %v2274
          %v2310 = vpack.c.bf16 %v2285, %v2282
          %v2311 = vpack.c.bf16 %v2293, %v2290
          %2312 = vst.msk [vmem:[#allocation3] sm:$0xff] %vm1898, %v2296
          %2313 = vst.msk [vmem:[#allocation3 + $0x8] sm:$0xff] %vm1898, %v2297
          %2314 = vst.msk [vmem:[#allocation3 + $0x10] sm:$0xff] %vm1898, %v2298
          %2315 = vst.msk [vmem:[#allocation3 + $0x18] sm:$0xff] %vm1898, %v2299
          %2316 = vst.msk [vmem:[#allocation3 + $0x20] sm:$0xff] %vm1898, %v2300
          %2317 = vst.msk [vmem:[#allocation3 + $0x28] sm:$0xff] %vm1898, %v2301
          %2318 = vst.msk [vmem:[#allocation3 + $0x30] sm:$0xff] %vm1898, %v2302
          %2319 = vst.msk [vmem:[#allocation3 + $0x38] sm:$0xff] %vm1898, %v2303
          %2320 = vst.msk [vmem:[#allocation3 + $0x40] sm:$0xff] %vm1898, %v2304
          %2321 = vst.msk [vmem:[#allocation3 + $0x48] sm:$0xff] %vm1898, %v2305
          %2322 = vst.msk [vmem:[#allocation3 + $0x50] sm:$0xff] %vm1898, %v2306
          %2323 = vst.msk [vmem:[#allocation3 + $0x58] sm:$0xff] %vm1898, %v2307
          %2324 = vst.msk [vmem:[#allocation3 + $0x60] sm:$0xff] %vm1898, %v2308
          %2325 = vst.msk [vmem:[#allocation3 + $0x68] sm:$0xff] %vm1898, %v2309
          %2326 = vst.msk [vmem:[#allocation3 + $0x70] sm:$0xff] %vm1898, %v2310
          %2327 = vst.msk [vmem:[#allocation3 + $0x78] sm:$0xff] %vm1898, %v2311
        $region164: #{quantum_gnn_forward.1} parent=159 // pred_fallthru
          _
        %v2328 = vld [vmem:[#allocation2] sm:$0xff]
        %v2329 = vld [vmem:[#allocation2 + $0x8] sm:$0xff]
        %v2330 = vpack.c.bf16 %v2329, %v2328
        %v2331 = vld [vmem:[%s1128] sm:$0xff]
        %v2332 = vld [vmem:[%s1128 + $0x8] sm:$0xff]
        %v2333 = vld [vmem:[%s1128 + $0x10] sm:$0xff]
        %v2334 = vld [vmem:[%s1128 + $0x18] sm:$0xf]
        %v2335 = vld [vmem:[%s1128 + $0x1c] sm:$0xff]
        %v2336 = vld [vmem:[%s1128 + $0x24] sm:$0xff]
        %v2337 = vld [vmem:[%s1128 + $0x2c] sm:$0xff]
        %v2338 = vld [vmem:[%s1128 + $0x34] sm:$0xf]
        %v2339 = vld [vmem:[%s1128 + $0x38] sm:$0xff]
        %v2340 = vld [vmem:[%s1128 + $0x40] sm:$0xff]
        %v2341 = vld [vmem:[%s1128 + $0x48] sm:$0xff]
        %v2342 = vld [vmem:[%s1128 + $0x50] sm:$0xf]
        %v2343 = vld [vmem:[%s1128 + $0x54] sm:$0xff]
        %v2344 = vld [vmem:[%s1128 + $0x5c] sm:$0xff]
        %v2345 = vld [vmem:[%s1128 + $0x64] sm:$0xff]
        %v2346 = vld [vmem:[%s1128 + $0x6c] sm:$0xf]
        %v2347 = vld [vmem:[%s1132] sm:$0x7f]
        %v2349 = vlaneseq
        %v2350 = vshrl.u32 %v2349, 7
        %v2351 = vsub.s32 0, %v2350
        %v2352 = vrot.slane %v2347, %v2351
        %v2353 = vlaneseq
        %v2354 = vshrl.u32 %v2353, 7
        %v2355 = vsub.s32 1, %v2354
        %v2356 = vrot.slane %v2347, %v2355
        %v2357 = vlaneseq
        %v2358 = vshrl.u32 %v2357, 7
        %v2359 = vsub.s32 2, %v2358
        %v2360 = vrot.slane %v2347, %v2359
        %v2361 = vlaneseq
        %v2362 = vshrl.u32 %v2361, 7
        %v2363 = vsub.s32 3, %v2362
        %v2364 = vrot.slane %v2347, %v2363
        %v2365 = vlaneseq
        %v2366 = vshrl.u32 %v2365, 7
        %v2367 = vsub.s32 4, %v2366
        %v2368 = vrot.slane %v2347, %v2367
        %v2369 = vlaneseq
        %v2370 = vshrl.u32 %v2369, 7
        %v2371 = vsub.s32 5, %v2370
        %v2372 = vrot.slane %v2347, %v2371
        %v2373 = vlaneseq
        %v2374 = vshrl.u32 %v2373, 7
        %v2375 = vsub.s32 6, %v2374
        %v2376 = vrot.slane %v2347, %v2375
        %v2400 = vunpack.c.l.b16 %v2331
        %v2401 = vunpack.c.h.b16 %v2331
        %v2402 = vunpack.c.l.b16 %v2332
        %v2403 = vunpack.c.h.b16 %v2332
        %v2404 = vunpack.c.l.b16 %v2333
        %v2405 = vunpack.c.h.b16 %v2333
        %v2406 = vunpack.c.l.b16 %v2334
        %v2407 = vunpack.c.l.b16 %v2335
        %v2408 = vunpack.c.h.b16 %v2335
        %v2409 = vunpack.c.l.b16 %v2336
        %v2410 = vunpack.c.h.b16 %v2336
        %v2411 = vunpack.c.l.b16 %v2337
        %v2412 = vunpack.c.h.b16 %v2337
        %v2413 = vunpack.c.l.b16 %v2338
        %v2414 = vunpack.c.l.b16 %v2339
        %v2415 = vunpack.c.h.b16 %v2339
        %v2416 = vunpack.c.l.b16 %v2340
        %v2417 = vunpack.c.h.b16 %v2340
        %v2418 = vunpack.c.l.b16 %v2341
        %v2419 = vunpack.c.h.b16 %v2341
        %v2420 = vunpack.c.l.b16 %v2342
        %v2421 = vunpack.c.l.b16 %v2343
        %v2422 = vunpack.c.h.b16 %v2343
        %v2423 = vunpack.c.l.b16 %v2344
        %v2424 = vunpack.c.h.b16 %v2344
        %v2425 = vunpack.c.l.b16 %v2345
        %v2426 = vunpack.c.h.b16 %v2345
        %v2427 = vunpack.c.l.b16 %v2346
        %v2428 = vpack.c.b16 %v2407, %v2400
        %v2429 = vpack.c.b16 %v2408, %v2401
        %v2430 = vpack.c.b16 %v2409, %v2402
        %v2431 = vpack.c.b16 %v2410, %v2403
        %v2432 = vpack.c.b16 %v2411, %v2404
        %v2433 = vpack.c.b16 %v2412, %v2405
        %v2434 = vpack.c.b16 %v2413, %v2406
        %v2435 = vpack.c.b16 %v2421, %v2414
        %v2436 = vpack.c.b16 %v2422, %v2415
        %v2437 = vpack.c.b16 %v2423, %v2416
        %v2438 = vpack.c.b16 %v2424, %v2417
        %v2439 = vpack.c.b16 %v2425, %v2418
        %v2440 = vpack.c.b16 %v2426, %v2419
        %v2441 = vpack.c.b16 %v2427, %v2420
        %vm2456 = vcmask 261120
        %v2458 = vsel %vm2456, %v2330, 0
        %2460 = vmatprep.subr.bf16.mxu0 %v2429
        %2461 = vmatpush1.bf16.msra.mxu0 %v2428
        %2462 = vmatprep.subr.bf16.mxu0 %v2436
        %2463 = vmatpush1.bf16.msra.mxu0 %v2435
        %2464 = vmatprep.subr.bf16.mxu0 0
        %2465 = vmatpush1.bf16.msra.mxu0 0
        %2466 = vmatprep.subr.bf16.mxu0 0
        %2467 = vmatpush1.bf16.msra.mxu0 0
        %2468 = vmatprep.subr.bf16.mxu0 0
        %2469 = vmatpush1.bf16.msra.mxu0 0
        %2470 = vmatprep.subr.bf16.mxu0 0
        %2471 = vmatpush1.bf16.msra.mxu0 0
        %2472 = vmatprep.subr.bf16.mxu0 0
        %2473 = vmatpush1.bf16.msra.mxu0 0
        %2474 = vmatprep.subr.bf16.mxu0 0
        %2475 = vmatpush1.bf16.msra.mxu0 0
        %2476 = vmatprep.subr.bf16.mxu0 0
        %2477 = vmatpush1.bf16.msra.mxu0 0
        %2478 = vmatprep.subr.bf16.mxu0 0
        %2479 = vmatpush1.bf16.msra.mxu0 0
        %2480 = vmatprep.subr.bf16.mxu0 0
        %2481 = vmatpush1.bf16.msra.mxu0 0
        %2482 = vmatprep.subr.bf16.mxu0 0
        %2483 = vmatpush1.bf16.msra.mxu0 0
        %2484 = vmatprep.subr.bf16.mxu0 0
        %2485 = vmatpush1.bf16.msra.mxu0 0
        %2486 = vmatprep.subr.bf16.mxu0 0
        %2487 = vmatpush1.bf16.msra.mxu0 0
        %2488 = vmatprep.subr.bf16.mxu0 0
        %2489 = vmatpush1.bf16.msra.mxu0 0
        %2490 = vmatprep.subr.bf16.mxu0 0
        %2491 = vmatpush1.bf16.msra.mxu0 0
        %2492 = vmatprep.mubr.bf16.mxu0 0
        %2493 = vmatmul.mubr.bf16.gmra.mrb[0].mxu0 %v2458
        %v2494 = vpop.f32.mrb[0].mxu0
        %v2495 = vadd.f32 %v2352, %v2494
        %v2496 = vpop.f32.mrb[0].mxu0
        %v2497 = vadd.f32 %v2356, %v2496
        %v2498 = vpop.f32.mrb[0].mxu0
        %v2499 = vadd.f32 %v2352, %v2498
        %v2500 = vpop.f32.mrb[0].mxu0
        %v2501 = vadd.f32 %v2356, %v2500
        %2502 = vdwg.mxu0
        %2503 = vmatprep.subr.bf16.mxu0 %v2431
        %2504 = vmatpush1.bf16.msra.mxu0 %v2430
        %2505 = vmatprep.subr.bf16.mxu0 %v2438
        %2506 = vmatpush1.bf16.msra.mxu0 %v2437
        %2507 = vmatprep.subr.bf16.mxu0 0
        %2508 = vmatpush1.bf16.msra.mxu0 0
        %2509 = vmatprep.subr.bf16.mxu0 0
        %2510 = vmatpush1.bf16.msra.mxu0 0
        %2511 = vmatprep.subr.bf16.mxu0 0
        %2512 = vmatpush1.bf16.msra.mxu0 0
        %2513 = vmatprep.subr.bf16.mxu0 0
        %2514 = vmatpush1.bf16.msra.mxu0 0
        %2515 = vmatprep.subr.bf16.mxu0 0
        %2516 = vmatpush1.bf16.msra.mxu0 0
        %2517 = vmatprep.subr.bf16.mxu0 0
        %2518 = vmatpush1.bf16.msra.mxu0 0
        %2519 = vmatprep.subr.bf16.mxu0 0
        %2520 = vmatpush1.bf16.msra.mxu0 0
        %2521 = vmatprep.subr.bf16.mxu0 0
        %2522 = vmatpush1.bf16.msra.mxu0 0
        %2523 = vmatprep.subr.bf16.mxu0 0
        %2524 = vmatpush1.bf16.msra.mxu0 0
        %2525 = vmatprep.subr.bf16.mxu0 0
        %2526 = vmatpush1.bf16.msra.mxu0 0
        %2527 = vmatprep.subr.bf16.mxu0 0
        %2528 = vmatpush1.bf16.msra.mxu0 0
        %2529 = vmatprep.subr.bf16.mxu0 0
        %2530 = vmatpush1.bf16.msra.mxu0 0
        %2531 = vmatprep.subr.bf16.mxu0 0
        %2532 = vmatpush1.bf16.msra.mxu0 0
        %2533 = vmatprep.subr.bf16.mxu0 0
        %2534 = vmatpush1.bf16.msra.mxu0 0
        %2535 = vmatprep.mubr.bf16.mxu0 0
        %2536 = vmatmul.mubr.bf16.gmra.mrb[0].mxu0 %v2458
        %v2537 = vpop.f32.mrb[0].mxu0
        %v2538 = vadd.f32 %v2360, %v2537
        %v2539 = vpop.f32.mrb[0].mxu0
        %v2540 = vadd.f32 %v2364, %v2539
        %v2541 = vpop.f32.mrb[0].mxu0
        %v2542 = vadd.f32 %v2360, %v2541
        %v2543 = vpop.f32.mrb[0].mxu0
        %v2544 = vadd.f32 %v2364, %v2543
        %2545 = vdwg.mxu0
        %2546 = vmatprep.subr.bf16.mxu0 %v2433
        %2547 = vmatpush1.bf16.msra.mxu0 %v2432
        %2548 = vmatprep.subr.bf16.mxu0 %v2440
        %2549 = vmatpush1.bf16.msra.mxu0 %v2439
        %2550 = vmatprep.subr.bf16.mxu0 0
        %2551 = vmatpush1.bf16.msra.mxu0 0
        %2552 = vmatprep.subr.bf16.mxu0 0
        %2553 = vmatpush1.bf16.msra.mxu0 0
        %2554 = vmatprep.subr.bf16.mxu0 0
        %2555 = vmatpush1.bf16.msra.mxu0 0
        %2556 = vmatprep.subr.bf16.mxu0 0
        %2557 = vmatpush1.bf16.msra.mxu0 0
        %2558 = vmatprep.subr.bf16.mxu0 0
        %2559 = vmatpush1.bf16.msra.mxu0 0
        %2560 = vmatprep.subr.bf16.mxu0 0
        %2561 = vmatpush1.bf16.msra.mxu0 0
        %2562 = vmatprep.subr.bf16.mxu0 0
        %2563 = vmatpush1.bf16.msra.mxu0 0
        %2564 = vmatprep.subr.bf16.mxu0 0
        %2565 = vmatpush1.bf16.msra.mxu0 0
        %2566 = vmatprep.subr.bf16.mxu0 0
        %2567 = vmatpush1.bf16.msra.mxu0 0
        %2568 = vmatprep.subr.bf16.mxu0 0
        %2569 = vmatpush1.bf16.msra.mxu0 0
        %2570 = vmatprep.subr.bf16.mxu0 0
        %2571 = vmatpush1.bf16.msra.mxu0 0
        %2572 = vmatprep.subr.bf16.mxu0 0
        %2573 = vmatpush1.bf16.msra.mxu0 0
        %2574 = vmatprep.subr.bf16.mxu0 0
        %2575 = vmatpush1.bf16.msra.mxu0 0
        %2576 = vmatprep.subr.bf16.mxu0 0
        %2577 = vmatpush1.bf16.msra.mxu0 0
        %2578 = vmatprep.mubr.bf16.mxu0 0
        %2579 = vmatmul.mubr.bf16.gmra.mrb[0].mxu0 %v2458
        %v2580 = vpop.f32.mrb[0].mxu0
        %v2581 = vadd.f32 %v2368, %v2580
        %v2582 = vpop.f32.mrb[0].mxu0
        %v2583 = vadd.f32 %v2372, %v2582
        %v2584 = vpop.f32.mrb[0].mxu0
        %v2585 = vadd.f32 %v2368, %v2584
        %v2586 = vpop.f32.mrb[0].mxu0
        %v2587 = vadd.f32 %v2372, %v2586
        %2588 = vdwg.mxu0
        %2589 = vmatprep.subr.bf16.mxu0 0
        %2590 = vmatpush1.bf16.msra.mxu0 %v2434
        %2591 = vmatprep.subr.bf16.mxu0 0
        %2592 = vmatpush1.bf16.msra.mxu0 %v2441
        %2593 = vmatprep.subr.bf16.mxu0 0
        %2594 = vmatpush1.bf16.msra.mxu0 0
        %2595 = vmatprep.subr.bf16.mxu0 0
        %2596 = vmatpush1.bf16.msra.mxu0 0
        %2597 = vmatprep.subr.bf16.mxu0 0
        %2598 = vmatpush1.bf16.msra.mxu0 0
        %2599 = vmatprep.subr.bf16.mxu0 0
        %2600 = vmatpush1.bf16.msra.mxu0 0
        %2601 = vmatprep.subr.bf16.mxu0 0
        %2602 = vmatpush1.bf16.msra.mxu0 0
        %2603 = vmatprep.subr.bf16.mxu0 0
        %2604 = vmatpush1.bf16.msra.mxu0 0
        %2605 = vmatprep.subr.bf16.mxu0 0
        %2606 = vmatpush1.bf16.msra.mxu0 0
        %2607 = vmatprep.subr.bf16.mxu0 0
        %2608 = vmatpush1.bf16.msra.mxu0 0
        %2609 = vmatprep.subr.bf16.mxu0 0
        %2610 = vmatpush1.bf16.msra.mxu0 0
        %2611 = vmatprep.subr.bf16.mxu0 0
        %2612 = vmatpush1.bf16.msra.mxu0 0
        %2613 = vmatprep.subr.bf16.mxu0 0
        %2614 = vmatpush1.bf16.msra.mxu0 0
        %2615 = vmatprep.subr.bf16.mxu0 0
        %2616 = vmatpush1.bf16.msra.mxu0 0
        %2617 = vmatprep.subr.bf16.mxu0 0
        %2618 = vmatpush1.bf16.msra.mxu0 0
        %2619 = vmatprep.subr.bf16.mxu0 0
        %2620 = vmatpush1.bf16.msra.mxu0 0
        %2621 = vmatprep.mubr.bf16.mxu0 0
        %2622 = vmatmul.mubr.bf16.gmra.mrb[0].mxu0 %v2458
        %v2623 = vpop.f32.mrb[0].mxu0
        %v2624 = vadd.f32 %v2376, %v2623
        %v2625 = vpop.f32.mrb[0].mxu0
        %v2626 = vpop.f32.mrb[0].mxu0
        %v2627 = vadd.f32 %v2376, %v2626
        %v2628 = vpop.f32.mrb[0].mxu0
        %2629 = vdwg.mxu0
        %v2630 = vld [vmem:[%s21] sm:$0xf]
        %v2631 = vld [vmem:[%s21 + $0x4] sm:$0xf]
        %v2632 = vld [vmem:[%s21 + $0x8] sm:$0xf]
        %v2633 = vld [vmem:[%s21 + $0xc] sm:$0xf]
        %v2634 = vld [vmem:[%s21 + $0x10] sm:$0xf]
        %v2635 = vld [vmem:[%s21 + $0x14] sm:$0xf]
        %v2636 = vld [vmem:[%s21 + $0x18] sm:$0xf]
        %v2637 = vld [vmem:[%s21 + $0x1c] sm:$0xf]
        %v2638 = vld [vmem:[%s21 + $0x20] sm:$0xf]
        %v2639 = vld [vmem:[%s21 + $0x24] sm:$0xf]
        %v2640 = vld [vmem:[%s21 + $0x28] sm:$0xf]
        %v2641 = vld [vmem:[%s21 + $0x2c] sm:$0xf]
        %v2642 = vld [vmem:[%s21 + $0x30] sm:$0xf]
        %v2643 = vld [vmem:[%s21 + $0x34] sm:$0xf]
        %v2644 = vld [vmem:[%s21 + $0x38] sm:$0xf]
        %v2645 = vld [vmem:[%s21 + $0x3c] sm:$0xf]
        %v2646 = vld [vmem:[%s25] sm:$0xff]
        %v2647 = vld [vmem:[%s25 + $0x8] sm:$0xff]
        %v2648 = vld [vmem:[%s25 + $0x10] sm:$0xff]
        %v2649 = vld [vmem:[%s25 + $0x18] sm:$0xff]
        %v2650 = vld [vmem:[%s25 + $0x20] sm:$0xff]
        %v2651 = vld [vmem:[%s25 + $0x28] sm:$0xff]
        %v2652 = vld [vmem:[%s25 + $0x30] sm:$0xff]
        %v2653 = vld [vmem:[%s25 + $0x38] sm:$0xff]
        %v2654 = vld [vmem:[%s25 + $0x40] sm:$0xff]
        %v2655 = vld [vmem:[%s25 + $0x48] sm:$0xff]
        %v2656 = vld [vmem:[%s25 + $0x50] sm:$0xff]
        %v2657 = vld [vmem:[%s25 + $0x58] sm:$0xff]
        %v2658 = vld [vmem:[%s25 + $0x60] sm:$0xff]
        %v2659 = vld [vmem:[%s25 + $0x68] sm:$0xff]
        %v2660 = vld [vmem:[%s25 + $0x70] sm:$0xff]
        %v2661 = vld [vmem:[%s25 + $0x78] sm:$0xff]
        %v2662 = vpack.c.bf16 %v2542, %v2538
        %v2663 = vpack.c.bf16 %v2544, %v2540
        %v2680 = vunpack.c.l.b16 %v2630
        %v2681 = vunpack.c.l.b16 %v2631
        %v2682 = vunpack.c.l.b16 %v2632
        %v2683 = vunpack.c.l.b16 %v2633
        %v2684 = vunpack.c.l.b16 %v2634
        %v2685 = vunpack.c.l.b16 %v2635
        %v2686 = vunpack.c.l.b16 %v2636
        %v2687 = vunpack.c.l.b16 %v2637
        %v2688 = vunpack.c.l.b16 %v2638
        %v2689 = vunpack.c.l.b16 %v2639
        %v2690 = vunpack.c.l.b16 %v2640
        %v2691 = vunpack.c.l.b16 %v2641
        %v2692 = vunpack.c.l.b16 %v2642
        %v2693 = vunpack.c.l.b16 %v2643
        %v2694 = vunpack.c.l.b16 %v2644
        %v2695 = vunpack.c.l.b16 %v2645
        %v2696 = vpack.c.b16 %v2681, %v2680
        %v2697 = vpack.c.b16 %v2683, %v2682
        %v2698 = vpack.c.b16 %v2685, %v2684
        %v2699 = vpack.c.b16 %v2687, %v2686
        %v2700 = vpack.c.b16 %v2689, %v2688
        %v2701 = vpack.c.b16 %v2691, %v2690
        %v2702 = vpack.c.b16 %v2693, %v2692
        %v2703 = vpack.c.b16 %v2695, %v2694
        %vm2704 = vcmask 130048
        %v2706 = vsel %vm2704, %v2696, 0
        %v2709 = vsel %vm2704, %v2697, 0
        %v2712 = vsel %vm2704, %v2698, 0
        %v2715 = vsel %vm2704, %v2699, 0
        %v2718 = vsel %vm2704, %v2700, 0
        %v2721 = vsel %vm2704, %v2701, 0
        %v2724 = vsel %vm2704, %v2702, 0
        %v2727 = vsel %vm2704, %v2703, 0
        %2729 = vmatprep.subr.bf16.mxu0 %v2663
        %2730 = vmatpush1.bf16.msra.mxu0 %v2662
        %2731 = vmatprep.subr.bf16.mxu0 0
        %2732 = vmatpush1.bf16.msra.mxu0 0
        %2733 = vmatprep.subr.bf16.mxu0 0
        %2734 = vmatpush1.bf16.msra.mxu0 0
        %2735 = vmatprep.subr.bf16.mxu0 0
        %2736 = vmatpush1.bf16.msra.mxu0 0
        %2737 = vmatprep.subr.bf16.mxu0 0
        %2738 = vmatpush1.bf16.msra.mxu0 0
        %2739 = vmatprep.subr.bf16.mxu0 0
        %2740 = vmatpush1.bf16.msra.mxu0 0
        %2741 = vmatprep.subr.bf16.mxu0 0
        %2742 = vmatpush1.bf16.msra.mxu0 0
        %2743 = vmatprep.subr.bf16.mxu0 0
        %2744 = vmatpush1.bf16.msra.mxu0 0
        %2745 = vmatprep.subr.bf16.mxu0 0
        %2746 = vmatpush1.bf16.msra.mxu0 0
        %2747 = vmatprep.subr.bf16.mxu0 0
        %2748 = vmatpush1.bf16.msra.mxu0 0
        %2749 = vmatprep.subr.bf16.mxu0 0
        %2750 = vmatpush1.bf16.msra.mxu0 0
        %2751 = vmatprep.subr.bf16.mxu0 0
        %2752 = vmatpush1.bf16.msra.mxu0 0
        %2753 = vmatprep.subr.bf16.mxu0 0
        %2754 = vmatpush1.bf16.msra.mxu0 0
        %2755 = vmatprep.subr.bf16.mxu0 0
        %2756 = vmatpush1.bf16.msra.mxu0 0
        %2757 = vmatprep.subr.bf16.mxu0 0
        %2758 = vmatpush1.bf16.msra.mxu0 0
        %2759 = vmatprep.subr.bf16.mxu0 0
        %2760 = vmatpush1.bf16.msra.mxu0 0
        %2761 = vmatprep.mubr.bf16.mxu0 0
        %2762 = vmatmul.mubr.bf16.gmra.mrb[0].mxu0 %v2706
        %v2763 = vpop.f32.mrb[0].mxu0
        %v2764 = vadd.f32 0.0, %v2763
        %v2765 = vpop.f32.mrb[0].mxu0
        %v2766 = vadd.f32 0.0, %v2765
        %v2767 = vpop.f32.mrb[0].mxu0
        %v2768 = vadd.f32 0.0, %v2767
        %v2769 = vpop.f32.mrb[0].mxu0
        %v2770 = vadd.f32 0.0, %v2769
        %2771 = vmatprep.mubr.bf16.mxu0 0
        %2772 = vmatmul.mubr.bf16.gmra.mrb[0].mxu0 %v2709
        %v2773 = vpop.f32.mrb[0].mxu0
        %v2774 = vadd.f32 0.0, %v2773
        %v2775 = vpop.f32.mrb[0].mxu0
        %v2776 = vadd.f32 0.0, %v2775
        %v2777 = vpop.f32.mrb[0].mxu0
        %v2778 = vadd.f32 0.0, %v2777
        %v2779 = vpop.f32.mrb[0].mxu0
        %v2780 = vadd.f32 0.0, %v2779
        %2781 = vmatprep.mubr.bf16.mxu0 0
        %2782 = vmatmul.mubr.bf16.gmra.mrb[0].mxu0 %v2712
        %v2783 = vpop.f32.mrb[0].mxu0
        %v2784 = vadd.f32 0.0, %v2783
        %v2785 = vpop.f32.mrb[0].mxu0
        %v2786 = vadd.f32 0.0, %v2785
        %v2787 = vpop.f32.mrb[0].mxu0
        %v2788 = vadd.f32 0.0, %v2787
        %v2789 = vpop.f32.mrb[0].mxu0
        %v2790 = vadd.f32 0.0, %v2789
        %2791 = vmatprep.mubr.bf16.mxu0 0
        %2792 = vmatmul.mubr.bf16.gmra.mrb[0].mxu0 %v2715
        %v2793 = vpop.f32.mrb[0].mxu0
        %v2794 = vadd.f32 0.0, %v2793
        %v2795 = vpop.f32.mrb[0].mxu0
        %v2796 = vadd.f32 0.0, %v2795
        %v2797 = vpop.f32.mrb[0].mxu0
        %v2798 = vadd.f32 0.0, %v2797
        %v2799 = vpop.f32.mrb[0].mxu0
        %v2800 = vadd.f32 0.0, %v2799
        %2801 = vmatprep.mubr.bf16.mxu0 0
        %2802 = vmatmul.mubr.bf16.gmra.mrb[0].mxu0 %v2718
        %v2803 = vpop.f32.mrb[0].mxu0
        %v2804 = vadd.f32 0.0, %v2803
        %v2805 = vpop.f32.mrb[0].mxu0
        %v2806 = vadd.f32 0.0, %v2805
        %v2807 = vpop.f32.mrb[0].mxu0
        %v2808 = vadd.f32 0.0, %v2807
        %v2809 = vpop.f32.mrb[0].mxu0
        %v2810 = vadd.f32 0.0, %v2809
        %2811 = vmatprep.mubr.bf16.mxu0 0
        %2812 = vmatmul.mubr.bf16.gmra.mrb[0].mxu0 %v2721
        %v2813 = vpop.f32.mrb[0].mxu0
        %v2814 = vadd.f32 0.0, %v2813
        %v2815 = vpop.f32.mrb[0].mxu0
        %v2816 = vadd.f32 0.0, %v2815
        %v2817 = vpop.f32.mrb[0].mxu0
        %v2818 = vadd.f32 0.0, %v2817
        %v2819 = vpop.f32.mrb[0].mxu0
        %v2820 = vadd.f32 0.0, %v2819
        %2821 = vmatprep.mubr.bf16.mxu0 0
        %2822 = vmatmul.mubr.bf16.gmra.mrb[0].mxu0 %v2724
        %v2823 = vpop.f32.mrb[0].mxu0
        %v2824 = vadd.f32 0.0, %v2823
        %v2825 = vpop.f32.mrb[0].mxu0
        %v2826 = vadd.f32 0.0, %v2825
        %v2827 = vpop.f32.mrb[0].mxu0
        %v2828 = vadd.f32 0.0, %v2827
        %v2829 = vpop.f32.mrb[0].mxu0
        %v2830 = vadd.f32 0.0, %v2829
        %2831 = vmatprep.mubr.bf16.mxu0 0
        %2832 = vmatmul.mubr.bf16.gmra.mrb[0].mxu0 %v2727
        %v2833 = vpop.f32.mrb[0].mxu0
        %v2834 = vadd.f32 0.0, %v2833
        %v2835 = vpop.f32.mrb[0].mxu0
        %v2836 = vadd.f32 0.0, %v2835
        %v2837 = vpop.f32.mrb[0].mxu0
        %v2838 = vadd.f32 0.0, %v2837
        %v2839 = vpop.f32.mrb[0].mxu0
        %v2840 = vadd.f32 0.0, %v2839
        %2841 = vdwg.mxu0
        %v2842 = vunpack.c.l.bf16 %v2646
        %v2843 = vunpack.c.h.bf16 %v2646
        %v2844 = vunpack.c.l.bf16 %v2647
        %v2845 = vunpack.c.h.bf16 %v2647
        %v2846 = vunpack.c.l.bf16 %v2648
        %v2847 = vunpack.c.h.bf16 %v2648
        %v2848 = vunpack.c.l.bf16 %v2649
        %v2849 = vunpack.c.h.bf16 %v2649
        %v2850 = vunpack.c.l.bf16 %v2650
        %v2851 = vunpack.c.h.bf16 %v2650
        %v2852 = vunpack.c.l.bf16 %v2651
        %v2853 = vunpack.c.h.bf16 %v2651
        %v2854 = vunpack.c.l.bf16 %v2652
        %v2855 = vunpack.c.h.bf16 %v2652
        %v2856 = vunpack.c.l.bf16 %v2653
        %v2857 = vunpack.c.h.bf16 %v2653
        %v2858 = vunpack.c.l.bf16 %v2654
        %v2859 = vunpack.c.h.bf16 %v2654
        %v2860 = vunpack.c.l.bf16 %v2655
        %v2861 = vunpack.c.h.bf16 %v2655
        %v2862 = vunpack.c.l.bf16 %v2656
        %v2863 = vunpack.c.h.bf16 %v2656
        %v2864 = vunpack.c.l.bf16 %v2657
        %v2865 = vunpack.c.h.bf16 %v2657
        %v2866 = vunpack.c.l.bf16 %v2658
        %v2867 = vunpack.c.h.bf16 %v2658
        %v2868 = vunpack.c.l.bf16 %v2659
        %v2869 = vunpack.c.h.bf16 %v2659
        %v2870 = vunpack.c.l.bf16 %v2660
        %v2871 = vunpack.c.h.bf16 %v2660
        %v2872 = vunpack.c.l.bf16 %v2661
        %v2873 = vunpack.c.h.bf16 %v2661
        %v2874 = vmul.f32 %v2764, %v2842
        %v2875 = vmul.f32 %v2766, %v2843
        %v2876 = vmul.f32 %v2768, %v2844
        %v2877 = vmul.f32 %v2770, %v2845
        %v2878 = vmul.f32 %v2774, %v2846
        %v2879 = vmul.f32 %v2776, %v2847
        %v2880 = vmul.f32 %v2778, %v2848
        %v2881 = vmul.f32 %v2780, %v2849
        %v2882 = vmul.f32 %v2784, %v2850
        %v2883 = vmul.f32 %v2786, %v2851
        %v2884 = vmul.f32 %v2788, %v2852
        %v2885 = vmul.f32 %v2790, %v2853
        %v2886 = vmul.f32 %v2794, %v2854
        %v2887 = vmul.f32 %v2796, %v2855
        %v2888 = vmul.f32 %v2798, %v2856
        %v2889 = vmul.f32 %v2800, %v2857
        %v2890 = vmul.f32 %v2804, %v2858
        %v2891 = vmul.f32 %v2806, %v2859
        %v2892 = vmul.f32 %v2808, %v2860
        %v2893 = vmul.f32 %v2810, %v2861
        %v2894 = vmul.f32 %v2814, %v2862
        %v2895 = vmul.f32 %v2816, %v2863
        %v2896 = vmul.f32 %v2818, %v2864
        %v2897 = vmul.f32 %v2820, %v2865
        %v2898 = vmul.f32 %v2824, %v2866
        %v2899 = vmul.f32 %v2826, %v2867
        %v2900 = vmul.f32 %v2828, %v2868
        %v2901 = vmul.f32 %v2830, %v2869
        %v2902 = vmul.f32 %v2834, %v2870
        %v2903 = vmul.f32 %v2836, %v2871
        %v2904 = vmul.f32 %v2838, %v2872
        %v2905 = vmul.f32 %v2840, %v2873
        %v2906 = vpack.c.bf16 %v2876, %v2874
        %v2907 = vpack.c.bf16 %v2877, %v2875
        %v2908 = vpack.c.bf16 %v2880, %v2878
        %v2909 = vpack.c.bf16 %v2881, %v2879
        %v2910 = vpack.c.bf16 %v2884, %v2882
        %v2911 = vpack.c.bf16 %v2885, %v2883
        %v2912 = vpack.c.bf16 %v2888, %v2886
        %v2913 = vpack.c.bf16 %v2889, %v2887
        %v2914 = vpack.c.bf16 %v2892, %v2890
        %v2915 = vpack.c.bf16 %v2893, %v2891
        %v2916 = vpack.c.bf16 %v2896, %v2894
        %v2917 = vpack.c.bf16 %v2897, %v2895
        %v2918 = vpack.c.bf16 %v2900, %v2898
        %v2919 = vpack.c.bf16 %v2901, %v2899
        %v2920 = vpack.c.bf16 %v2904, %v2902
        %v2921 = vpack.c.bf16 %v2905, %v2903
        %v2922 = vpack.c.bf16 %v2585, %v2581
        %v2923 = vpack.c.bf16 %v2587, %v2583
        %2924 = vmatprep.subr.bf16.mxu0 %v2923
        %2925 = vmatpush1.bf16.msra.mxu0 %v2922
        %2926 = vmatprep.subr.bf16.mxu0 0
        %2927 = vmatpush1.bf16.msra.mxu0 0
        %2928 = vmatprep.subr.bf16.mxu0 0
        %2929 = vmatpush1.bf16.msra.mxu0 0
        %2930 = vmatprep.subr.bf16.mxu0 0
        %2931 = vmatpush1.bf16.msra.mxu0 0
        %2932 = vmatprep.subr.bf16.mxu0 0
        %2933 = vmatpush1.bf16.msra.mxu0 0
        %2934 = vmatprep.subr.bf16.mxu0 0
        %2935 = vmatpush1.bf16.msra.mxu0 0
        %2936 = vmatprep.subr.bf16.mxu0 0
        %2937 = vmatpush1.bf16.msra.mxu0 0
        %2938 = vmatprep.subr.bf16.mxu0 0
        %2939 = vmatpush1.bf16.msra.mxu0 0
        %2940 = vmatprep.subr.bf16.mxu0 0
        %2941 = vmatpush1.bf16.msra.mxu0 0
        %2942 = vmatprep.subr.bf16.mxu0 0
        %2943 = vmatpush1.bf16.msra.mxu0 0
        %2944 = vmatprep.subr.bf16.mxu0 0
        %2945 = vmatpush1.bf16.msra.mxu0 0
        %2946 = vmatprep.subr.bf16.mxu0 0
        %2947 = vmatpush1.bf16.msra.mxu0 0
        %2948 = vmatprep.subr.bf16.mxu0 0
        %2949 = vmatpush1.bf16.msra.mxu0 0
        %2950 = vmatprep.subr.bf16.mxu0 0
        %2951 = vmatpush1.bf16.msra.mxu0 0
        %2952 = vmatprep.subr.bf16.mxu0 0
        %2953 = vmatpush1.bf16.msra.mxu0 0
        %2954 = vmatprep.subr.bf16.mxu0 0
        %2955 = vmatpush1.bf16.msra.mxu0 0
        %2956 = vmatprep.mubr.bf16.mxu0 0
        %2957 = vmatmul.mubr.bf16.gmra.mrb[0].mxu0 %v2706
        %v2958 = vpop.f32.mrb[0].mxu0
        %v2959 = vadd.f32 0.0, %v2958
        %v2960 = vpop.f32.mrb[0].mxu0
        %v2961 = vadd.f32 0.0, %v2960
        %v2962 = vpop.f32.mrb[0].mxu0
        %v2963 = vadd.f32 0.0, %v2962
        %v2964 = vpop.f32.mrb[0].mxu0
        %v2965 = vadd.f32 0.0, %v2964
        %2966 = vmatprep.mubr.bf16.mxu0 0
        %2967 = vmatmul.mubr.bf16.gmra.mrb[0].mxu0 %v2709
        %v2968 = vpop.f32.mrb[0].mxu0
        %v2969 = vadd.f32 0.0, %v2968
        %v2970 = vpop.f32.mrb[0].mxu0
        %v2971 = vadd.f32 0.0, %v2970
        %v2972 = vpop.f32.mrb[0].mxu0
        %v2973 = vadd.f32 0.0, %v2972
        %v2974 = vpop.f32.mrb[0].mxu0
        %v2975 = vadd.f32 0.0, %v2974
        %2976 = vmatprep.mubr.bf16.mxu0 0
        %2977 = vmatmul.mubr.bf16.gmra.mrb[0].mxu0 %v2712
        %v2978 = vpop.f32.mrb[0].mxu0
        %v2979 = vadd.f32 0.0, %v2978
        %v2980 = vpop.f32.mrb[0].mxu0
        %v2981 = vadd.f32 0.0, %v2980
        %v2982 = vpop.f32.mrb[0].mxu0
        %v2983 = vadd.f32 0.0, %v2982
        %v2984 = vpop.f32.mrb[0].mxu0
        %v2985 = vadd.f32 0.0, %v2984
        %2986 = vmatprep.mubr.bf16.mxu0 0
        %2987 = vmatmul.mubr.bf16.gmra.mrb[0].mxu0 %v2715
        %v2988 = vpop.f32.mrb[0].mxu0
        %v2989 = vadd.f32 0.0, %v2988
        %v2990 = vpop.f32.mrb[0].mxu0
        %v2991 = vadd.f32 0.0, %v2990
        %v2992 = vpop.f32.mrb[0].mxu0
        %v2993 = vadd.f32 0.0, %v2992
        %v2994 = vpop.f32.mrb[0].mxu0
        %v2995 = vadd.f32 0.0, %v2994
        %2996 = vmatprep.mubr.bf16.mxu0 0
        %2997 = vmatmul.mubr.bf16.gmra.mrb[0].mxu0 %v2718
        %v2998 = vpop.f32.mrb[0].mxu0
        %v2999 = vadd.f32 0.0, %v2998
        %v3000 = vpop.f32.mrb[0].mxu0
        %v3001 = vadd.f32 0.0, %v3000
        %v3002 = vpop.f32.mrb[0].mxu0
        %v3003 = vadd.f32 0.0, %v3002
        %v3004 = vpop.f32.mrb[0].mxu0
        %v3005 = vadd.f32 0.0, %v3004
        %3006 = vmatprep.mubr.bf16.mxu0 0
        %3007 = vmatmul.mubr.bf16.gmra.mrb[0].mxu0 %v2721
        %v3008 = vpop.f32.mrb[0].mxu0
        %v3009 = vadd.f32 0.0, %v3008
        %v3010 = vpop.f32.mrb[0].mxu0
        %v3011 = vadd.f32 0.0, %v3010
        %v3012 = vpop.f32.mrb[0].mxu0
        %v3013 = vadd.f32 0.0, %v3012
        %v3014 = vpop.f32.mrb[0].mxu0
        %v3015 = vadd.f32 0.0, %v3014
        %3016 = vmatprep.mubr.bf16.mxu0 0
        %3017 = vmatmul.mubr.bf16.gmra.mrb[0].mxu0 %v2724
        %v3018 = vpop.f32.mrb[0].mxu0
        %v3019 = vadd.f32 0.0, %v3018
        %v3020 = vpop.f32.mrb[0].mxu0
        %v3021 = vadd.f32 0.0, %v3020
        %v3022 = vpop.f32.mrb[0].mxu0
        %v3023 = vadd.f32 0.0, %v3022
        %v3024 = vpop.f32.mrb[0].mxu0
        %v3025 = vadd.f32 0.0, %v3024
        %3026 = vmatprep.mubr.bf16.mxu0 0
        %3027 = vmatmul.mubr.bf16.gmra.mrb[0].mxu0 %v2727
        %v3028 = vpop.f32.mrb[0].mxu0
        %v3029 = vadd.f32 0.0, %v3028
        %v3030 = vpop.f32.mrb[0].mxu0
        %v3031 = vadd.f32 0.0, %v3030
        %v3032 = vpop.f32.mrb[0].mxu0
        %v3033 = vadd.f32 0.0, %v3032
        %v3034 = vpop.f32.mrb[0].mxu0
        %v3035 = vadd.f32 0.0, %v3034
        %3036 = vdwg.mxu0
        %v3037 = vmul.f32 %v2959, %v2842
        %v3038 = vmul.f32 %v2961, %v2843
        %v3039 = vmul.f32 %v2963, %v2844
        %v3040 = vmul.f32 %v2965, %v2845
        %v3041 = vmul.f32 %v2969, %v2846
        %v3042 = vmul.f32 %v2971, %v2847
        %v3043 = vmul.f32 %v2973, %v2848
        %v3044 = vmul.f32 %v2975, %v2849
        %v3045 = vmul.f32 %v2979, %v2850
        %v3046 = vmul.f32 %v2981, %v2851
        %v3047 = vmul.f32 %v2983, %v2852
        %v3048 = vmul.f32 %v2985, %v2853
        %v3049 = vmul.f32 %v2989, %v2854
        %v3050 = vmul.f32 %v2991, %v2855
        %v3051 = vmul.f32 %v2993, %v2856
        %v3052 = vmul.f32 %v2995, %v2857
        %v3053 = vmul.f32 %v2999, %v2858
        %v3054 = vmul.f32 %v3001, %v2859
        %v3055 = vmul.f32 %v3003, %v2860
        %v3056 = vmul.f32 %v3005, %v2861
        %v3057 = vmul.f32 %v3009, %v2862
        %v3058 = vmul.f32 %v3011, %v2863
        %v3059 = vmul.f32 %v3013, %v2864
        %v3060 = vmul.f32 %v3015, %v2865
        %v3061 = vmul.f32 %v3019, %v2866
        %v3062 = vmul.f32 %v3021, %v2867
        %v3063 = vmul.f32 %v3023, %v2868
        %v3064 = vmul.f32 %v3025, %v2869
        %v3065 = vmul.f32 %v3029, %v2870
        %v3066 = vmul.f32 %v3031, %v2871
        %v3067 = vmul.f32 %v3033, %v2872
        %v3068 = vmul.f32 %v3035, %v2873
        %v3069 = vpack.c.bf16 %v3039, %v3037
        %v3070 = vpack.c.bf16 %v3040, %v3038
        %v3071 = vpack.c.bf16 %v3043, %v3041
        %v3072 = vpack.c.bf16 %v3044, %v3042
        %v3073 = vpack.c.bf16 %v3047, %v3045
        %v3074 = vpack.c.bf16 %v3048, %v3046
        %v3075 = vpack.c.bf16 %v3051, %v3049
        %v3076 = vpack.c.bf16 %v3052, %v3050
        %v3077 = vpack.c.bf16 %v3055, %v3053
        %v3078 = vpack.c.bf16 %v3056, %v3054
        %v3079 = vpack.c.bf16 %v3059, %v3057
        %v3080 = vpack.c.bf16 %v3060, %v3058
        %v3081 = vpack.c.bf16 %v3063, %v3061
        %v3082 = vpack.c.bf16 %v3064, %v3062
        %v3083 = vpack.c.bf16 %v3067, %v3065
        %v3084 = vpack.c.bf16 %v3068, %v3066
        %v3085 = vld [vmem:[#allocation3] sm:$0xff]
        %v3086 = vld [vmem:[#allocation3 + $0x8] sm:$0xff]
        %v3087 = vld [vmem:[#allocation3 + $0x10] sm:$0xff]
        %v3088 = vld [vmem:[#allocation3 + $0x18] sm:$0xff]
        %v3089 = vld [vmem:[#allocation3 + $0x20] sm:$0xff]
        %v3090 = vld [vmem:[#allocation3 + $0x28] sm:$0xff]
        %v3091 = vld [vmem:[#allocation3 + $0x30] sm:$0xff]
        %v3092 = vld [vmem:[#allocation3 + $0x38] sm:$0xff]
        %v3093 = vld [vmem:[#allocation3 + $0x40] sm:$0xff]
        %v3094 = vld [vmem:[#allocation3 + $0x48] sm:$0xff]
        %v3095 = vld [vmem:[#allocation3 + $0x50] sm:$0xff]
        %v3096 = vld [vmem:[#allocation3 + $0x58] sm:$0xff]
        %v3097 = vld [vmem:[#allocation3 + $0x60] sm:$0xff]
        %v3098 = vld [vmem:[#allocation3 + $0x68] sm:$0xff]
        %v3099 = vld [vmem:[#allocation3 + $0x70] sm:$0xff]
        %v3100 = vld [vmem:[#allocation3 + $0x78] sm:$0xff]
        %v3101 = vld [vmem:[%s1137] sm:$0xff]
        %v3102 = vld [vmem:[%s1137 + $0x8] sm:$0xff]
        %v3103 = vld [vmem:[%s1137 + $0x10] sm:$0xff]
        %v3104 = vld [vmem:[%s1137 + $0x18] sm:$0xff]
        %v3109 = vunpack.c.l.b16 %v3101
        %v3110 = vunpack.c.h.b16 %v3101
        %v3111 = vunpack.c.l.b16 %v3102
        %v3112 = vunpack.c.h.b16 %v3102
        %v3113 = vunpack.c.l.b16 %v3103
        %v3114 = vunpack.c.h.b16 %v3103
        %v3115 = vunpack.c.l.b16 %v3104
        %v3116 = vunpack.c.h.b16 %v3104
        %v3117 = vpack.c.b16 %v3111, %v3109
        %v3118 = vpack.c.b16 %v3112, %v3110
        %v3119 = vpack.c.b16 %v3115, %v3113
        %v3120 = vpack.c.b16 %v3116, %v3114
        %v3126 = vsel %vm2456, %v3085, 0
        %v3129 = vsel %vm2456, %v3086, 0
        %v3132 = vsel %vm2456, %v3087, 0
        %v3135 = vsel %vm2456, %v3088, 0
        %v3138 = vsel %vm2456, %v3089, 0
        %v3141 = vsel %vm2456, %v3090, 0
        %v3144 = vsel %vm2456, %v3091, 0
        %v3147 = vsel %vm2456, %v3092, 0
        %v3150 = vsel %vm2456, %v3093, 0
        %v3153 = vsel %vm2456, %v3094, 0
        %v3156 = vsel %vm2456, %v3095, 0
        %v3159 = vsel %vm2456, %v3096, 0
        %v3162 = vsel %vm2456, %v3097, 0
        %v3165 = vsel %vm2456, %v3098, 0
        %v3168 = vsel %vm2456, %v3099, 0
        %v3171 = vsel %vm2456, %v3100, 0
        %3173 = vmatprep.subr.bf16.mxu0 %v3118
        %3174 = vmatpush1.bf16.msra.mxu0 %v3117
        %3175 = vmatprep.subr.bf16.mxu0 %v3120
        %3176 = vmatpush1.bf16.msra.mxu0 %v3119
        %3177 = vmatprep.subr.bf16.mxu0 0
        %3178 = vmatpush1.bf16.msra.mxu0 0
        %3179 = vmatprep.subr.bf16.mxu0 0
        %3180 = vmatpush1.bf16.msra.mxu0 0
        %3181 = vmatprep.subr.bf16.mxu0 0
        %3182 = vmatpush1.bf16.msra.mxu0 0
        %3183 = vmatprep.subr.bf16.mxu0 0
        %3184 = vmatpush1.bf16.msra.mxu0 0
        %3185 = vmatprep.subr.bf16.mxu0 0
        %3186 = vmatpush1.bf16.msra.mxu0 0
        %3187 = vmatprep.subr.bf16.mxu0 0
        %3188 = vmatpush1.bf16.msra.mxu0 0
        %3189 = vmatprep.subr.bf16.mxu0 0
        %3190 = vmatpush1.bf16.msra.mxu0 0
        %3191 = vmatprep.subr.bf16.mxu0 0
        %3192 = vmatpush1.bf16.msra.mxu0 0
        %3193 = vmatprep.subr.bf16.mxu0 0
        %3194 = vmatpush1.bf16.msra.mxu0 0
        %3195 = vmatprep.subr.bf16.mxu0 0
        %3196 = vmatpush1.bf16.msra.mxu0 0
        %3197 = vmatprep.subr.bf16.mxu0 0
        %3198 = vmatpush1.bf16.msra.mxu0 0
        %3199 = vmatprep.subr.bf16.mxu0 0
        %3200 = vmatpush1.bf16.msra.mxu0 0
        %3201 = vmatprep.subr.bf16.mxu0 0
        %3202 = vmatpush1.bf16.msra.mxu0 0
        %3203 = vmatprep.subr.bf16.mxu0 0
        %3204 = vmatpush1.bf16.msra.mxu0 0
        %3205 = vmatprep.mubr.bf16.mxu0 0
        %3206 = vmatmul.mubr.bf16.gmra.mrb[0].mxu0 %v3126
        %v3207 = vpop.f32.mrb[0].mxu0
        %v3208 = vadd.f32 0.0, %v3207
        %v3209 = vpop.f32.mrb[0].mxu0
        %v3210 = vadd.f32 0.0, %v3209
        %v3211 = vpop.f32.mrb[0].mxu0
        %v3212 = vadd.f32 0.0, %v3211
        %v3213 = vpop.f32.mrb[0].mxu0
        %v3214 = vadd.f32 0.0, %v3213
        %3215 = vmatprep.mubr.bf16.mxu0 0
        %3216 = vmatmul.mubr.bf16.gmra.mrb[0].mxu0 %v3129
        %v3217 = vpop.f32.mrb[0].mxu0
        %v3218 = vadd.f32 0.0, %v3217
        %v3219 = vpop.f32.mrb[0].mxu0
        %v3220 = vadd.f32 0.0, %v3219
        %v3221 = vpop.f32.mrb[0].mxu0
        %v3222 = vadd.f32 0.0, %v3221
        %v3223 = vpop.f32.mrb[0].mxu0
        %v3224 = vadd.f32 0.0, %v3223
        %3225 = vmatprep.mubr.bf16.mxu0 0
        %3226 = vmatmul.mubr.bf16.gmra.mrb[0].mxu0 %v3132
        %v3227 = vpop.f32.mrb[0].mxu0
        %v3228 = vadd.f32 0.0, %v3227
        %v3229 = vpop.f32.mrb[0].mxu0
        %v3230 = vadd.f32 0.0, %v3229
        %v3231 = vpop.f32.mrb[0].mxu0
        %v3232 = vadd.f32 0.0, %v3231
        %v3233 = vpop.f32.mrb[0].mxu0
        %v3234 = vadd.f32 0.0, %v3233
        %3235 = vmatprep.mubr.bf16.mxu0 0
        %3236 = vmatmul.mubr.bf16.gmra.mrb[0].mxu0 %v3135
        %v3237 = vpop.f32.mrb[0].mxu0
        %v3238 = vadd.f32 0.0, %v3237
        %v3239 = vpop.f32.mrb[0].mxu0
        %v3240 = vadd.f32 0.0, %v3239
        %v3241 = vpop.f32.mrb[0].mxu0
        %v3242 = vadd.f32 0.0, %v3241
        %v3243 = vpop.f32.mrb[0].mxu0
        %v3244 = vadd.f32 0.0, %v3243
        %3245 = vmatprep.mubr.bf16.mxu0 0
        %3246 = vmatmul.mubr.bf16.gmra.mrb[0].mxu0 %v3138
        %v3247 = vpop.f32.mrb[0].mxu0
        %v3248 = vadd.f32 0.0, %v3247
        %v3249 = vpop.f32.mrb[0].mxu0
        %v3250 = vadd.f32 0.0, %v3249
        %v3251 = vpop.f32.mrb[0].mxu0
        %v3252 = vadd.f32 0.0, %v3251
        %v3253 = vpop.f32.mrb[0].mxu0
        %v3254 = vadd.f32 0.0, %v3253
        %3255 = vmatprep.mubr.bf16.mxu0 0
        %3256 = vmatmul.mubr.bf16.gmra.mrb[0].mxu0 %v3141
        %v3257 = vpop.f32.mrb[0].mxu0
        %v3258 = vadd.f32 0.0, %v3257
        %v3259 = vpop.f32.mrb[0].mxu0
        %v3260 = vadd.f32 0.0, %v3259
        %v3261 = vpop.f32.mrb[0].mxu0
        %v3262 = vadd.f32 0.0, %v3261
        %v3263 = vpop.f32.mrb[0].mxu0
        %v3264 = vadd.f32 0.0, %v3263
        %3265 = vmatprep.mubr.bf16.mxu0 0
        %3266 = vmatmul.mubr.bf16.gmra.mrb[0].mxu0 %v3144
        %v3267 = vpop.f32.mrb[0].mxu0
        %v3268 = vadd.f32 0.0, %v3267
        %v3269 = vpop.f32.mrb[0].mxu0
        %v3270 = vadd.f32 0.0, %v3269
        %v3271 = vpop.f32.mrb[0].mxu0
        %v3272 = vadd.f32 0.0, %v3271
        %v3273 = vpop.f32.mrb[0].mxu0
        %v3274 = vadd.f32 0.0, %v3273
        %3275 = vmatprep.mubr.bf16.mxu0 0
        %3276 = vmatmul.mubr.bf16.gmra.mrb[0].mxu0 %v3147
        %v3277 = vpop.f32.mrb[0].mxu0
        %v3278 = vadd.f32 0.0, %v3277
        %v3279 = vpop.f32.mrb[0].mxu0
        %v3280 = vadd.f32 0.0, %v3279
        %v3281 = vpop.f32.mrb[0].mxu0
        %v3282 = vadd.f32 0.0, %v3281
        %v3283 = vpop.f32.mrb[0].mxu0
        %v3284 = vadd.f32 0.0, %v3283
        %3285 = vmatprep.mubr.bf16.mxu0 0
        %3286 = vmatmul.mubr.bf16.gmra.mrb[0].mxu0 %v3150
        %v3287 = vpop.f32.mrb[0].mxu0
        %v3288 = vadd.f32 0.0, %v3287
        %v3289 = vpop.f32.mrb[0].mxu0
        %v3290 = vadd.f32 0.0, %v3289
        %v3291 = vpop.f32.mrb[0].mxu0
        %v3292 = vadd.f32 0.0, %v3291
        %v3293 = vpop.f32.mrb[0].mxu0
        %v3294 = vadd.f32 0.0, %v3293
        %3295 = vmatprep.mubr.bf16.mxu0 0
        %3296 = vmatmul.mubr.bf16.gmra.mrb[0].mxu0 %v3153
        %v3297 = vpop.f32.mrb[0].mxu0
        %v3298 = vadd.f32 0.0, %v3297
        %v3299 = vpop.f32.mrb[0].mxu0
        %v3300 = vadd.f32 0.0, %v3299
        %v3301 = vpop.f32.mrb[0].mxu0
        %v3302 = vadd.f32 0.0, %v3301
        %v3303 = vpop.f32.mrb[0].mxu0
        %v3304 = vadd.f32 0.0, %v3303
        %3305 = vmatprep.mubr.bf16.mxu0 0
        %3306 = vmatmul.mubr.bf16.gmra.mrb[0].mxu0 %v3156
        %v3307 = vpop.f32.mrb[0].mxu0
        %v3308 = vadd.f32 0.0, %v3307
        %v3309 = vpop.f32.mrb[0].mxu0
        %v3310 = vadd.f32 0.0, %v3309
        %v3311 = vpop.f32.mrb[0].mxu0
        %v3312 = vadd.f32 0.0, %v3311
        %v3313 = vpop.f32.mrb[0].mxu0
        %v3314 = vadd.f32 0.0, %v3313
        %3315 = vmatprep.mubr.bf16.mxu0 0
        %3316 = vmatmul.mubr.bf16.gmra.mrb[0].mxu0 %v3159
        %v3317 = vpop.f32.mrb[0].mxu0
        %v3318 = vadd.f32 0.0, %v3317
        %v3319 = vpop.f32.mrb[0].mxu0
        %v3320 = vadd.f32 0.0, %v3319
        %v3321 = vpop.f32.mrb[0].mxu0
        %v3322 = vadd.f32 0.0, %v3321
        %v3323 = vpop.f32.mrb[0].mxu0
        %v3324 = vadd.f32 0.0, %v3323
        %3325 = vmatprep.mubr.bf16.mxu0 0
        %3326 = vmatmul.mubr.bf16.gmra.mrb[0].mxu0 %v3162
        %v3327 = vpop.f32.mrb[0].mxu0
        %v3328 = vadd.f32 0.0, %v3327
        %v3329 = vpop.f32.mrb[0].mxu0
        %v3330 = vadd.f32 0.0, %v3329
        %v3331 = vpop.f32.mrb[0].mxu0
        %v3332 = vadd.f32 0.0, %v3331
        %v3333 = vpop.f32.mrb[0].mxu0
        %v3334 = vadd.f32 0.0, %v3333
        %3335 = vmatprep.mubr.bf16.mxu0 0
        %3336 = vmatmul.mubr.bf16.gmra.mrb[0].mxu0 %v3165
        %v3337 = vpop.f32.mrb[0].mxu0
        %v3338 = vadd.f32 0.0, %v3337
        %v3339 = vpop.f32.mrb[0].mxu0
        %v3340 = vadd.f32 0.0, %v3339
        %v3341 = vpop.f32.mrb[0].mxu0
        %v3342 = vadd.f32 0.0, %v3341
        %v3343 = vpop.f32.mrb[0].mxu0
        %v3344 = vadd.f32 0.0, %v3343
        %3345 = vmatprep.mubr.bf16.mxu0 0
        %3346 = vmatmul.mubr.bf16.gmra.mrb[0].mxu0 %v3168
        %v3347 = vpop.f32.mrb[0].mxu0
        %v3348 = vadd.f32 0.0, %v3347
        %v3349 = vpop.f32.mrb[0].mxu0
        %v3350 = vadd.f32 0.0, %v3349
        %v3351 = vpop.f32.mrb[0].mxu0
        %v3352 = vadd.f32 0.0, %v3351
        %v3353 = vpop.f32.mrb[0].mxu0
        %v3354 = vadd.f32 0.0, %v3353
        %3355 = vmatprep.mubr.bf16.mxu0 0
        %3356 = vmatmul.mubr.bf16.gmra.mrb[0].mxu0 %v3171
        %v3357 = vpop.f32.mrb[0].mxu0
        %v3358 = vadd.f32 0.0, %v3357
        %v3359 = vpop.f32.mrb[0].mxu0
        %v3360 = vadd.f32 0.0, %v3359
        %v3361 = vpop.f32.mrb[0].mxu0
        %v3362 = vadd.f32 0.0, %v3361
        %v3363 = vpop.f32.mrb[0].mxu0
        %v3364 = vadd.f32 0.0, %v3363
        %3365 = vdwg.mxu0
        %v3366 = vld [vmem:[%s27] sm:$0xff]
        %v3367 = vld [vmem:[%s27 + $0x8] sm:$0xff]
        %v3368 = vld [vmem:[%s27 + $0x10] sm:$0xff]
        %v3369 = vld [vmem:[%s27 + $0x18] sm:$0xff]
        %v3370 = vld [vmem:[%s27 + $0x20] sm:$0xff]
        %v3371 = vld [vmem:[%s27 + $0x28] sm:$0xff]
        %v3372 = vld [vmem:[%s27 + $0x30] sm:$0xff]
        %v3373 = vld [vmem:[%s27 + $0x38] sm:$0xff]
        %v3374 = vld [vmem:[%s27 + $0x40] sm:$0xff]
        %v3375 = vld [vmem:[%s27 + $0x48] sm:$0xff]
        %v3376 = vld [vmem:[%s27 + $0x50] sm:$0xff]
        %v3377 = vld [vmem:[%s27 + $0x58] sm:$0xff]
        %v3378 = vld [vmem:[%s27 + $0x60] sm:$0xff]
        %v3379 = vld [vmem:[%s27 + $0x68] sm:$0xff]
        %v3380 = vld [vmem:[%s27 + $0x70] sm:$0xff]
        %v3381 = vld [vmem:[%s27 + $0x78] sm:$0xff]
        %v3382 = vld [vmem:[%s27 + $0x80] sm:$0xff]
        %v3383 = vld [vmem:[%s27 + $0x88] sm:$0xff]
        %v3384 = vld [vmem:[%s27 + $0x90] sm:$0xff]
        %v3385 = vld [vmem:[%s27 + $0x98] sm:$0xff]
        %v3386 = vld [vmem:[%s27 + $0xa0] sm:$0xff]
        %v3387 = vld [vmem:[%s27 + $0xa8] sm:$0xff]
        %v3388 = vld [vmem:[%s27 + $0xb0] sm:$0xff]
        %v3389 = vld [vmem:[%s27 + $0xb8] sm:$0xff]
        %v3390 = vld [vmem:[%s27 + $0xc0] sm:$0xff]
        %v3391 = vld [vmem:[%s27 + $0xc8] sm:$0xff]
        %v3392 = vld [vmem:[%s27 + $0xd0] sm:$0xff]
        %v3393 = vld [vmem:[%s27 + $0xd8] sm:$0xff]
        %v3394 = vld [vmem:[%s27 + $0xe0] sm:$0xff]
        %v3395 = vld [vmem:[%s27 + $0xe8] sm:$0xff]
        %v3396 = vld [vmem:[%s27 + $0xf0] sm:$0xff]
        %v3397 = vld [vmem:[%s27 + $0xf8] sm:$0xff]
        %v3398 = vunpack.c.l.bf16 %v3366
        %v3399 = vunpack.c.h.bf16 %v3366
        %v3400 = vunpack.c.l.bf16 %v3367
        %v3401 = vunpack.c.h.bf16 %v3367
        %v3402 = vunpack.c.l.bf16 %v3368
        %v3403 = vunpack.c.h.bf16 %v3368
        %v3404 = vunpack.c.l.bf16 %v3369
        %v3405 = vunpack.c.h.bf16 %v3369
        %v3406 = vunpack.c.l.bf16 %v3370
        %v3407 = vunpack.c.h.bf16 %v3370
        %v3408 = vunpack.c.l.bf16 %v3371
        %v3409 = vunpack.c.h.bf16 %v3371
        %v3410 = vunpack.c.l.bf16 %v3372
        %v3411 = vunpack.c.h.bf16 %v3372
        %v3412 = vunpack.c.l.bf16 %v3373
        %v3413 = vunpack.c.h.bf16 %v3373
        %v3414 = vunpack.c.l.bf16 %v3374
        %v3415 = vunpack.c.h.bf16 %v3374
        %v3416 = vunpack.c.l.bf16 %v3375
        %v3417 = vunpack.c.h.bf16 %v3375
        %v3418 = vunpack.c.l.bf16 %v3376
        %v3419 = vunpack.c.h.bf16 %v3376
        %v3420 = vunpack.c.l.bf16 %v3377
        %v3421 = vunpack.c.h.bf16 %v3377
        %v3422 = vunpack.c.l.bf16 %v3378
        %v3423 = vunpack.c.h.bf16 %v3378
        %v3424 = vunpack.c.l.bf16 %v3379
        %v3425 = vunpack.c.h.bf16 %v3379
        %v3426 = vunpack.c.l.bf16 %v3380
        %v3427 = vunpack.c.h.bf16 %v3380
        %v3428 = vunpack.c.l.bf16 %v3381
        %v3429 = vunpack.c.h.bf16 %v3381
        %v3430 = vunpack.c.l.bf16 %v3382
        %v3431 = vunpack.c.h.bf16 %v3382
        %v3432 = vunpack.c.l.bf16 %v3383
        %v3433 = vunpack.c.h.bf16 %v3383
        %v3434 = vunpack.c.l.bf16 %v3384
        %v3435 = vunpack.c.h.bf16 %v3384
        %v3436 = vunpack.c.l.bf16 %v3385
        %v3437 = vunpack.c.h.bf16 %v3385
        %v3438 = vunpack.c.l.bf16 %v3386
        %v3439 = vunpack.c.h.bf16 %v3386
        %v3440 = vunpack.c.l.bf16 %v3387
        %v3441 = vunpack.c.h.bf16 %v3387
        %v3442 = vunpack.c.l.bf16 %v3388
        %v3443 = vunpack.c.h.bf16 %v3388
        %v3444 = vunpack.c.l.bf16 %v3389
        %v3445 = vunpack.c.h.bf16 %v3389
        %v3446 = vunpack.c.l.bf16 %v3390
        %v3447 = vunpack.c.h.bf16 %v3390
        %v3448 = vunpack.c.l.bf16 %v3391
        %v3449 = vunpack.c.h.bf16 %v3391
        %v3450 = vunpack.c.l.bf16 %v3392
        %v3451 = vunpack.c.h.bf16 %v3392
        %v3452 = vunpack.c.l.bf16 %v3393
        %v3453 = vunpack.c.h.bf16 %v3393
        %v3454 = vunpack.c.l.bf16 %v3394
        %v3455 = vunpack.c.h.bf16 %v3394
        %v3456 = vunpack.c.l.bf16 %v3395
        %v3457 = vunpack.c.h.bf16 %v3395
        %v3458 = vunpack.c.l.bf16 %v3396
        %v3459 = vunpack.c.h.bf16 %v3396
        %v3460 = vunpack.c.l.bf16 %v3397
        %v3461 = vunpack.c.h.bf16 %v3397
        %v3462 = vmul.f32 %v3208, %v3398
        %v3463 = vmul.f32 %v3210, %v3399
        %v3464 = vmul.f32 %v3212, %v3400
        %v3465 = vmul.f32 %v3214, %v3401
        %v3466 = vmul.f32 %v3218, %v3402
        %v3467 = vmul.f32 %v3220, %v3403
        %v3468 = vmul.f32 %v3222, %v3404
        %v3469 = vmul.f32 %v3224, %v3405
        %v3470 = vmul.f32 %v3228, %v3406
        %v3471 = vmul.f32 %v3230, %v3407
        %v3472 = vmul.f32 %v3232, %v3408
        %v3473 = vmul.f32 %v3234, %v3409
        %v3474 = vmul.f32 %v3238, %v3410
        %v3475 = vmul.f32 %v3240, %v3411
        %v3476 = vmul.f32 %v3242, %v3412
        %v3477 = vmul.f32 %v3244, %v3413
        %v3478 = vmul.f32 %v3248, %v3414
        %v3479 = vmul.f32 %v3250, %v3415
        %v3480 = vmul.f32 %v3252, %v3416
        %v3481 = vmul.f32 %v3254, %v3417
        %v3482 = vmul.f32 %v3258, %v3418
        %v3483 = vmul.f32 %v3260, %v3419
        %v3484 = vmul.f32 %v3262, %v3420
        %v3485 = vmul.f32 %v3264, %v3421
        %v3486 = vmul.f32 %v3268, %v3422
        %v3487 = vmul.f32 %v3270, %v3423
        %v3488 = vmul.f32 %v3272, %v3424
        %v3489 = vmul.f32 %v3274, %v3425
        %v3490 = vmul.f32 %v3278, %v3426
        %v3491 = vmul.f32 %v3280, %v3427
        %v3492 = vmul.f32 %v3282, %v3428
        %v3493 = vmul.f32 %v3284, %v3429
        %v3494 = vmul.f32 %v3288, %v3430
        %v3495 = vmul.f32 %v3290, %v3431
        %v3496 = vmul.f32 %v3292, %v3432
        %v3497 = vmul.f32 %v3294, %v3433
        %v3498 = vmul.f32 %v3298, %v3434
        %v3499 = vmul.f32 %v3300, %v3435
        %v3500 = vmul.f32 %v3302, %v3436
        %v3501 = vmul.f32 %v3304, %v3437
        %v3502 = vmul.f32 %v3308, %v3438
        %v3503 = vmul.f32 %v3310, %v3439
        %v3504 = vmul.f32 %v3312, %v3440
        %v3505 = vmul.f32 %v3314, %v3441
        %v3506 = vmul.f32 %v3318, %v3442
        %v3507 = vmul.f32 %v3320, %v3443
        %v3508 = vmul.f32 %v3322, %v3444
        %v3509 = vmul.f32 %v3324, %v3445
        %v3510 = vmul.f32 %v3328, %v3446
        %v3511 = vmul.f32 %v3330, %v3447
        %v3512 = vmul.f32 %v3332, %v3448
        %v3513 = vmul.f32 %v3334, %v3449
        %v3514 = vmul.f32 %v3338, %v3450
        %v3515 = vmul.f32 %v3340, %v3451
        %v3516 = vmul.f32 %v3342, %v3452
        %v3517 = vmul.f32 %v3344, %v3453
        %v3518 = vmul.f32 %v3348, %v3454
        %v3519 = vmul.f32 %v3350, %v3455
        %v3520 = vmul.f32 %v3352, %v3456
        %v3521 = vmul.f32 %v3354, %v3457
        %v3522 = vmul.f32 %v3358, %v3458
        %v3523 = vmul.f32 %v3360, %v3459
        %v3524 = vmul.f32 %v3362, %v3460
        %v3525 = vmul.f32 %v3364, %v3461
        %v3526 = vpack.c.bf16 %v3464, %v3462
        %v3527 = vpack.c.bf16 %v3465, %v3463
        %v3528 = vpack.c.bf16 %v3468, %v3466
        %v3529 = vpack.c.bf16 %v3469, %v3467
        %v3530 = vpack.c.bf16 %v3472, %v3470
        %v3531 = vpack.c.bf16 %v3473, %v3471
        %v3532 = vpack.c.bf16 %v3476, %v3474
        %v3533 = vpack.c.bf16 %v3477, %v3475
        %v3534 = vpack.c.bf16 %v3480, %v3478
        %v3535 = vpack.c.bf16 %v3481, %v3479
        %v3536 = vpack.c.bf16 %v3484, %v3482
        %v3537 = vpack.c.bf16 %v3485, %v3483
        %v3538 = vpack.c.bf16 %v3488, %v3486
        %v3539 = vpack.c.bf16 %v3489, %v3487
        %v3540 = vpack.c.bf16 %v3492, %v3490
        %v3541 = vpack.c.bf16 %v3493, %v3491
        %v3542 = vpack.c.bf16 %v3496, %v3494
        %v3543 = vpack.c.bf16 %v3497, %v3495
        %v3544 = vpack.c.bf16 %v3500, %v3498
        %v3545 = vpack.c.bf16 %v3501, %v3499
        %v3546 = vpack.c.bf16 %v3504, %v3502
        %v3547 = vpack.c.bf16 %v3505, %v3503
        %v3548 = vpack.c.bf16 %v3508, %v3506
        %v3549 = vpack.c.bf16 %v3509, %v3507
        %v3550 = vpack.c.bf16 %v3512, %v3510
        %v3551 = vpack.c.bf16 %v3513, %v3511
        %v3552 = vpack.c.bf16 %v3516, %v3514
        %v3553 = vpack.c.bf16 %v3517, %v3515
        %v3554 = vpack.c.bf16 %v3520, %v3518
        %v3555 = vpack.c.bf16 %v3521, %v3519
        %v3556 = vpack.c.bf16 %v3524, %v3522
        %v3557 = vpack.c.bf16 %v3525, %v3523
        %v3558 = vpack.c.bf16 %v2499, %v2495
        %v3559 = vpack.c.bf16 %v2501, %v2497
        %v3560 = vld [vmem:[%s37] sm:$0xf]
        %v3561 = vld [vmem:[%s37 + $0x4] sm:$0xf]
        %v3562 = vld [vmem:[%s35] sm:$0xff]
        %v3563 = vld [vmem:[%s35 + $0x8] sm:$0xff]
        %3564 = vmatprep.subr.bf16.mxu0 %v3527
        %3565 = vmatpush1.bf16.xpose.msra.mxu0 %v3526
        %3566 = vmatprep.subr.bf16.mxu0 %v3529
        %3567 = vmatpush1.bf16.xpose.msra.mxu0 %v3528
        %3568 = vmatprep.subr.bf16.mxu0 %v3531
        %3569 = vmatpush1.bf16.xpose.msra.mxu0 %v3530
        %3570 = vmatprep.subr.bf16.mxu0 %v3533
        %3571 = vmatpush1.bf16.xpose.msra.mxu0 %v3532
        %3572 = vmatprep.subr.bf16.mxu0 %v3535
        %3573 = vmatpush1.bf16.xpose.msra.mxu0 %v3534
        %3574 = vmatprep.subr.bf16.mxu0 %v3537
        %3575 = vmatpush1.bf16.xpose.msra.mxu0 %v3536
        %3576 = vmatprep.subr.bf16.mxu0 %v3539
        %3577 = vmatpush1.bf16.xpose.msra.mxu0 %v3538
        %3578 = vmatprep.subr.bf16.mxu0 %v3541
        %3579 = vmatpush1.bf16.xpose.msra.mxu0 %v3540
        %3580 = vmatprep.subr.bf16.mxu0 %v3543
        %3581 = vmatpush1.bf16.xpose.msra.mxu0 %v3542
        %3582 = vmatprep.subr.bf16.mxu0 %v3545
        %3583 = vmatpush1.bf16.xpose.msra.mxu0 %v3544
        %3584 = vmatprep.subr.bf16.mxu0 %v3547
        %3585 = vmatpush1.bf16.xpose.msra.mxu0 %v3546
        %3586 = vmatprep.subr.bf16.mxu0 %v3549
        %3587 = vmatpush1.bf16.xpose.msra.mxu0 %v3548
        %3588 = vmatprep.subr.bf16.mxu0 %v3551
        %3589 = vmatpush1.bf16.xpose.msra.mxu0 %v3550
        %3590 = vmatprep.subr.bf16.mxu0 %v3553
        %3591 = vmatpush1.bf16.xpose.msra.mxu0 %v3552
        %3592 = vmatprep.subr.bf16.mxu0 %v3555
        %3593 = vmatpush1.bf16.xpose.msra.mxu0 %v3554
        %3594 = vmatprep.subr.bf16.mxu0 %v3557
        %3595 = vmatpush1.bf16.xpose.msra.mxu0 %v3556
        %3596 = vmatprep.mubr.bf16.mxu0 %v3559
        %3597 = vmatmul.mubr.bf16.gmra.mrb[0].mxu0 %v3558
        %v3598 = vpop.f32.mrb[0].mxu0
        %v3599 = vadd.f32 0.0, %v3598
        %v3600 = vpop.f32.mrb[0].mxu0
        %v3601 = vadd.f32 0.0, %v3600
        %v3602 = vpop.f32.mrb[0].mxu0
        %v3603 = vadd.f32 0.0, %v3602
        %v3604 = vpop.f32.mrb[0].mxu0
        %v3605 = vadd.f32 0.0, %v3604
        %3606 = vdwg.mxu0
        %v3607 = vunpack.c.l.bf16 %v3562
        %v3608 = vunpack.c.h.bf16 %v3562
        %v3609 = vunpack.c.l.bf16 %v3563
        %v3610 = vunpack.c.h.bf16 %v3563
        %v3611 = vmul.f32 %v3599, %v3607
        %v3612 = vmul.f32 %v3601, %v3608
        %v3613 = vmul.f32 %v3603, %v3609
        %v3614 = vmul.f32 %v3605, %v3610
        %v3615 = vpack.c.bf16 %v3613, %v3611
        %v3616 = vpack.c.bf16 %v3614, %v3612
        %v3617 = vld [vmem:[%s29] sm:$0xf]
        %v3618 = vld [vmem:[%s29 + $0x4] sm:$0xf]
        %v3619 = vld [vmem:[%s29 + $0x8] sm:$0xf]
        %v3620 = vld [vmem:[%s29 + $0xc] sm:$0xf]
        %v3621 = vld [vmem:[%s29 + $0x10] sm:$0xf]
        %v3622 = vld [vmem:[%s29 + $0x14] sm:$0xf]
        %v3623 = vld [vmem:[%s29 + $0x18] sm:$0xf]
        %v3624 = vld [vmem:[%s29 + $0x1c] sm:$0xf]
        %v3625 = vld [vmem:[%s29 + $0x20] sm:$0xf]
        %v3626 = vld [vmem:[%s29 + $0x24] sm:$0xf]
        %v3627 = vld [vmem:[%s29 + $0x28] sm:$0xf]
        %v3628 = vld [vmem:[%s29 + $0x2c] sm:$0xf]
        %v3629 = vld [vmem:[%s29 + $0x30] sm:$0xf]
        %v3630 = vld [vmem:[%s29 + $0x34] sm:$0xf]
        %v3631 = vld [vmem:[%s29 + $0x38] sm:$0xf]
        %v3632 = vld [vmem:[%s29 + $0x3c] sm:$0xf]
        %v3633 = vld [vmem:[%s29 + $0x40] sm:$0xf]
        %v3634 = vld [vmem:[%s29 + $0x44] sm:$0xf]
        %v3635 = vld [vmem:[%s29 + $0x48] sm:$0xf]
        %v3636 = vld [vmem:[%s29 + $0x4c] sm:$0xf]
        %v3637 = vld [vmem:[%s29 + $0x50] sm:$0xf]
        %v3638 = vld [vmem:[%s29 + $0x54] sm:$0xf]
        %v3639 = vld [vmem:[%s29 + $0x58] sm:$0xf]
        %v3640 = vld [vmem:[%s29 + $0x5c] sm:$0xf]
        %v3641 = vld [vmem:[%s29 + $0x60] sm:$0xf]
        %v3642 = vld [vmem:[%s29 + $0x64] sm:$0xf]
        %v3643 = vld [vmem:[%s29 + $0x68] sm:$0xf]
        %v3644 = vld [vmem:[%s29 + $0x6c] sm:$0xf]
        %v3645 = vld [vmem:[%s29 + $0x70] sm:$0xf]
        %v3646 = vld [vmem:[%s29 + $0x74] sm:$0xf]
        %v3647 = vld [vmem:[%s29 + $0x78] sm:$0xf]
        %v3648 = vld [vmem:[%s29 + $0x7c] sm:$0xf]
        %v3681 = vunpack.c.l.b16 %v3617
        %v3682 = vunpack.c.l.b16 %v3618
        %v3683 = vunpack.c.l.b16 %v3619
        %v3684 = vunpack.c.l.b16 %v3620
        %v3685 = vunpack.c.l.b16 %v3621
        %v3686 = vunpack.c.l.b16 %v3622
        %v3687 = vunpack.c.l.b16 %v3623
        %v3688 = vunpack.c.l.b16 %v3624
        %v3689 = vunpack.c.l.b16 %v3625
        %v3690 = vunpack.c.l.b16 %v3626
        %v3691 = vunpack.c.l.b16 %v3627
        %v3692 = vunpack.c.l.b16 %v3628
        %v3693 = vunpack.c.l.b16 %v3629
        %v3694 = vunpack.c.l.b16 %v3630
        %v3695 = vunpack.c.l.b16 %v3631
        %v3696 = vunpack.c.l.b16 %v3632
        %v3697 = vunpack.c.l.b16 %v3633
        %v3698 = vunpack.c.l.b16 %v3634
        %v3699 = vunpack.c.l.b16 %v3635
        %v3700 = vunpack.c.l.b16 %v3636
        %v3701 = vunpack.c.l.b16 %v3637
        %v3702 = vunpack.c.l.b16 %v3638
        %v3703 = vunpack.c.l.b16 %v3639
        %v3704 = vunpack.c.l.b16 %v3640
        %v3705 = vunpack.c.l.b16 %v3641
        %v3706 = vunpack.c.l.b16 %v3642
        %v3707 = vunpack.c.l.b16 %v3643
        %v3708 = vunpack.c.l.b16 %v3644
        %v3709 = vunpack.c.l.b16 %v3645
        %v3710 = vunpack.c.l.b16 %v3646
        %v3711 = vunpack.c.l.b16 %v3647
        %v3712 = vunpack.c.l.b16 %v3648
        %v3713 = vpack.c.b16 %v3682, %v3681
        %v3714 = vpack.c.b16 %v3684, %v3683
        %v3715 = vpack.c.b16 %v3686, %v3685
        %v3716 = vpack.c.b16 %v3688, %v3687
        %v3717 = vpack.c.b16 %v3690, %v3689
        %v3718 = vpack.c.b16 %v3692, %v3691
        %v3719 = vpack.c.b16 %v3694, %v3693
        %v3720 = vpack.c.b16 %v3696, %v3695
        %v3721 = vpack.c.b16 %v3698, %v3697
        %v3722 = vpack.c.b16 %v3700, %v3699
        %v3723 = vpack.c.b16 %v3702, %v3701
        %v3724 = vpack.c.b16 %v3704, %v3703
        %v3725 = vpack.c.b16 %v3706, %v3705
        %v3726 = vpack.c.b16 %v3708, %v3707
        %v3727 = vpack.c.b16 %v3710, %v3709
        %v3728 = vpack.c.b16 %v3712, %v3711
        %3745 = vmatprep.subr.bf16.mxu0 0
        %3746 = vmatpush1.bf16.msra.mxu0 %v3713
        %3747 = vmatprep.subr.bf16.mxu0 0
        %3748 = vmatpush1.bf16.msra.mxu0 %v3714
        %3749 = vmatprep.subr.bf16.mxu0 0
        %3750 = vmatpush1.bf16.msra.mxu0 %v3715
        %3751 = vmatprep.subr.bf16.mxu0 0
        %3752 = vmatpush1.bf16.msra.mxu0 %v3716
        %3753 = vmatprep.subr.bf16.mxu0 0
        %3754 = vmatpush1.bf16.msra.mxu0 %v3717
        %3755 = vmatprep.subr.bf16.mxu0 0
        %3756 = vmatpush1.bf16.msra.mxu0 %v3718
        %3757 = vmatprep.subr.bf16.mxu0 0
        %3758 = vmatpush1.bf16.msra.mxu0 %v3719
        %3759 = vmatprep.subr.bf16.mxu0 0
        %3760 = vmatpush1.bf16.msra.mxu0 %v3720
        %3761 = vmatprep.subr.bf16.mxu0 0
        %3762 = vmatpush1.bf16.msra.mxu0 %v3721
        %3763 = vmatprep.subr.bf16.mxu0 0
        %3764 = vmatpush1.bf16.msra.mxu0 %v3722
        %3765 = vmatprep.subr.bf16.mxu0 0
        %3766 = vmatpush1.bf16.msra.mxu0 %v3723
        %3767 = vmatprep.subr.bf16.mxu0 0
        %3768 = vmatpush1.bf16.msra.mxu0 %v3724
        %3769 = vmatprep.subr.bf16.mxu0 0
        %3770 = vmatpush1.bf16.msra.mxu0 %v3725
        %3771 = vmatprep.subr.bf16.mxu0 0
        %3772 = vmatpush1.bf16.msra.mxu0 %v3726
        %3773 = vmatprep.subr.bf16.mxu0 0
        %3774 = vmatpush1.bf16.msra.mxu0 %v3727
        %3775 = vmatprep.subr.bf16.mxu0 0
        %3776 = vmatpush1.bf16.msra.mxu0 %v3728
        %3777 = vmatprep.mubr.bf16.mxu0 %v3616
        %3778 = vmatmul.mubr.bf16.gmra.mrb[0].mxu0 %v3615
        %v3779 = vpop.f32.mrb[0].mxu0
        %v3780 = vadd.f32 0.0, %v3779
        %v3781 = vpop.f32.mrb[0].mxu0
        %v3782 = vpop.f32.mrb[0].mxu0
        %v3783 = vadd.f32 0.0, %v3782
        %v3784 = vpop.f32.mrb[0].mxu0
        %3785 = vdwg.mxu0
        %3786 = vmatprep.subr.bf16.mxu0 %v2907
        %3787 = vmatpush1.bf16.xpose.msra.mxu0 %v2906
        %3788 = vmatprep.subr.bf16.mxu0 %v2909
        %3789 = vmatpush1.bf16.xpose.msra.mxu0 %v2908
        %3790 = vmatprep.subr.bf16.mxu0 %v2911
        %3791 = vmatpush1.bf16.xpose.msra.mxu0 %v2910
        %3792 = vmatprep.subr.bf16.mxu0 %v2913
        %3793 = vmatpush1.bf16.xpose.msra.mxu0 %v2912
        %3794 = vmatprep.subr.bf16.mxu0 %v2915
        %3795 = vmatpush1.bf16.xpose.msra.mxu0 %v2914
        %3796 = vmatprep.subr.bf16.mxu0 %v2917
        %3797 = vmatpush1.bf16.xpose.msra.mxu0 %v2916
        %3798 = vmatprep.subr.bf16.mxu0 %v2919
        %3799 = vmatpush1.bf16.xpose.msra.mxu0 %v2918
        %3800 = vmatprep.subr.bf16.mxu0 %v2921
        %3801 = vmatpush1.bf16.xpose.msra.mxu0 %v2920
        %3802 = vmatprep.subr.bf16.mxu0 0
        %3803 = vmatpush1.bf16.xpose.msra.mxu0 0
        %3804 = vmatprep.subr.bf16.mxu0 0
        %3805 = vmatpush1.bf16.xpose.msra.mxu0 0
        %3806 = vmatprep.subr.bf16.mxu0 0
        %3807 = vmatpush1.bf16.xpose.msra.mxu0 0
        %3808 = vmatprep.subr.bf16.mxu0 0
        %3809 = vmatpush1.bf16.xpose.msra.mxu0 0
        %3810 = vmatprep.subr.bf16.mxu0 0
        %3811 = vmatpush1.bf16.xpose.msra.mxu0 0
        %3812 = vmatprep.subr.bf16.mxu0 0
        %3813 = vmatpush1.bf16.xpose.msra.mxu0 0
        %3814 = vmatprep.subr.bf16.mxu0 0
        %3815 = vmatpush1.bf16.xpose.msra.mxu0 0
        %3816 = vmatprep.subr.bf16.mxu0 0
        %3817 = vmatpush1.bf16.xpose.msra.mxu0 0
        %3818 = vmatprep.mubr.bf16.mxu0 %v3559
        %3819 = vmatmul.mubr.bf16.gmra.mrb[0].mxu0 %v3558
        %v3820 = vpop.f32.mrb[0].mxu0
        %v3821 = vadd.f32 %v3780, %v3820
        %v3822 = vpop.f32.mrb[0].mxu0
        %v3823 = vpop.f32.mrb[0].mxu0
        %v3824 = vadd.f32 %v3783, %v3823
        %v3825 = vpop.f32.mrb[0].mxu0
        %3826 = vdwg.mxu0
        %v3827 = vmul.f32 %v3821, 0.17677669
        %v3828 = vmul.f32 %v3824, 0.17677669
        %vm3829 = vcmp.gt.bf16.partialorder %v3560, 0
        %vm3830 = vcmp.gt.bf16.partialorder %v3561, 0
        %v3831 = vsel %vm3829, 65537, 0
        %v3832 = vsel %vm3830, 65537, 0
        %v3833 = vunpack.c.l.b16 %v3831
        %v3834 = vunpack.c.l.b16 %v3832
        %vm3835 = vcmp.ne.s32.totalorder %v3833, 0
        %vm3836 = vcmp.ne.s32.totalorder %v3834, 0
        %v3837 = vsel %vm3835, %v3827, -1e+30
        %v3838 = vsel %vm3836, %v3828, -1e+30
        %3839 = vmax.xlane.f32.xlu0 %v3837
        %v3840 = vpop.xlane.xlu0 %3839
        %3841 = vmax.xlane.f32.xlu0 %v3838
        %v3842 = vpop.xlane.xlu0 %3841
        %v3843 = vsub.f32 %v3837, %v3840
        %v3844 = vsub.f32 %v3838, %v3842
        %v3845 = vmul.f32 %v3843, 1.442695
        %v3846 = vpow.pop %v3845
        %v3847 = vmul.f32 %v3844, 1.442695
        %v3848 = vpow.pop %v3847
        %v3849 = vunpack.c.l.bf16 %v3560
        %v3850 = vunpack.c.l.bf16 %v3561
        %v3851 = vmul.f32 %v3846, %v3849
        %v3852 = vmul.f32 %v3848, %v3850
        %v3853 = vld [vmem:[%s33] sm:$0xff]
        %3854 = vmatprep.subr.mxu0 0.0
        %3855 = vmatpush1.xpose.msra.mxu0 %v3853
        %3856 = vmatprep.subr.mxu0 0.0
        %3857 = vmatpush1.xpose.msra.mxu0 0.0
        %3858 = vmatprep.subr.mxu0 0.0
        %3859 = vmatpush1.xpose.msra.mxu0 0.0
        %3860 = vmatprep.subr.mxu0 0.0
        %3861 = vmatpush1.xpose.msra.mxu0 0.0
        %3862 = vmatprep.subr.mxu0 0.0
        %3863 = vmatpush1.xpose.msra.mxu0 0.0
        %3864 = vmatprep.subr.mxu0 0.0
        %3865 = vmatpush1.xpose.msra.mxu0 0.0
        %3866 = vmatprep.subr.mxu0 0.0
        %3867 = vmatpush1.xpose.msra.mxu0 0.0
        %3868 = vmatprep.subr.mxu0 0.0
        %3869 = vmatpush1.xpose.msra.mxu0 0.0
        %3870 = vmatprep.subr.mxu0 0.0
        %3871 = vmatpush1.xpose.msra.mxu0 0.0
        %3872 = vmatprep.subr.mxu0 0.0
        %3873 = vmatpush1.xpose.msra.mxu0 0.0
        %3874 = vmatprep.subr.mxu0 0.0
        %3875 = vmatpush1.xpose.msra.mxu0 0.0
        %3876 = vmatprep.subr.mxu0 0.0
        %3877 = vmatpush1.xpose.msra.mxu0 0.0
        %3878 = vmatprep.subr.mxu0 0.0
        %3879 = vmatpush1.xpose.msra.mxu0 0.0
        %3880 = vmatprep.subr.mxu0 0.0
        %3881 = vmatpush1.xpose.msra.mxu0 0.0
        %3882 = vmatprep.subr.mxu0 0.0
        %3883 = vmatpush1.xpose.msra.mxu0 0.0
        %3884 = vmatprep.subr.mxu0 0.0
        %3885 = vmatpush1.xpose.msra.mxu0 0.0
        %3886 = vmatprep.subr.mxu0 0.0
        %3887 = vmatpush1.xpose.msra.mxu0 0.0
        %3888 = vmatprep.subr.mxu0 0.0
        %3889 = vmatpush1.xpose.msra.mxu0 0.0
        %3890 = vmatprep.subr.mxu0 0.0
        %3891 = vmatpush1.xpose.msra.mxu0 0.0
        %3892 = vmatprep.subr.mxu0 0.0
        %3893 = vmatpush1.xpose.msra.mxu0 0.0
        %3894 = vmatprep.subr.mxu0 0.0
        %3895 = vmatpush1.xpose.msra.mxu0 0.0
        %3896 = vmatprep.subr.mxu0 0.0
        %3897 = vmatpush1.xpose.msra.mxu0 0.0
        %3898 = vmatprep.subr.mxu0 0.0
        %3899 = vmatpush1.xpose.msra.mxu0 0.0
        %3900 = vmatprep.subr.mxu0 0.0
        %3901 = vmatpush1.xpose.msra.mxu0 0.0
        %3902 = vmatprep.subr.mxu0 0.0
        %3903 = vmatpush1.xpose.msra.mxu0 0.0
        %3904 = vmatprep.subr.mxu0 0.0
        %3905 = vmatpush1.xpose.msra.mxu0 0.0
        %3906 = vmatprep.subr.mxu0 0.0
        %3907 = vmatpush1.xpose.msra.mxu0 0.0
        %3908 = vmatprep.subr.mxu0 0.0
        %3909 = vmatpush1.xpose.msra.mxu0 0.0
        %3910 = vmatprep.subr.mxu0 0.0
        %3911 = vmatpush1.xpose.msra.mxu0 0.0
        %3912 = vmatprep.subr.mxu0 0.0
        %3913 = vmatpush1.xpose.msra.mxu0 0.0
        %3914 = vmatprep.subr.mxu0 0.0
        %3915 = vmatpush1.xpose.msra.mxu0 0.0
        %3916 = vmatprep.subr.mxu0 0.0
        %3917 = vmatpush1.xpose.msra.mxu0 0.0
        %3918 = vmatprep.mubr.f32.mxu0 0.0
        %3919 = vmatmul.mubr.f32.gmra.mrb[0].mxu0 %v3851
        %v3920 = vpop.f32.mrb[0].mxu0
        %v3921 = vadd.f32 0.0, %v3920
        %v3922 = vpop.f32.mrb[0].mxu0
        %3923 = vmatprep.mubr.f32.mxu0 0.0
        %3924 = vmatmul.mubr.f32.gmra.mrb[0].mxu0 %v3852
        %v3925 = vpop.f32.mrb[0].mxu0
        %v3926 = vadd.f32 0.0, %v3925
        %v3927 = vpop.f32.mrb[0].mxu0
        %3928 = vdwg.mxu0
        %vm3929 = vcmask 64512
        %v3931 = vsel %vm3929, %v3921, 0
        %v3934 = vsel %vm3929, %v3926, 0
        %3936 = vmatprep.subr.mxu0 0.0
        %3937 = vmatpush1.msra.mxu0 %v3853
        %3938 = vmatprep.subr.mxu0 0.0
        %3939 = vmatpush1.msra.mxu0 0.0
        %3940 = vmatprep.subr.mxu0 0.0
        %3941 = vmatpush1.msra.mxu0 0.0
        %3942 = vmatprep.subr.mxu0 0.0
        %3943 = vmatpush1.msra.mxu0 0.0
        %3944 = vmatprep.subr.mxu0 0.0
        %3945 = vmatpush1.msra.mxu0 0.0
        %3946 = vmatprep.subr.mxu0 0.0
        %3947 = vmatpush1.msra.mxu0 0.0
        %3948 = vmatprep.subr.mxu0 0.0
        %3949 = vmatpush1.msra.mxu0 0.0
        %3950 = vmatprep.subr.mxu0 0.0
        %3951 = vmatpush1.msra.mxu0 0.0
        %3952 = vmatprep.subr.mxu0 0.0
        %3953 = vmatpush1.msra.mxu0 0.0
        %3954 = vmatprep.subr.mxu0 0.0
        %3955 = vmatpush1.msra.mxu0 0.0
        %3956 = vmatprep.subr.mxu0 0.0
        %3957 = vmatpush1.msra.mxu0 0.0
        %3958 = vmatprep.subr.mxu0 0.0
        %3959 = vmatpush1.msra.mxu0 0.0
        %3960 = vmatprep.subr.mxu0 0.0
        %3961 = vmatpush1.msra.mxu0 0.0
        %3962 = vmatprep.subr.mxu0 0.0
        %3963 = vmatpush1.msra.mxu0 0.0
        %3964 = vmatprep.subr.mxu0 0.0
        %3965 = vmatpush1.msra.mxu0 0.0
        %3966 = vmatprep.subr.mxu0 0.0
        %3967 = vmatpush1.msra.mxu0 0.0
        %3968 = vmatprep.subr.mxu0 0.0
        %3969 = vmatpush1.msra.mxu0 0.0
        %3970 = vmatprep.subr.mxu0 0.0
        %3971 = vmatpush1.msra.mxu0 0.0
        %3972 = vmatprep.subr.mxu0 0.0
        %3973 = vmatpush1.msra.mxu0 0.0
        %3974 = vmatprep.subr.mxu0 0.0
        %3975 = vmatpush1.msra.mxu0 0.0
        %3976 = vmatprep.subr.mxu0 0.0
        %3977 = vmatpush1.msra.mxu0 0.0
        %3978 = vmatprep.subr.mxu0 0.0
        %3979 = vmatpush1.msra.mxu0 0.0
        %3980 = vmatprep.subr.mxu0 0.0
        %3981 = vmatpush1.msra.mxu0 0.0
        %3982 = vmatprep.subr.mxu0 0.0
        %3983 = vmatpush1.msra.mxu0 0.0
        %3984 = vmatprep.subr.mxu0 0.0
        %3985 = vmatpush1.msra.mxu0 0.0
        %3986 = vmatprep.subr.mxu0 0.0
        %3987 = vmatpush1.msra.mxu0 0.0
        %3988 = vmatprep.subr.mxu0 0.0
        %3989 = vmatpush1.msra.mxu0 0.0
        %3990 = vmatprep.subr.mxu0 0.0
        %3991 = vmatpush1.msra.mxu0 0.0
        %3992 = vmatprep.subr.mxu0 0.0
        %3993 = vmatpush1.msra.mxu0 0.0
        %3994 = vmatprep.subr.mxu0 0.0
        %3995 = vmatpush1.msra.mxu0 0.0
        %3996 = vmatprep.subr.mxu0 0.0
        %3997 = vmatpush1.msra.mxu0 0.0
        %3998 = vmatprep.subr.mxu0 0.0
        %3999 = vmatpush1.msra.mxu0 0.0
        %4000 = vmatprep.mubr.f32.mxu0 0.0
        %4001 = vmatmul.mubr.f32.gmra.mrb[0].mxu0 %v3931
        %v4002 = vpop.f32.mrb[0].mxu0
        %v4003 = vadd.f32 0.0, %v4002
        %v4004 = vpop.f32.mrb[0].mxu0
        %4005 = vmatprep.mubr.f32.mxu0 0.0
        %4006 = vmatmul.mubr.f32.gmra.mrb[0].mxu0 %v3934
        %v4007 = vpop.f32.mrb[0].mxu0
        %v4008 = vadd.f32 0.0, %v4007
        %v4009 = vpop.f32.mrb[0].mxu0
        %4010 = vdwg.mxu0
        %v4011 = vmax.f32 %v4003, 1e-16
        %v4012 = vmax.f32 %v4008, 1e-16
        %v4013 = vrcp.pop %v4011
        %v4014 = vmul.f32 %v3851, %v4013
        %v4015 = vrcp.pop %v4012
        %v4016 = vmul.f32 %v3852, %v4015
        %v4017 = vpack.c.bf16 %v4016, %v4014
        %v4018 = vld [vmem:[%s31] sm:$0xff]
        %v4019 = vld [vmem:[%s31 + $0x8] sm:$0xff]
        %v4020 = vld [vmem:[%s31 + $0x10] sm:$0xff]
        %v4021 = vld [vmem:[%s31 + $0x18] sm:$0xff]
        %v4022 = vld [vmem:[%s31 + $0x20] sm:$0xff]
        %v4023 = vld [vmem:[%s31 + $0x28] sm:$0xff]
        %v4024 = vld [vmem:[%s31 + $0x30] sm:$0xff]
        %v4025 = vld [vmem:[%s31 + $0x38] sm:$0xff]
        %v4026 = vld [vmem:[%s31 + $0x40] sm:$0xff]
        %v4027 = vld [vmem:[%s31 + $0x48] sm:$0xff]
        %v4028 = vld [vmem:[%s31 + $0x50] sm:$0xff]
        %v4029 = vld [vmem:[%s31 + $0x58] sm:$0xff]
        %v4030 = vld [vmem:[%s31 + $0x60] sm:$0xff]
        %v4031 = vld [vmem:[%s31 + $0x68] sm:$0xff]
        %v4032 = vld [vmem:[%s31 + $0x70] sm:$0xff]
        %v4033 = vld [vmem:[%s31 + $0x78] sm:$0xff]
        %v4050 = vunpack.c.l.b16 %v4018
        %v4051 = vunpack.c.h.b16 %v4018
        %v4052 = vunpack.c.l.b16 %v4019
        %v4053 = vunpack.c.h.b16 %v4019
        %v4054 = vunpack.c.l.b16 %v4020
        %v4055 = vunpack.c.h.b16 %v4020
        %v4056 = vunpack.c.l.b16 %v4021
        %v4057 = vunpack.c.h.b16 %v4021
        %v4058 = vunpack.c.l.b16 %v4022
        %v4059 = vunpack.c.h.b16 %v4022
        %v4060 = vunpack.c.l.b16 %v4023
        %v4061 = vunpack.c.h.b16 %v4023
        %v4062 = vunpack.c.l.b16 %v4024
        %v4063 = vunpack.c.h.b16 %v4024
        %v4064 = vunpack.c.l.b16 %v4025
        %v4065 = vunpack.c.h.b16 %v4025
        %v4066 = vunpack.c.l.b16 %v4026
        %v4067 = vunpack.c.h.b16 %v4026
        %v4068 = vunpack.c.l.b16 %v4027
        %v4069 = vunpack.c.h.b16 %v4027
        %v4070 = vunpack.c.l.b16 %v4028
        %v4071 = vunpack.c.h.b16 %v4028
        %v4072 = vunpack.c.l.b16 %v4029
        %v4073 = vunpack.c.h.b16 %v4029
        %v4074 = vunpack.c.l.b16 %v4030
        %v4075 = vunpack.c.h.b16 %v4030
        %v4076 = vunpack.c.l.b16 %v4031
        %v4077 = vunpack.c.h.b16 %v4031
        %v4078 = vunpack.c.l.b16 %v4032
        %v4079 = vunpack.c.h.b16 %v4032
        %v4080 = vunpack.c.l.b16 %v4033
        %v4081 = vunpack.c.h.b16 %v4033
        %v4082 = vpack.c.b16 %v4052, %v4050
        %v4083 = vpack.c.b16 %v4053, %v4051
        %v4084 = vpack.c.b16 %v4056, %v4054
        %v4085 = vpack.c.b16 %v4057, %v4055
        %v4086 = vpack.c.b16 %v4060, %v4058
        %v4087 = vpack.c.b16 %v4061, %v4059
        %v4088 = vpack.c.b16 %v4064, %v4062
        %v4089 = vpack.c.b16 %v4065, %v4063
        %v4090 = vpack.c.b16 %v4068, %v4066
        %v4091 = vpack.c.b16 %v4069, %v4067
        %v4092 = vpack.c.b16 %v4072, %v4070
        %v4093 = vpack.c.b16 %v4073, %v4071
        %v4094 = vpack.c.b16 %v4076, %v4074
        %v4095 = vpack.c.b16 %v4077, %v4075
        %v4096 = vpack.c.b16 %v4080, %v4078
        %v4097 = vpack.c.b16 %v4081, %v4079
        %4114 = vmatprep.subr.bf16.mxu0 %v4083
        %4115 = vmatpush1.bf16.msra.mxu0 %v4082
        %4116 = vmatprep.subr.bf16.mxu0 %v4085
        %4117 = vmatpush1.bf16.msra.mxu0 %v4084
        %4118 = vmatprep.subr.bf16.mxu0 %v4087
        %4119 = vmatpush1.bf16.msra.mxu0 %v4086
        %4120 = vmatprep.subr.bf16.mxu0 %v4089
        %4121 = vmatpush1.bf16.msra.mxu0 %v4088
        %4122 = vmatprep.subr.bf16.mxu0 %v4091
        %4123 = vmatpush1.bf16.msra.mxu0 %v4090
        %4124 = vmatprep.subr.bf16.mxu0 %v4093
        %4125 = vmatpush1.bf16.msra.mxu0 %v4092
        %4126 = vmatprep.subr.bf16.mxu0 %v4095
        %4127 = vmatpush1.bf16.msra.mxu0 %v4094
        %4128 = vmatprep.subr.bf16.mxu0 %v4097
        %4129 = vmatpush1.bf16.msra.mxu0 %v4096
        %4130 = vmatprep.subr.bf16.mxu0 0
        %4131 = vmatpush1.bf16.msra.mxu0 0
        %4132 = vmatprep.subr.bf16.mxu0 0
        %4133 = vmatpush1.bf16.msra.mxu0 0
        %4134 = vmatprep.subr.bf16.mxu0 0
        %4135 = vmatpush1.bf16.msra.mxu0 0
        %4136 = vmatprep.subr.bf16.mxu0 0
        %4137 = vmatpush1.bf16.msra.mxu0 0
        %4138 = vmatprep.subr.bf16.mxu0 0
        %4139 = vmatpush1.bf16.msra.mxu0 0
        %4140 = vmatprep.subr.bf16.mxu0 0
        %4141 = vmatpush1.bf16.msra.mxu0 0
        %4142 = vmatprep.subr.bf16.mxu0 0
        %4143 = vmatpush1.bf16.msra.mxu0 0
        %4144 = vmatprep.subr.bf16.mxu0 0
        %4145 = vmatpush1.bf16.msra.mxu0 0
        %4146 = vmatprep.mubr.bf16.mxu0 0
        %4147 = vmatmul.mubr.bf16.gmra.mrb[0].mxu0 %v4017
        %v4148 = vpop.f32.mrb[0].mxu0
        %v4149 = vadd.f32 0.0, %v4148
        %v4150 = vpop.f32.mrb[0].mxu0
        %v4151 = vadd.f32 0.0, %v4150
        %v4152 = vpop.f32.mrb[0].mxu0
        %v4153 = vadd.f32 0.0, %v4152
        %v4154 = vpop.f32.mrb[0].mxu0
        %v4155 = vadd.f32 0.0, %v4154
        %4156 = vdwg.mxu0
        %v4157 = vmul.f32 %v4149, %v3607
        %v4158 = vmul.f32 %v4151, %v3608
        %v4159 = vmul.f32 %v4153, %v3609
        %v4160 = vmul.f32 %v4155, %v3610
        %v4161 = vpack.c.bf16 %v4159, %v4157
        %v4162 = vpack.c.bf16 %v4160, %v4158
        %4163 = vmatprep.subr.bf16.mxu0 %v3527
        %4164 = vmatpush1.bf16.msra.mxu0 %v3526
        %4165 = vmatprep.subr.bf16.mxu0 %v3529
        %4166 = vmatpush1.bf16.msra.mxu0 %v3528
        %4167 = vmatprep.subr.bf16.mxu0 %v3531
        %4168 = vmatpush1.bf16.msra.mxu0 %v3530
        %4169 = vmatprep.subr.bf16.mxu0 %v3533
        %4170 = vmatpush1.bf16.msra.mxu0 %v3532
        %4171 = vmatprep.subr.bf16.mxu0 %v3535
        %4172 = vmatpush1.bf16.msra.mxu0 %v3534
        %4173 = vmatprep.subr.bf16.mxu0 %v3537
        %4174 = vmatpush1.bf16.msra.mxu0 %v3536
        %4175 = vmatprep.subr.bf16.mxu0 %v3539
        %4176 = vmatpush1.bf16.msra.mxu0 %v3538
        %4177 = vmatprep.subr.bf16.mxu0 %v3541
        %4178 = vmatpush1.bf16.msra.mxu0 %v3540
        %4179 = vmatprep.subr.bf16.mxu0 %v3543
        %4180 = vmatpush1.bf16.msra.mxu0 %v3542
        %4181 = vmatprep.subr.bf16.mxu0 %v3545
        %4182 = vmatpush1.bf16.msra.mxu0 %v3544
        %4183 = vmatprep.subr.bf16.mxu0 %v3547
        %4184 = vmatpush1.bf16.msra.mxu0 %v3546
        %4185 = vmatprep.subr.bf16.mxu0 %v3549
        %4186 = vmatpush1.bf16.msra.mxu0 %v3548
        %4187 = vmatprep.subr.bf16.mxu0 %v3551
        %4188 = vmatpush1.bf16.msra.mxu0 %v3550
        %4189 = vmatprep.subr.bf16.mxu0 %v3553
        %4190 = vmatpush1.bf16.msra.mxu0 %v3552
        %4191 = vmatprep.subr.bf16.mxu0 %v3555
        %4192 = vmatpush1.bf16.msra.mxu0 %v3554
        %4193 = vmatprep.subr.bf16.mxu0 %v3557
        %4194 = vmatpush1.bf16.msra.mxu0 %v3556
        %4195 = vmatprep.mubr.bf16.mxu0 %v4162
        %4196 = vmatmul.mubr.bf16.gmra.mrb[0].mxu0 %v4161
        %v4197 = vpop.f32.mrb[0].mxu0
        %v4198 = vadd.f32 0.0, %v4197
        %v4199 = vpop.f32.mrb[0].mxu0
        %v4200 = vadd.f32 0.0, %v4199
        %v4201 = vpop.f32.mrb[0].mxu0
        %v4202 = vadd.f32 0.0, %v4201
        %v4203 = vpop.f32.mrb[0].mxu0
        %v4204 = vadd.f32 0.0, %v4203
        %4205 = vdwg.mxu0
        %4206 = vmatprep.subr.bf16.mxu0 %v3070
        %4207 = vmatpush1.bf16.msra.mxu0 %v3069
        %4208 = vmatprep.subr.bf16.mxu0 %v3072
        %4209 = vmatpush1.bf16.msra.mxu0 %v3071
        %4210 = vmatprep.subr.bf16.mxu0 %v3074
        %4211 = vmatpush1.bf16.msra.mxu0 %v3073
        %4212 = vmatprep.subr.bf16.mxu0 %v3076
        %4213 = vmatpush1.bf16.msra.mxu0 %v3075
        %4214 = vmatprep.subr.bf16.mxu0 %v3078
        %4215 = vmatpush1.bf16.msra.mxu0 %v3077
        %4216 = vmatprep.subr.bf16.mxu0 %v3080
        %4217 = vmatpush1.bf16.msra.mxu0 %v3079
        %4218 = vmatprep.subr.bf16.mxu0 %v3082
        %4219 = vmatpush1.bf16.msra.mxu0 %v3081
        %4220 = vmatprep.subr.bf16.mxu0 %v3084
        %4221 = vmatpush1.bf16.msra.mxu0 %v3083
        %4222 = vmatprep.subr.bf16.mxu0 0
        %4223 = vmatpush1.bf16.msra.mxu0 0
        %4224 = vmatprep.subr.bf16.mxu0 0
        %4225 = vmatpush1.bf16.msra.mxu0 0
        %4226 = vmatprep.subr.bf16.mxu0 0
        %4227 = vmatpush1.bf16.msra.mxu0 0
        %4228 = vmatprep.subr.bf16.mxu0 0
        %4229 = vmatpush1.bf16.msra.mxu0 0
        %4230 = vmatprep.subr.bf16.mxu0 0
        %4231 = vmatpush1.bf16.msra.mxu0 0
        %4232 = vmatprep.subr.bf16.mxu0 0
        %4233 = vmatpush1.bf16.msra.mxu0 0
        %4234 = vmatprep.subr.bf16.mxu0 0
        %4235 = vmatpush1.bf16.msra.mxu0 0
        %4236 = vmatprep.subr.bf16.mxu0 0
        %4237 = vmatpush1.bf16.msra.mxu0 0
        %4238 = vmatprep.mubr.bf16.mxu0 0
        %4239 = vmatmul.mubr.bf16.gmra.mrb[0].mxu0 %v4017
        %v4240 = vpop.f32.mrb[0].mxu0
        %v4241 = vadd.f32 %v4198, %v4240
        %v4242 = vpop.f32.mrb[0].mxu0
        %v4243 = vadd.f32 %v4200, %v4242
        %v4244 = vpop.f32.mrb[0].mxu0
        %v4245 = vadd.f32 %v4202, %v4244
        %v4246 = vpop.f32.mrb[0].mxu0
        %v4247 = vadd.f32 %v4204, %v4246
        %4248 = vdwg.mxu0
        %v4249 = vld [vmem:[%s39] sm:$0xff]
        %v4250 = vld [vmem:[%s39 + $0x8] sm:$0xff]
        %v4251 = vld [vmem:[%s39 + $0x10] sm:$0xff]
        %v4252 = vld [vmem:[%s39 + $0x18] sm:$0xff]
        %v4253 = vld [vmem:[%s39 + $0x20] sm:$0xff]
        %v4254 = vld [vmem:[%s39 + $0x28] sm:$0xff]
        %v4255 = vld [vmem:[%s39 + $0x30] sm:$0xff]
        %v4256 = vld [vmem:[%s39 + $0x38] sm:$0xff]
        %v4257 = vld [vmem:[%s39 + $0x40] sm:$0xff]
        %v4258 = vld [vmem:[%s39 + $0x48] sm:$0xff]
        %v4259 = vld [vmem:[%s39 + $0x50] sm:$0xff]
        %v4260 = vld [vmem:[%s39 + $0x58] sm:$0xff]
        %v4261 = vld [vmem:[%s39 + $0x60] sm:$0xff]
        %v4262 = vld [vmem:[%s39 + $0x68] sm:$0xff]
        %v4263 = vld [vmem:[%s39 + $0x70] sm:$0xff]
        %v4264 = vld [vmem:[%s39 + $0x78] sm:$0xff]
        %v4265 = vld [vmem:[%s39 + $0x80] sm:$0xff]
        %v4266 = vld [vmem:[%s39 + $0x88] sm:$0xff]
        %v4267 = vld [vmem:[%s39 + $0x90] sm:$0xff]
        %v4268 = vld [vmem:[%s39 + $0x98] sm:$0xff]
        %v4269 = vld [vmem:[%s39 + $0xa0] sm:$0xff]
        %v4270 = vld [vmem:[%s39 + $0xa8] sm:$0xff]
        %v4271 = vld [vmem:[%s39 + $0xb0] sm:$0xff]
        %v4272 = vld [vmem:[%s39 + $0xb8] sm:$0xff]
        %v4273 = vld [vmem:[%s39 + $0xc0] sm:$0xff]
        %v4274 = vld [vmem:[%s39 + $0xc8] sm:$0xff]
        %v4275 = vld [vmem:[%s39 + $0xd0] sm:$0xff]
        %v4276 = vld [vmem:[%s39 + $0xd8] sm:$0xff]
        %v4277 = vld [vmem:[%s39 + $0xe0] sm:$0xff]
        %v4278 = vld [vmem:[%s39 + $0xe8] sm:$0xff]
        %v4279 = vld [vmem:[%s39 + $0xf0] sm:$0xff]
        %v4280 = vld [vmem:[%s39 + $0xf8] sm:$0xff]
        %4281 = vmatprep.subr.mxu0 0.0
        %4282 = vmatpush1.msra.mxu0 %v4249
        %4283 = vmatprep.subr.mxu0 0.0
        %4284 = vmatpush1.msra.mxu0 %v4250
        %4285 = vmatprep.subr.mxu0 0.0
        %4286 = vmatpush1.msra.mxu0 %v4251
        %4287 = vmatprep.subr.mxu0 0.0
        %4288 = vmatpush1.msra.mxu0 %v4252
        %4289 = vmatprep.subr.mxu0 0.0
        %4290 = vmatpush1.msra.mxu0 %v4253
        %4291 = vmatprep.subr.mxu0 0.0
        %4292 = vmatpush1.msra.mxu0 %v4254
        %4293 = vmatprep.subr.mxu0 0.0
        %4294 = vmatpush1.msra.mxu0 %v4255
        %4295 = vmatprep.subr.mxu0 0.0
        %4296 = vmatpush1.msra.mxu0 %v4256
        %4297 = vmatprep.subr.mxu0 0.0
        %4298 = vmatpush1.msra.mxu0 %v4257
        %4299 = vmatprep.subr.mxu0 0.0
        %4300 = vmatpush1.msra.mxu0 %v4258
        %4301 = vmatprep.subr.mxu0 0.0
        %4302 = vmatpush1.msra.mxu0 %v4259
        %4303 = vmatprep.subr.mxu0 0.0
        %4304 = vmatpush1.msra.mxu0 %v4260
        %4305 = vmatprep.subr.mxu0 0.0
        %4306 = vmatpush1.msra.mxu0 %v4261
        %4307 = vmatprep.subr.mxu0 0.0
        %4308 = vmatpush1.msra.mxu0 %v4262
        %4309 = vmatprep.subr.mxu0 0.0
        %4310 = vmatpush1.msra.mxu0 %v4263
        %4311 = vmatprep.subr.mxu0 0.0
        %4312 = vmatpush1.msra.mxu0 %v4264
        %4313 = vmatprep.subr.mxu0 0.0
        %4314 = vmatpush1.msra.mxu0 %v4265
        %4315 = vmatprep.subr.mxu0 0.0
        %4316 = vmatpush1.msra.mxu0 %v4266
        %4317 = vmatprep.subr.mxu0 0.0
        %4318 = vmatpush1.msra.mxu0 %v4267
        %4319 = vmatprep.subr.mxu0 0.0
        %4320 = vmatpush1.msra.mxu0 %v4268
        %4321 = vmatprep.subr.mxu0 0.0
        %4322 = vmatpush1.msra.mxu0 %v4269
        %4323 = vmatprep.subr.mxu0 0.0
        %4324 = vmatpush1.msra.mxu0 %v4270
        %4325 = vmatprep.subr.mxu0 0.0
        %4326 = vmatpush1.msra.mxu0 %v4271
        %4327 = vmatprep.subr.mxu0 0.0
        %4328 = vmatpush1.msra.mxu0 %v4272
        %4329 = vmatprep.subr.mxu0 0.0
        %4330 = vmatpush1.msra.mxu0 %v4273
        %4331 = vmatprep.subr.mxu0 0.0
        %4332 = vmatpush1.msra.mxu0 %v4274
        %4333 = vmatprep.subr.mxu0 0.0
        %4334 = vmatpush1.msra.mxu0 %v4275
        %4335 = vmatprep.subr.mxu0 0.0
        %4336 = vmatpush1.msra.mxu0 %v4276
        %4337 = vmatprep.subr.mxu0 0.0
        %4338 = vmatpush1.msra.mxu0 %v4277
        %4339 = vmatprep.subr.mxu0 0.0
        %4340 = vmatpush1.msra.mxu0 %v4278
        %4341 = vmatprep.subr.mxu0 0.0
        %4342 = vmatpush1.msra.mxu0 %v4279
        %4343 = vmatprep.subr.mxu0 0.0
        %4344 = vmatpush1.msra.mxu0 %v4280
        %4345 = vmatprep.mubr.f32.mxu0 %v4243
        %4346 = vmatmul.mubr.f32.gmra.mrb[0].mxu0 %v4241
        %v4347 = vpop.f32.mrb[0].mxu0
        %v4348 = vadd.f32 0.0, %v4347
        %v4349 = vpop.f32.mrb[0].mxu0
        %4350 = vmatprep.mubr.f32.mxu0 %v4247
        %4351 = vmatmul.mubr.f32.gmra.mrb[0].mxu0 %v4245
        %v4352 = vpop.f32.mrb[0].mxu0
        %v4353 = vadd.f32 0.0, %v4352
        %v4354 = vpop.f32.mrb[0].mxu0
        %4355 = vdwg.mxu0
        %v4356 = vld [vmem:[%s1140] sm:$0x1]
        %v4358 = vlaneseq
        %v4359 = vshrl.u32 %v4358, 7
        %v4360 = vsub.s32 0, %v4359
        %v4361 = vrot.slane %v4356, %v4360
        %v4363 = vmul.f32 %v4348, %v4361
        %v4364 = vmul.f32 %v4353, %v4361
        %v4365 = vsel %vm2456, %v4363, 0.0
        %4366 = vadd.xlane.f32.xlu0 %v4365
        %v4367 = vpop.xlane.xlu0 %4366
        %v4368 = vsel %vm2456, %v4364, 0.0
        %4369 = vadd.xlane.f32.xlu0 %v4368
        %v4370 = vpop.xlane.xlu0 %4369
        %v4371 = vld [vmem:[%s1143] sm:$0x1]
        %v4373 = vlaneseq
        %v4374 = vshrl.u32 %v4373, 7
        %v4375 = vsub.s32 0, %v4374
        %v4376 = vrot.slane %v4371, %v4375
        %v4378 = vmul.f32 %v2624, %v4376
        %v4379 = vmul.f32 %v2627, %v4376
        %v4380 = vsel %vm2456, %v4378, 0.0
        %4381 = vadd.xlane.f32.xlu0 %v4380
        %v4382 = vpop.xlane.xlu0 %4381
        %v4383 = vsel %vm2456, %v4379, 0.0
        %4384 = vadd.xlane.f32.xlu0 %v4383
        %v4385 = vpop.xlane.xlu0 %4384
        %v4386 = vadd.f32 %v4367, %v4382
        %v4387 = vadd.f32 %v4370, %v4385
        %v4388 = vxor.u32 %v4386, 2147483648
        %v4389 = vxor.u32 %v4387, 2147483648
        %v4390 = vmul.f32 %v4388, 1.442695
        %v4391 = vpow.pop %v4390
        %v4392 = vmul.f32 %v4389, 1.442695
        %v4393 = vpow.pop %v4392
        %v4394 = vadd.f32 %v4391, 1.0
        %v4395 = vadd.f32 %v4393, 1.0
        %v4396 = vrcp.pop %v4394
        %v4397 = vmul.f32 1.0, %v4396
        %v4398 = vrcp.pop %v4395
        %v4399 = vmul.f32 1.0, %v4398
        %v4400 = vmul.f32 %v4397, %v2624
        %v4401 = vmul.f32 %v4399, %v2627
        %v4402 = vsub.f32 1.0, %v4397
        %v4403 = vsub.f32 1.0, %v4399
        %v4404 = vmul.f32 %v4402, %v4348
        %v4405 = vmul.f32 %v4403, %v4353
        %v4406 = vadd.f32 %v4400, %v4404
        %v4407 = vadd.f32 %v4401, %v4405
        %v4408 = vsel %vm2456, %v4406, 0.0
        %4409 = vadd.xlane.f32.xlu0 %v4408
        %v4410 = vpop.xlane.xlu0 %4409
        %v4411 = vsel %vm2456, %v4407, 0.0
        %4412 = vadd.xlane.f32.xlu0 %v4411
        %v4413 = vpop.xlane.xlu0 %4412
        %v4414 = vrcp.pop 32.0
        %v4415 = vmul.f32 %v4410, %v4414
        %v4416 = vmul.f32 %v4413, %v4414
        %v4417 = vsub.f32 %v4406, %v4415
        %v4418 = vsub.f32 %v4407, %v4416
        %v4419 = vmul.f32 %v4417, %v4417
        %v4420 = vmul.f32 %v4418, %v4418
        %v4421 = vsel %vm2456, %v4419, 0.0
        %4422 = vadd.xlane.f32.xlu0 %v4421
        %v4423 = vpop.xlane.xlu0 %4422
        %v4424 = vsel %vm2456, %v4420, 0.0
        %4425 = vadd.xlane.f32.xlu0 %v4424
        %v4426 = vpop.xlane.xlu0 %4425
        %v4427 = vmul.f32 %v4423, %v4414
        %v4428 = vmul.f32 %v4426, %v4414
        %v4429 = vadd.f32 %v4427, 1e-05
        %v4430 = vadd.f32 %v4428, 1e-05
        %v4431 = vrsqrt.pop %v4429
        %v4432 = vrsqrt.pop %v4430
        %v4433 = vmul.f32 %v4417, %v4431
        %v4434 = vmul.f32 %v4418, %v4432
        %v4435 = vld [vmem:[%s1146] sm:$0x1]
        %v4437 = vlaneseq
        %v4438 = vshrl.u32 %v4437, 7
        %v4439 = vsub.s32 0, %v4438
        %v4440 = vrot.slane %v4435, %v4439
        %v4442 = vmul.f32 %v4433, %v4440
        %v4443 = vmul.f32 %v4434, %v4440
        %v4444 = vld [vmem:[%s1149] sm:$0x1]
        %v4446 = vlaneseq
        %v4447 = vshrl.u32 %v4446, 7
        %v4448 = vsub.s32 0, %v4447
        %v4449 = vrot.slane %v4444, %v4448
        %v4451 = vadd.f32 %v4442, %v4449
        %v4452 = vadd.f32 %v4443, %v4449
        %v4453 = vmax.f32 %v4451, 0.0
        %v4454 = vmax.f32 %v4452, 0.0
        %p4455 = scmp.gt.s32.totalorder %s83, 0
        %s4456 = scalar_select %p4455, 1, 0
        %s4457 = scvt.s32.f32 %s4456
        %v4458 = vstv %s4457
        %v4459 = vmul.f32 %v4458, %v2328
        %v4460 = vmul.f32 %v4458, %v2329
        %v4461 = vadd.f32 %v4453, %v4459
        %v4462 = vadd.f32 %v4454, %v4460
        %4463 = vst.msk [vmem:[#allocation2] sm:$0xff] %vm2456, %v4461
        %4464 = vst.msk [vmem:[#allocation2 + $0x8] sm:$0xff] %vm2456, %v4462
        %p4465 = scmp.eq.s32.totalorder %s83, 5
        // Predicated region
        $region165: #{quantum_gnn_forward.1} parent=159 // pred_check
          %p4466 = pneg %p4465
        $region166: #{quantum_gnn_forward.1} parent=159 // pred_check_branch
          %4468 = sbr.rel (%p4466) target = $region168
        $region167: #{quantum_gnn_forward.1} parent=159 // pred_region
          %v4469 = vld [vmem:[%s41] sm:$0x1]
          %v4470 = vpack.c.bf16 %v4462, %v4461
          %v4472 = vsel %vm2704, %v4469, 0
          %4474 = vmatprep.subr.bf16.mxu0 0
          %4475 = vmatpush1.bf16.msra.mxu0 %v4470
          %4476 = vmatprep.subr.bf16.mxu0 0
          %4477 = vmatpush1.bf16.msra.mxu0 0
          %4478 = vmatprep.subr.bf16.mxu0 0
          %4479 = vmatpush1.bf16.msra.mxu0 0
          %4480 = vmatprep.subr.bf16.mxu0 0
          %4481 = vmatpush1.bf16.msra.mxu0 0
          %4482 = vmatprep.subr.bf16.mxu0 0
          %4483 = vmatpush1.bf16.msra.mxu0 0
          %4484 = vmatprep.subr.bf16.mxu0 0
          %4485 = vmatpush1.bf16.msra.mxu0 0
          %4486 = vmatprep.subr.bf16.mxu0 0
          %4487 = vmatpush1.bf16.msra.mxu0 0
          %4488 = vmatprep.subr.bf16.mxu0 0
          %4489 = vmatpush1.bf16.msra.mxu0 0
          %4490 = vmatprep.subr.bf16.mxu0 0
          %4491 = vmatpush1.bf16.msra.mxu0 0
          %4492 = vmatprep.subr.bf16.mxu0 0
          %4493 = vmatpush1.bf16.msra.mxu0 0
          %4494 = vmatprep.subr.bf16.mxu0 0
          %4495 = vmatpush1.bf16.msra.mxu0 0
          %4496 = vmatprep.subr.bf16.mxu0 0
          %4497 = vmatpush1.bf16.msra.mxu0 0
          %4498 = vmatprep.subr.bf16.mxu0 0
          %4499 = vmatpush1.bf16.msra.mxu0 0
          %4500 = vmatprep.subr.bf16.mxu0 0
          %4501 = vmatpush1.bf16.msra.mxu0 0
          %4502 = vmatprep.subr.bf16.mxu0 0
          %4503 = vmatpush1.bf16.msra.mxu0 0
          %4504 = vmatprep.subr.bf16.mxu0 0
          %4505 = vmatpush1.bf16.msra.mxu0 0
          %4506 = vmatprep.mubr.bf16.mxu0 0
          %4507 = vmatmul.mubr.bf16.gmra.mrb[0].mxu0 %v4472
          %v4508 = vpop.f32.mrb[0].mxu0
          %v4509 = vadd.f32 0.0, %v4508
          %v4510 = vpop.f32.mrb[0].mxu0
          %v4511 = vpop.f32.mrb[0].mxu0
          %v4512 = vpop.f32.mrb[0].mxu0
          %4513 = vdwg.mxu0
          %v4514 = vunpack.c.l.bf16 %v4469
          %vm4515 = vcmask 123904
          %v4516 = vsel %vm4515, %v4514, 0.0
          %4517 = vadd.xlane.f32.xlu0 %v4516
          %v4518 = vpop.xlane.xlu0 %4517
          %v4519 = vmax.f32 %v4518, 1.0
          %v4520 = vrcp.pop %v4519
          %v4521 = vmul.f32 %v4509, %v4520
          %v4522 = vld [vmem:[%s43] sm:$0xf]
          %v4523 = vld [vmem:[%s43 + $0x4] sm:$0xf]
          %vm4524 = vcmp.gt.bf16.partialorder %v4522, 0
          %vm4525 = vcmp.gt.bf16.partialorder %v4523, 0
          %v4526 = vsel %vm4524, 65537, 0
          %v4527 = vsel %vm4525, 65537, 0
          %v4528 = vunpack.c.l.b16 %v4526
          %v4529 = vunpack.c.l.b16 %v4527
          %vm4530 = vcmp.ne.s32.totalorder %v4528, 0
          %vm4531 = vcmp.ne.s32.totalorder %v4529, 0
          %v4532 = vsel %vm4530, 1, 0
          %v4533 = vsel %vm4531, 1, 0
          %4534 = vset.pattern.permute.xlu0 0
          %4535 = vperm.xlu0 %4534, %v4532
          %v4536 = vpop.permute.xlu0 %4535
          %4537 = vset.pattern.permute.xlu0 0
          %4538 = vperm.xlu0 %4537, %v4533
          %v4539 = vpop.permute.xlu0 %4538
          %vm4540 = vcmp.eq.s32.totalorder %v4536, 1
          %vm4541 = vcmp.eq.s32.totalorder %v4539, 1
          %v4542 = vsel %vm4540, %v4461, -3e+38
          %v4543 = vsel %vm4541, %v4462, -3e+38
          %v4544 = vsel %vm2456, %v4542, -inf
          %v4545 = vsel %vm2456, %v4543, -inf
          %v4546 = vmax.f32 %v4544, %v4545
          %v4547 = vrot.slane %v4546, 4
          %v4548 = vmax.f32 %v4546, %v4547
          %v4549 = vrot.slane %v4548, 2
          %v4550 = vmax.f32 %v4548, %v4549
          %v4551 = vrot.slane %v4550, 1
          %v4552 = vmax.f32 %v4550, %v4551
          %4553 = vrot.lane.b32.xlu0 %v4532, 127
          %v4554 = vpop.permute.xlu0 %4553
          %4555 = vrot.lane.b32.xlu0 %v4533, 127
          %v4556 = vpop.permute.xlu0 %4555
          %vm4557 = vcmp.ne.s32.totalorder %v4554, 0
          %vm4558 = vcmp.ne.s32.totalorder %v4556, 0
          %v4559 = vsel %vm4557, 1, 0
          %v4560 = vsel %vm4558, 1, 0
          %4561 = vset.pattern.permute.xlu0 0
          %4562 = vperm.xlu0 %4561, %v4559
          %v4563 = vpop.permute.xlu0 %4562
          %4564 = vset.pattern.permute.xlu0 0
          %4565 = vperm.xlu0 %4564, %v4560
          %v4566 = vpop.permute.xlu0 %4565
          %vm4567 = vcmp.eq.s32.totalorder %v4563, 1
          %vm4568 = vcmp.eq.s32.totalorder %v4566, 1
          %v4569 = vsel %vm4567, %v4461, -3e+38
          %v4570 = vsel %vm4568, %v4462, -3e+38
          %v4571 = vsel %vm2456, %v4569, -inf
          %v4572 = vsel %vm2456, %v4570, -inf
          %v4573 = vmax.f32 %v4571, %v4572
          %v4574 = vrot.slane %v4573, 4
          %v4575 = vmax.f32 %v4573, %v4574
          %v4576 = vrot.slane %v4575, 2
          %v4577 = vmax.f32 %v4575, %v4576
          %v4578 = vrot.slane %v4577, 1
          %v4579 = vmax.f32 %v4577, %v4578
          %vm4580 = vcmask 1040384
          %v4581 = vsel %vm4580, %v4552, %v4579
          %v4582 = vld [vmem:[%s45] sm:$0xf]
          %v4583 = vld [vmem:[%s45 + $0x4] sm:$0xf]
          %v4584 = vld [vmem:[%s45 + $0x8] sm:$0xf]
          %v4585 = vld [vmem:[%s45 + $0xc] sm:$0xf]
          %v4586 = vld [vmem:[%s45 + $0x10] sm:$0xf]
          %v4587 = vld [vmem:[%s45 + $0x14] sm:$0xf]
          %v4588 = vld [vmem:[%s45 + $0x18] sm:$0xf]
          %v4589 = vld [vmem:[%s45 + $0x1c] sm:$0xf]
          %v4590 = vld [vmem:[%s45 + $0x20] sm:$0xf]
          %v4591 = vld [vmem:[%s45 + $0x24] sm:$0xf]
          %v4592 = vld [vmem:[%s45 + $0x28] sm:$0xf]
          %v4593 = vld [vmem:[%s45 + $0x2c] sm:$0xf]
          %v4594 = vpack.c.bf16 %v4521, %v4521
          %v4595 = vpack.c.bf16 %v4581, %v4581
          %v4600 = vunpack.c.l.b16 %v4586
          %v4601 = vunpack.c.l.b16 %v4587
          %v4602 = vunpack.c.l.b16 %v4588
          %v4603 = vunpack.c.l.b16 %v4589
          %v4604 = vpack.c.b16 %v4601, %v4600
          %v4605 = vpack.c.b16 %v4603, %v4602
          %v4609 = vsel %vm2456, %v4595, 0
          %4611 = vmatprep.subr.bf16.mxu0 0
          %4612 = vmatpush1.bf16.msra.mxu0 %v4604
          %4613 = vmatprep.subr.bf16.mxu0 0
          %4614 = vmatpush1.bf16.msra.mxu0 %v4605
          %4615 = vmatprep.subr.bf16.mxu0 0
          %4616 = vmatpush1.bf16.msra.mxu0 0
          %4617 = vmatprep.subr.bf16.mxu0 0
          %4618 = vmatpush1.bf16.msra.mxu0 0
          %4619 = vmatprep.subr.bf16.mxu0 0
          %4620 = vmatpush1.bf16.msra.mxu0 0
          %4621 = vmatprep.subr.bf16.mxu0 0
          %4622 = vmatpush1.bf16.msra.mxu0 0
          %4623 = vmatprep.subr.bf16.mxu0 0
          %4624 = vmatpush1.bf16.msra.mxu0 0
          %4625 = vmatprep.subr.bf16.mxu0 0
          %4626 = vmatpush1.bf16.msra.mxu0 0
          %4627 = vmatprep.subr.bf16.mxu0 0
          %4628 = vmatpush1.bf16.msra.mxu0 0
          %4629 = vmatprep.subr.bf16.mxu0 0
          %4630 = vmatpush1.bf16.msra.mxu0 0
          %4631 = vmatprep.subr.bf16.mxu0 0
          %4632 = vmatpush1.bf16.msra.mxu0 0
          %4633 = vmatprep.subr.bf16.mxu0 0
          %4634 = vmatpush1.bf16.msra.mxu0 0
          %4635 = vmatprep.subr.bf16.mxu0 0
          %4636 = vmatpush1.bf16.msra.mxu0 0
          %4637 = vmatprep.subr.bf16.mxu0 0
          %4638 = vmatpush1.bf16.msra.mxu0 0
          %4639 = vmatprep.subr.bf16.mxu0 0
          %4640 = vmatpush1.bf16.msra.mxu0 0
          %4641 = vmatprep.subr.bf16.mxu0 0
          %4642 = vmatpush1.bf16.msra.mxu0 0
          %4643 = vmatprep.mubr.bf16.mxu0 0
          %4644 = vmatmul.mubr.bf16.gmra.mrb[0].mxu0 %v4609
          %v4645 = vpop.f32.mrb[0].mxu0
          %v4646 = vadd.f32 0.0, %v4645
          %v4647 = vpop.f32.mrb[0].mxu0
          %v4648 = vpop.f32.mrb[0].mxu0
          %v4649 = vpop.f32.mrb[0].mxu0
          %4650 = vdwg.mxu0
          %v4655 = vunpack.c.l.b16 %v4582
          %v4656 = vunpack.c.l.b16 %v4583
          %v4657 = vunpack.c.l.b16 %v4584
          %v4658 = vunpack.c.l.b16 %v4585
          %v4659 = vpack.c.b16 %v4656, %v4655
          %v4660 = vpack.c.b16 %v4658, %v4657
          %v4664 = vsel %vm2456, %v4594, 0
          %4666 = vmatprep.subr.bf16.mxu0 0
          %4667 = vmatpush1.bf16.msra.mxu0 %v4659
          %4668 = vmatprep.subr.bf16.mxu0 0
          %4669 = vmatpush1.bf16.msra.mxu0 %v4660
          %4670 = vmatprep.subr.bf16.mxu0 0
          %4671 = vmatpush1.bf16.msra.mxu0 0
          %4672 = vmatprep.subr.bf16.mxu0 0
          %4673 = vmatpush1.bf16.msra.mxu0 0
          %4674 = vmatprep.subr.bf16.mxu0 0
          %4675 = vmatpush1.bf16.msra.mxu0 0
          %4676 = vmatprep.subr.bf16.mxu0 0
          %4677 = vmatpush1.bf16.msra.mxu0 0
          %4678 = vmatprep.subr.bf16.mxu0 0
          %4679 = vmatpush1.bf16.msra.mxu0 0
          %4680 = vmatprep.subr.bf16.mxu0 0
          %4681 = vmatpush1.bf16.msra.mxu0 0
          %4682 = vmatprep.subr.bf16.mxu0 0
          %4683 = vmatpush1.bf16.msra.mxu0 0
          %4684 = vmatprep.subr.bf16.mxu0 0
          %4685 = vmatpush1.bf16.msra.mxu0 0
          %4686 = vmatprep.subr.bf16.mxu0 0
          %4687 = vmatpush1.bf16.msra.mxu0 0
          %4688 = vmatprep.subr.bf16.mxu0 0
          %4689 = vmatpush1.bf16.msra.mxu0 0
          %4690 = vmatprep.subr.bf16.mxu0 0
          %4691 = vmatpush1.bf16.msra.mxu0 0
          %4692 = vmatprep.subr.bf16.mxu0 0
          %4693 = vmatpush1.bf16.msra.mxu0 0
          %4694 = vmatprep.subr.bf16.mxu0 0
          %4695 = vmatpush1.bf16.msra.mxu0 0
          %4696 = vmatprep.subr.bf16.mxu0 0
          %4697 = vmatpush1.bf16.msra.mxu0 0
          %4698 = vmatprep.mubr.bf16.mxu0 0
          %4699 = vmatmul.mubr.bf16.gmra.mrb[0].mxu0 %v4664
          %v4700 = vpop.f32.mrb[0].mxu0
          %v4701 = vadd.f32 %v4646, %v4700
          %v4702 = vpop.f32.mrb[0].mxu0
          %v4703 = vpop.f32.mrb[0].mxu0
          %v4704 = vpop.f32.mrb[0].mxu0
          %4705 = vdwg.mxu0
          %v4706 = vpack.c.bf16 %v4509, %v4509
          %v4711 = vunpack.c.l.b16 %v4590
          %v4712 = vunpack.c.l.b16 %v4591
          %v4713 = vunpack.c.l.b16 %v4592
          %v4714 = vunpack.c.l.b16 %v4593
          %v4715 = vpack.c.b16 %v4712, %v4711
          %v4716 = vpack.c.b16 %v4714, %v4713
          %v4720 = vsel %vm2456, %v4706, 0
          %4722 = vmatprep.subr.bf16.mxu0 0
          %4723 = vmatpush1.bf16.msra.mxu0 %v4715
          %4724 = vmatprep.subr.bf16.mxu0 0
          %4725 = vmatpush1.bf16.msra.mxu0 %v4716
          %4726 = vmatprep.subr.bf16.mxu0 0
          %4727 = vmatpush1.bf16.msra.mxu0 0
          %4728 = vmatprep.subr.bf16.mxu0 0
          %4729 = vmatpush1.bf16.msra.mxu0 0
          %4730 = vmatprep.subr.bf16.mxu0 0
          %4731 = vmatpush1.bf16.msra.mxu0 0
          %4732 = vmatprep.subr.bf16.mxu0 0
          %4733 = vmatpush1.bf16.msra.mxu0 0
          %4734 = vmatprep.subr.bf16.mxu0 0
          %4735 = vmatpush1.bf16.msra.mxu0 0
          %4736 = vmatprep.subr.bf16.mxu0 0
          %4737 = vmatpush1.bf16.msra.mxu0 0
          %4738 = vmatprep.subr.bf16.mxu0 0
          %4739 = vmatpush1.bf16.msra.mxu0 0
          %4740 = vmatprep.subr.bf16.mxu0 0
          %4741 = vmatpush1.bf16.msra.mxu0 0
          %4742 = vmatprep.subr.bf16.mxu0 0
          %4743 = vmatpush1.bf16.msra.mxu0 0
          %4744 = vmatprep.subr.bf16.mxu0 0
          %4745 = vmatpush1.bf16.msra.mxu0 0
          %4746 = vmatprep.subr.bf16.mxu0 0
          %4747 = vmatpush1.bf16.msra.mxu0 0
          %4748 = vmatprep.subr.bf16.mxu0 0
          %4749 = vmatpush1.bf16.msra.mxu0 0
          %4750 = vmatprep.subr.bf16.mxu0 0
          %4751 = vmatpush1.bf16.msra.mxu0 0
          %4752 = vmatprep.subr.bf16.mxu0 0
          %4753 = vmatpush1.bf16.msra.mxu0 0
          %4754 = vmatprep.mubr.bf16.mxu0 0
          %4755 = vmatmul.mubr.bf16.gmra.mrb[0].mxu0 %v4720
          %v4756 = vpop.f32.mrb[0].mxu0
          %v4757 = vadd.f32 0.0, %v4756
          %v4758 = vpop.f32.mrb[0].mxu0
          %v4759 = vpop.f32.mrb[0].mxu0
          %v4760 = vpop.f32.mrb[0].mxu0
          %4761 = vdwg.mxu0
          %v4762 = vadd.f32 %v4701, %v4757
          %v4763 = vld [vmem:[%s47] sm:$0x1]
          %v4765 = vlaneseq
          %v4766 = vshrl.u32 %v4765, 7
          %v4767 = vsub.s32 0, %v4766
          %v4768 = vrot.slane %v4763, %v4767
          %v4770 = vadd.f32 %v4762, %v4768
          %v4771 = vmax.f32 %v4770, 0.0
          %v4772 = vpack.c.bf16 %v4771, %v4771
          %v4773 = vld [vmem:[%s49] sm:$0xf]
          %v4774 = vld [vmem:[%s49 + $0x4] sm:$0xf]
          %v4775 = vld [vmem:[%s49 + $0x8] sm:$0xf]
          %v4776 = vld [vmem:[%s49 + $0xc] sm:$0xf]
          %v4777 = vld [vmem:[%s49 + $0x10] sm:$0xf]
          %v4778 = vld [vmem:[%s49 + $0x14] sm:$0xf]
          %v4779 = vld [vmem:[%s49 + $0x18] sm:$0xf]
          %v4780 = vld [vmem:[%s49 + $0x1c] sm:$0xf]
          %v4781 = vld [vmem:[%s51] sm:$0x1]
          %v4783 = vlaneseq
          %v4784 = vshrl.u32 %v4783, 7
          %v4785 = vsub.s32 0, %v4784
          %v4786 = vrot.slane %v4781, %v4785
          %v4796 = vunpack.c.l.b16 %v4773
          %v4797 = vunpack.c.l.b16 %v4774
          %v4798 = vunpack.c.l.b16 %v4775
          %v4799 = vunpack.c.l.b16 %v4776
          %v4800 = vunpack.c.l.b16 %v4777
          %v4801 = vunpack.c.l.b16 %v4778
          %v4802 = vunpack.c.l.b16 %v4779
          %v4803 = vunpack.c.l.b16 %v4780
          %v4804 = vpack.c.b16 %v4797, %v4796
          %v4805 = vpack.c.b16 %v4799, %v4798
          %v4806 = vpack.c.b16 %v4801, %v4800
          %v4807 = vpack.c.b16 %v4803, %v4802
          %vm4812 = vcmask 523264
          %v4814 = vsel %vm4812, %v4772, 0
          %4816 = vmatprep.subr.bf16.mxu0 0
          %4817 = vmatpush1.bf16.msra.mxu0 %v4804
          %4818 = vmatprep.subr.bf16.mxu0 0
          %4819 = vmatpush1.bf16.msra.mxu0 %v4805
          %4820 = vmatprep.subr.bf16.mxu0 0
          %4821 = vmatpush1.bf16.msra.mxu0 %v4806
          %4822 = vmatprep.subr.bf16.mxu0 0
          %4823 = vmatpush1.bf16.msra.mxu0 %v4807
          %4824 = vmatprep.subr.bf16.mxu0 0
          %4825 = vmatpush1.bf16.msra.mxu0 0
          %4826 = vmatprep.subr.bf16.mxu0 0
          %4827 = vmatpush1.bf16.msra.mxu0 0
          %4828 = vmatprep.subr.bf16.mxu0 0
          %4829 = vmatpush1.bf16.msra.mxu0 0
          %4830 = vmatprep.subr.bf16.mxu0 0
          %4831 = vmatpush1.bf16.msra.mxu0 0
          %4832 = vmatprep.subr.bf16.mxu0 0
          %4833 = vmatpush1.bf16.msra.mxu0 0
          %4834 = vmatprep.subr.bf16.mxu0 0
          %4835 = vmatpush1.bf16.msra.mxu0 0
          %4836 = vmatprep.subr.bf16.mxu0 0
          %4837 = vmatpush1.bf16.msra.mxu0 0
          %4838 = vmatprep.subr.bf16.mxu0 0
          %4839 = vmatpush1.bf16.msra.mxu0 0
          %4840 = vmatprep.subr.bf16.mxu0 0
          %4841 = vmatpush1.bf16.msra.mxu0 0
          %4842 = vmatprep.subr.bf16.mxu0 0
          %4843 = vmatpush1.bf16.msra.mxu0 0
          %4844 = vmatprep.subr.bf16.mxu0 0
          %4845 = vmatpush1.bf16.msra.mxu0 0
          %4846 = vmatprep.subr.bf16.mxu0 0
          %4847 = vmatpush1.bf16.msra.mxu0 0
          %4848 = vmatprep.mubr.bf16.mxu0 0
          %4849 = vmatmul.mubr.bf16.gmra.mrb[0].mxu0 %v4814
          %v4850 = vpop.f32.mrb[0].mxu0
          %v4851 = vadd.f32 %v4786, %v4850
          %v4852 = vpop.f32.mrb[0].mxu0
          %v4853 = vpop.f32.mrb[0].mxu0
          %v4854 = vpop.f32.mrb[0].mxu0
          %4855 = vdwg.mxu0
          %v4856 = vmax.f32 %v4851, 0.0
          %v4857 = vpack.c.bf16 %v4856, %v4856
          %v4858 = vld [vmem:[%s53] sm:$0xf]
          %v4859 = vld [vmem:[%s53 + $0x4] sm:$0xf]
          %v4860 = vld [vmem:[%s53 + $0x8] sm:$0xf]
          %v4861 = vld [vmem:[%s53 + $0xc] sm:$0xf]
          %v4862 = vld [vmem:[%s55] sm:$0x1]
          %v4864 = vlaneseq
          %v4865 = vshrl.u32 %v4864, 7
          %v4866 = vsub.s32 0, %v4865
          %v4867 = vrot.slane %v4862, %v4866
          %v4873 = vunpack.c.l.b16 %v4858
          %v4874 = vunpack.c.l.b16 %v4859
          %v4875 = vunpack.c.l.b16 %v4860
          %v4876 = vunpack.c.l.b16 %v4861
          %v4877 = vpack.c.b16 %v4874, %v4873
          %v4878 = vpack.c.b16 %v4876, %v4875
          %v4882 = vsel %vm2456, %v4857, 0
          %4884 = vmatprep.subr.bf16.mxu0 0
          %4885 = vmatpush1.bf16.msra.mxu0 %v4877
          %4886 = vmatprep.subr.bf16.mxu0 0
          %4887 = vmatpush1.bf16.msra.mxu0 %v4878
          %4888 = vmatprep.subr.bf16.mxu0 0
          %4889 = vmatpush1.bf16.msra.mxu0 0
          %4890 = vmatprep.subr.bf16.mxu0 0
          %4891 = vmatpush1.bf16.msra.mxu0 0
          %4892 = vmatprep.subr.bf16.mxu0 0
          %4893 = vmatpush1.bf16.msra.mxu0 0
          %4894 = vmatprep.subr.bf16.mxu0 0
          %4895 = vmatpush1.bf16.msra.mxu0 0
          %4896 = vmatprep.subr.bf16.mxu0 0
          %4897 = vmatpush1.bf16.msra.mxu0 0
          %4898 = vmatprep.subr.bf16.mxu0 0
          %4899 = vmatpush1.bf16.msra.mxu0 0
          %4900 = vmatprep.subr.bf16.mxu0 0
          %4901 = vmatpush1.bf16.msra.mxu0 0
          %4902 = vmatprep.subr.bf16.mxu0 0
          %4903 = vmatpush1.bf16.msra.mxu0 0
          %4904 = vmatprep.subr.bf16.mxu0 0
          %4905 = vmatpush1.bf16.msra.mxu0 0
          %4906 = vmatprep.subr.bf16.mxu0 0
          %4907 = vmatpush1.bf16.msra.mxu0 0
          %4908 = vmatprep.subr.bf16.mxu0 0
          %4909 = vmatpush1.bf16.msra.mxu0 0
          %4910 = vmatprep.subr.bf16.mxu0 0
          %4911 = vmatpush1.bf16.msra.mxu0 0
          %4912 = vmatprep.subr.bf16.mxu0 0
          %4913 = vmatpush1.bf16.msra.mxu0 0
          %4914 = vmatprep.subr.bf16.mxu0 0
          %4915 = vmatpush1.bf16.msra.mxu0 0
          %4916 = vmatprep.mubr.bf16.mxu0 0
          %4917 = vmatmul.mubr.bf16.gmra.mrb[0].mxu0 %v4882
          %v4918 = vpop.f32.mrb[0].mxu0
          %v4919 = vadd.f32 %v4867, %v4918
          %v4920 = vpop.f32.mrb[0].mxu0
          %v4921 = vpop.f32.mrb[0].mxu0
          %v4922 = vpop.f32.mrb[0].mxu0
          %4923 = vdwg.mxu0
          %vm4924 = vcmask 58368
          %4925 = vst.msk [vmem:[#allocation4] sm:$0x3] %vm4924, %v4919
        $region168: #{quantum_gnn_forward.1} parent=159 // pred_fallthru
          _
        // Predicated region
        $region169: #{quantum_gnn_forward.1} parent=159 // pred_check
          %p4926 = pneg %p866
        $region170: #{quantum_gnn_forward.1} parent=159 // pred_check_branch
          %4928 = sbr.rel (%p4926) target = $region172
        $region171: #{quantum_gnn_forward.1} parent=159 // pred_region
          %s4930 = ssub.s32 32, 32
          %4931 = vsyncadd [#allocation5], %s4930
          %s4933 = sshll.u32 [#allocation4], 4
          %s4934 = int_to_ptr.vmem [resolvable:$true] %s4933
          %4936 = dma.vmem_to_hbm [thread:$0]  %s4934, 32, %s71, [#allocation5]
        $region172: #{quantum_gnn_forward.1} parent=159 // pred_fallthru
          _
        // Predicated region
        $region173: #{quantum_gnn_forward.1} parent=159 // pred_check
          %p4937 = pneg %p866
        $region174: #{quantum_gnn_forward.1} parent=159 // pred_check_branch
          %4939 = sbr.rel (%p4937) target = $region176
        $region175: #{quantum_gnn_forward.1} parent=159 // pred_region
          %4940 = dma.done [#allocation5], 32
        $region176: #{quantum_gnn_forward.1} parent=159 // pred_fallthru
          _
      $region160: #{quantum_gnn_forward.1} parent=5 // pred_fallthru
        _
      %p4941 = scmp.le.s32.totalorder 2, %s78
      // Predicated region
      $region177: #{quantum_gnn_forward.1} parent=5 // pred_check
        %p4942 = pneg %p4941
      $region178: #{quantum_gnn_forward.1} parent=5 // pred_check_branch
        %4944 = sbr.rel (%p4942) target = $region180
      $region179: #{quantum_gnn_forward.1} parent=5 // pred_region
        %s4945 = ssub.s32 %s78, 2
      $region180: #{quantum_gnn_forward.1} parent=5 // pred_fallthru
        _
    $region6: #{quantum_gnn_forward.1} parent=1 // loop_footer
      %s82 = sadd.s32 1, %s78
    $region7: #{quantum_gnn_forward.1} parent=1 // loop_footer_branch
      %77 = sbr.rel target = $region3
    $region8: #{quantum_gnn_forward.1} parent=1 // loop_exit
      _
    %4946 = vsyncpa [#allocation5], 1
    %s4947 = scalar_lea.sflag [#allocation5], 1
    %4948 = vsyncpa %s4947, 1

</llo_original>
